<compile_context>
chip_gen: v7x
topology: tpu7x:2x2x1
jax: 0.10.0
libtpu: 0.0.40
codegen_flags: <defaults>
</compile_context>

<pallas_src>
import jax
import jax.numpy as jnp
from jax.experimental import pallas as pl
from jax.experimental.pallas import tpu as pltpu


_FAST_PATH_MAX_BYTES = 64 * 1024          # below this, plain jnp is faster
_TARGET_TILE_BYTES = 4 * 1024 * 1024      # per-x-block VMEM budget
_MAX_TILE_C = 2048                        # cap lane extent per block (mult of 128)
_VMEM_LIMIT_BYTES = 32 * 1024 * 1024      # safe on v5e / v6e / v7x


def _add_bias_kernel(x_ref, b_ref, o_ref):
    # x_ref: (tile_r, tile_c), b_ref: (1, tile_c) broadcast over sublanes.
    o_ref[...] = x_ref[...] + b_ref[...]


def _add_bias_2d_pallas(x2d, bias_row):
    """x2d: (R, C), bias_row: (1, C) -> (R, C) via Pallas (tiled, pipelined)."""
    R, C = x2d.shape
    itemsize = jnp.dtype(x2d.dtype).itemsize

    # Column tiling: full C when modest; otherwise multiples of 128.
    tile_c = C if C <= _MAX_TILE_C else _MAX_TILE_C
    grid_c = pl.cdiv(C, tile_c)

    # Row tiling: VMEM-budgeted, multiple of 32 (keeps bf16/int8 sublane
    # packing aligned), never shrunk to satisfy divisibility — cdiv masks the
    # ragged last block instead.
    tile_r = max(32, (_TARGET_TILE_BYTES // (tile_c * itemsize)) // 32 * 32)
    r_cap = ((R + 31) // 32) * 32
    tile_r = min(tile_r, r_cap)
    grid_r = pl.cdiv(R, tile_r)

    # Rows iterate fastest (last grid axis) so the bias block index is constant
    # across consecutive steps and stays resident in VMEM.
    grid = (grid_c, grid_r)

    return pl.pallas_call(
        _add_bias_kernel,
        out_shape=jax.ShapeDtypeStruct((R, C), x2d.dtype),
        grid_spec=pltpu.PrefetchScalarGridSpec(
            num_scalar_prefetch=0,
            grid=grid,
            in_specs=[
                pl.BlockSpec((tile_r, tile_c), lambda j, i: (i, j)),
                pl.BlockSpec((1, tile_c), lambda j, i: (0, j)),
            ],
            out_specs=pl.BlockSpec((tile_r, tile_c), lambda j, i: (i, j)),
        ),
        compiler_params=pltpu.CompilerParams(
            dimension_semantics=("parallel", "parallel"),
            vmem_limit_bytes=_VMEM_LIMIT_BYTES,
        ),
    )(x2d, bias_row)


def _add_bias_2d(x2d, bias_row):
    """Dispatch: lane-dense folding for small C, then the Pallas kernel."""
    R, C = x2d.shape

    # Small-input fast path: pallas_call launch/DMA overhead dominates.
    if x2d.size * jnp.dtype(x2d.dtype).itemsize < _FAST_PATH_MAX_BYTES:
        return x2d + bias_row

    # Lane-dense folding: C < 128 would lower to masked partial stores and
    # waste most vreg lanes. Fold k rows into the lane axis so the kernel's
    # last dim is exactly 128. Pure layout plumbing — numerically identical.
    if C < 128 and (128 % C == 0):
        k = 128 // C
        pad = (-R) % k
        xp = jnp.pad(x2d, ((0, pad), (0, 0))) if pad else x2d
        x_fold = xp.reshape((R + pad) // k, k * C)
        b_fold = jnp.tile(bias_row, (1, k))
        out = _add_bias_2d_pallas(x_fold, b_fold).reshape(R + pad, C)
        return out[:R] if pad else out

    return _add_bias_2d_pallas(x2d, bias_row)


def add_bias(x, bias_param):
    """Equivalent of AddBias.forward.

    bias_param: shape (C, 1)  (the nn.Parameter, i.e. bias.unsqueeze(1))
    """
    C = bias_param.shape[0]
    bias_row = bias_param.reshape(1, C).astype(x.dtype)  # bias.t().view(1, -1)

    if x.ndim == 2:
        return _add_bias_2d(x, bias_row)
    elif x.ndim == 1:
        # PyTorch: (C,) + (1, C) -> (1, C)
        return _add_bias_2d(x.reshape(1, C), bias_row)
    elif x.ndim == 3:
        N, T, _ = x.shape
        out2d = _add_bias_2d(x.reshape(N * T, C), bias_row)
        return out2d.reshape(N, T, C)
    else:
        raise AssertionError("AddBias only supports 1D, 2D or 3D inputs")


if __name__ == "__main__":
    key = jax.random.PRNGKey(0)
    k_b, k_b2, k1, k2, k3, k4, k5 = jax.random.split(key, 7)

    # ---- small shapes (C = 32), mirror the PyTorch module usage ----------
    C = 32
    bias_vec = jax.random.normal(k_b, (C,), dtype=jnp.float32)
    bias_param = bias_vec[:, None]                      # (C, 1) like nn.Parameter

    x1 = jax.random.normal(k1, (C,), dtype=jnp.float32)          # 1D
    x2 = jax.random.normal(k2, (8, C), dtype=jnp.float32)        # 2D small
    x3 = jax.random.normal(k3, (2, 8, C), dtype=jnp.float32)     # 3D small

    y1 = jax.block_until_ready(add_bias(x1, bias_param))
    y2 = jax.block_until_ready(add_bias(x2, bias_param))
    y3 = jax.block_until_ready(add_bias(x3, bias_param))

    assert y1.shape == (1, C) and jnp.allclose(y1, x1[None, :] + bias_vec[None, :], atol=1e-6)
    assert y2.shape == (8, C) and jnp.allclose(y2, x2 + bias_vec[None, :], atol=1e-6)
    assert y3.shape == (2, 8, C) and jnp.allclose(y3, x3 + bias_vec[None, None, :], atol=1e-6)

    # ---- Pallas path, lane-folded (C=32 -> 128 lanes), ragged cdiv grid ---
    x_big2 = jax.random.normal(k4, (40000, C), dtype=jnp.float32)
    y_big2 = jax.block_until_ready(add_bias(x_big2, bias_param))
    assert y_big2.shape == (40000, C)
    assert jnp.allclose(y_big2, x_big2 + bias_vec[None, :], atol=1e-6)

    # ---- Pallas path, lane-dense C (no folding), 3D input -----------------
    C2 = 256
    bias_vec2 = jax.random.normal(k_b2, (C2,), dtype=jnp.float32)
    bias_param2 = bias_vec2[:, None]
    x_big3 = jax.random.normal(k5, (3, 136, C2), dtype=jnp.float32)
    y_big3 = jax.block_until_ready(add_bias(x_big3, bias_param2))
    assert y_big3.shape == (3, 136, C2)
    assert jnp.allclose(y_big3, x_big3 + bias_vec2[None, None, :], atol=1e-6)

    print("KERNEL_OK")
</pallas_src>

<mosaic_0001>
module attributes {stable_mosaic.version = 11 : i64} {
  func.func @_add_bias_kernel(%arg0: i32, %arg1: i32, %arg2: memref<8192x128xf32, #tpu.memory_space<vmem>>, %arg3: memref<1x128xf32, #tpu.memory_space<vmem>>, %arg4: memref<8192x128xf32, #tpu.memory_space<vmem>>) attributes {dimension_semantics = [#tpu.dimension_semantics<parallel>, #tpu.dimension_semantics<parallel>], iteration_bounds = array<i64: 1, 2>, scalar_prefetch = 0 : i64, scratch_operands = 0 : i64, tpu.core_type = #tpu.core_type<tc>, window_params = [{transform_indices = @transform_0, window_bounds = array<i64: 8192, 128>}, {transform_indices = @transform_1, window_bounds = array<i64: 1, 128>}, {transform_indices = @transform_2, window_bounds = array<i64: 8192, 128>}]} {
    %c0 = arith.constant 0 : index
    %c0_0 = arith.constant 0 : index
    %0 = vector.load %arg2[%c0, %c0_0] : memref<8192x128xf32, #tpu.memory_space<vmem>>, vector<8192x128xf32>
    %c0_1 = arith.constant 0 : index
    %c0_2 = arith.constant 0 : index
    %1 = vector.load %arg3[%c0_1, %c0_2] : memref<1x128xf32, #tpu.memory_space<vmem>>, vector<1x128xf32>
    %2 = vector.broadcast %1 : vector<1x128xf32> to vector<8192x128xf32>
    %3 = arith.addf %0, %2 : vector<8192x128xf32>
    %c0_3 = arith.constant 0 : index
    %c0_4 = arith.constant 0 : index
    %4 = vector.load %arg4[%c0_3, %c0_4] : memref<8192x128xf32, #tpu.memory_space<vmem>>, vector<8192x128xf32>
    tpu.vector_store %arg4[%c0_3, %c0_4], %3 {strides = array<i32>} : memref<8192x128xf32, #tpu.memory_space<vmem>>, vector<8192x128xf32>,
    return
  }
  func.func @transform_0(%arg0: i32, %arg1: i32) -> (i32, i32) {
    %c0_i32 = arith.constant 0 : i32
    return %arg1, %arg0 : i32, i32
  }
  func.func @transform_1(%arg0: i32, %arg1: i32) -> (i32, i32) {
    %c0_i32 = arith.constant 0 : i32
    %c0_i32_0 = arith.constant 0 : i32
    return %c0_i32, %arg0 : i32, i32
  }
  func.func @transform_2(%arg0: i32, %arg1: i32) -> (i32, i32) {
    %c0_i32 = arith.constant 0 : i32
    return %arg1, %arg0 : i32, i32
  }
}

</mosaic_0001>

<llo_original>
// kernel: tpu_custom_call.1
$region0: #{tpu_custom_call.1}
  #allocation0 [shape = 'u32[]', space=smem, size = 0x4, offset = 0x4, fixed_abs, tag = 'smem constant byte address 0x4 - core index']
  #allocation1 [shape = 'u32[144,128]{1,0:T(1,128)}', space=vmem, size = 0x12000, scoped, tag = 'internal scratch']
  %s0 = inlined_call_operand.hbm [shape: f32[10000,128], index: 0, kind: input, shape index: {}]
  %s1 = inlined_call_operand.hbm [shape: f32[1,128], index: 1, kind: input, shape index: {}]
  %s2 = inlined_call_operand.hbm [shape: f32[10000,128], index: 2, kind: output, shape index: {}]
  %s3 = sld [smem:[#allocation0]]
  $region49: #{tpu_custom_call.1} parent=0
    _
  %s5 = ssub.s32 1, %s3
  %s6 = scalar_select 0, %s5, %s3
  $region1: #{tpu_custom_call.1} parent=0
    #allocation2 [shape = 'u8[8388608]{0}', space=vmem, size = 0x800000, scoped, tag = 'input window, operand 0']
    #allocation3 [shape = 's32[2]{0}', space=sflag, size = 0x8, scoped, tag = 'scoped memory for tpu_custom_call.1']
    #allocation4 [shape = 's32[2]{0}', space=sflag, size = 0x8, scoped, tag = 'scoped memory for tpu_custom_call.1']
    #allocation5 [shape = 'u8[512]{0}', space=vmem, size = 0x400, scoped, tag = 'input window, operand 1, single buffered']
    #allocation6 [shape = 's32[1]{0}', space=sflag, size = 0x4, scoped, tag = 'scoped memory for tpu_custom_call.1']
    #allocation7 [shape = 'u8[8388608]{0}', space=vmem, size = 0x800000, scoped, tag = 'output window, operand 0']
    %7 = vsyncpa [#allocation3], 0
    %s8 = scalar_lea.sflag [#allocation3], 1
    %9 = vsyncpa %s8, 0
    %10 = vsyncpa [#allocation6], 0
    %11 = vsyncpa [#allocation4], 0
    %s12 = scalar_lea.sflag [#allocation4], 1
    %13 = vsyncpa %s12, 0
    loop: start=0, step=1, limit=4
    $region2: #{tpu_custom_call.1} parent=1 // loop_pre_header
      _
    $region3: #{tpu_custom_call.1} parent=1 // loop_header
      %s15 = sphi 0, %s19
      %p16 = scmp.ge.s32.totalorder %s15, 4
      %s22 = sphi 0, %s34
      %s23 = sphi 0, %s30
      %s24 = sphi 0, %s22
      %s25 = sphi 0, %s23
      %s26 = sphi 0, %s24
      %s27 = sphi 0, %s25
      %s39 = sphi 0, %s41
      %s42 = sphi 0, %s39
      %s43 = sphi 0, %s42
      %s59 = sphi 0, %s43
      %s65 = sphi 0, %s67
      %s68 = sphi 0, %s65
      %s69 = sphi 0, %s68
      %s85 = sphi 0, %s69
      %s93 = sphi 0, %s95
      %s96 = sphi 0, %s93
      %s97 = sphi 0, %s96
      %s113 = sphi 0, %s97
    $region4: #{tpu_custom_call.1} parent=1 // loop_header_branch
      %18 = sbr.rel (%p16) target = $region8
    $region5: #{tpu_custom_call.1} parent=1 // loop_body
      %s20 = ssub.s32 %s15, 1
      %s21 = ssub.s32 %s15, 2
      %s28 = sadd.s32 1, %s23
      %p29 = scmp.ge.s32.totalorder %s28, 2
      %s30 = scalar_select %p29, 0, %s28
      %s31 = sadd.s32 1, %s22
      %s32 = scalar_select %p29, %s31, %s22
      %p33 = scmp.ge.s32.totalorder %s32, 1
      %s34 = scalar_select %p33, 0, %s32
      %s35 = ssub.s32 %s23, %s30
      %s36 = ssub.s32 %s22, %s34
      %s37 = sor.u32 %s35, %s36
      %p38 = scmp.eq.s32.totalorder %s37, 0
      %s40 = sadd.s32 %s39, 1
      %s41 = scalar_select %p38, %s39, %s40
      %p44 = pneg %p38
      %p45 = scmp.eq.s32.totalorder %s15, 1
      %p46 = por %p44, %p45
      %p47 = scmp.ne.s32.totalorder %s39, %s42
      %p48 = scmp.eq.s32.totalorder %s15, 0
      %p49 = por %p47, %p48
      %p50 = scmp.ne.s32.totalorder %s39, %s42
      %p51 = scmp.eq.s32.totalorder %s20, 1
      %p52 = por %p50, %p51
      %p53 = scmp.ne.s32.totalorder %s42, %s43
      %p54 = scmp.eq.s32.totalorder %s20, 0
      %p55 = por %p53, %p54
      %p56 = scmp.ne.s32.totalorder %s42, %s43
      %p57 = scmp.eq.s32.totalorder %s21, 1
      %p58 = por %p56, %p57
      %p60 = scmp.ne.s32.totalorder %s43, %s59
      %p61 = scmp.eq.s32.totalorder %s21, 0
      %p62 = por %p60, %p61
      %s63 = ssub.s32 %s22, %s34
      %p64 = scmp.eq.s32.totalorder %s63, 0
      %s66 = sadd.s32 %s65, 1
      %s67 = scalar_select %p64, %s65, %s66
      %p70 = pneg %p64
      %p71 = scmp.eq.s32.totalorder %s15, 1
      %p72 = por %p70, %p71
      %p73 = scmp.ne.s32.totalorder %s65, %s68
      %p74 = scmp.eq.s32.totalorder %s15, 0
      %p75 = por %p73, %p74
      %p76 = scmp.ne.s32.totalorder %s65, %s68
      %p77 = scmp.eq.s32.totalorder %s20, 1
      %p78 = por %p76, %p77
      %p79 = scmp.ne.s32.totalorder %s68, %s69
      %p80 = scmp.eq.s32.totalorder %s20, 0
      %p81 = por %p79, %p80
      %p82 = scmp.ne.s32.totalorder %s68, %s69
      %p83 = scmp.eq.s32.totalorder %s21, 1
      %p84 = por %p82, %p83
      %p86 = scmp.ne.s32.totalorder %s69, %s85
      %p87 = scmp.eq.s32.totalorder %s21, 0
      %p88 = por %p86, %p87
      %s89 = ssub.s32 %s23, %s30
      %s90 = ssub.s32 %s22, %s34
      %s91 = sor.u32 %s89, %s90
      %p92 = scmp.eq.s32.totalorder %s91, 0
      %s94 = sadd.s32 %s93, 1
      %s95 = scalar_select %p92, %s93, %s94
      %p98 = pneg %p92
      %p99 = scmp.eq.s32.totalorder %s15, 1
      %p100 = por %p98, %p99
      %p101 = scmp.ne.s32.totalorder %s93, %s96
      %p102 = scmp.eq.s32.totalorder %s15, 0
      %p103 = por %p101, %p102
      %p104 = scmp.ne.s32.totalorder %s93, %s96
      %p105 = scmp.eq.s32.totalorder %s20, 1
      %p106 = por %p104, %p105
      %p107 = scmp.ne.s32.totalorder %s96, %s97
      %p108 = scmp.eq.s32.totalorder %s20, 0
      %p109 = por %p107, %p108
      %p110 = scmp.ne.s32.totalorder %s96, %s97
      %p111 = scmp.eq.s32.totalorder %s21, 1
      %p112 = por %p110, %p111
      %p114 = scmp.ne.s32.totalorder %s97, %s113
      %p115 = scmp.eq.s32.totalorder %s21, 0
      %p116 = por %p114, %p115
      %p117 = scmp.le.s32.totalorder 1, %s15
      %p118 = scmp.lt.s32.totalorder %s15, 3
      %p119 = pnand %p117, %p118
      %p120 = pneg %p119
      // Predicated region
      $region9: #{tpu_custom_call.1} parent=5 // pred_check
        _
      $region10: #{tpu_custom_call.1} parent=5 // pred_check_branch
        %122 = sbr.rel (%p119) target = $region12
      $region11: #{tpu_custom_call.1} parent=5 // pred_region
        %s123 = ssub.s32 %s15, 1
        // Predicated region
        $region13: #{tpu_custom_call.1} parent=11 // pred_check
          %p124 = pneg %p81
        $region14: #{tpu_custom_call.1} parent=11 // pred_check_branch
          %126 = sbr.rel (%p124) target = $region16
        $region15: #{tpu_custom_call.1} parent=11 // pred_region
          %s128 = ssub.s32 16, 16
          %129 = vsyncadd [#allocation6], %s128
          %s130 = smul.addr %s24, 16
          %s131 = scalar_lea.hbm %s1, %s130
          %s133 = sshll.u32 [#allocation5], 4
          %s134 = int_to_ptr.vmem [resolvable:$true] %s133
          %136 = dma.hbm_to_vmem [thread:$0]  %s131, 16, %s134, [#allocation6]
        $region16: #{tpu_custom_call.1} parent=11 // pred_fallthru
          _
      $region12: #{tpu_custom_call.1} parent=5 // pred_fallthru
        _
      %p137 = scmp.lt.s32.totalorder %s15, 2
      // Predicated region
      $region17: #{tpu_custom_call.1} parent=5 // pred_check
        %p138 = pneg %p137
      $region18: #{tpu_custom_call.1} parent=5 // pred_check_branch
        %140 = sbr.rel (%p138) target = $region20
      $region19: #{tpu_custom_call.1} parent=5 // pred_region
        // Predicated region
        $region21: #{tpu_custom_call.1} parent=19 // pred_check
          %p141 = pneg %p49
        $region22: #{tpu_custom_call.1} parent=19 // pred_check_branch
          %143 = sbr.rel (%p141) target = $region24
        $region23: #{tpu_custom_call.1} parent=19 // pred_region
          %s144 = sand.u32 %s39, 1
          %s145 = scalar_lea.sflag [#allocation3], %s144
          %s146 = sand.u32 %s39, 1
          %s147 = smul.addr %s146, 8192
          %s148 = scalar_lea.vmem [#allocation2], %s147
          %s149 = smul.u32 1024, %s23
          %s150 = ssub.s32 1250, %s149
          %p151 = scmp.lt.s32.totalorder %s150, 1024
          %s152 = scalar_select %p151, %s150, 1024
          %s153 = smul.u32 128, %s152
          %s155 = ssub.s32 131072, %s153
          %156 = vsyncadd %s145, %s155
          %p157 = scmp.ne.s32.totalorder 0, %s153
          %s158 = sadd.s32 %s22, %s149
          %s159 = smul.addr %s158, 128
          %s160 = scalar_lea.hbm %s0, %s159
          %s161 = smul.u32 8, %s152
          %s162 = sshll.u32 %s148, 4
          %s163 = int_to_ptr.vmem [resolvable:$true] %s162
          %s164 = sshll.u32 %s161, 4
          %168 = dma.hbm_to_vmem [thread:$0]  (%p157), %s160, %s164, %s163, %s145, 128, 128, 8
        $region24: #{tpu_custom_call.1} parent=19 // pred_fallthru
          _
      $region20: #{tpu_custom_call.1} parent=5 // pred_fallthru
        _
      %p169 = scmp.le.s32.totalorder 1, %s15
      %p170 = scmp.lt.s32.totalorder %s15, 3
      %p171 = pnand %p169, %p170
      %p172 = pneg %p171
      // Predicated region
      $region25: #{tpu_custom_call.1} parent=5 // pred_check
        _
      $region26: #{tpu_custom_call.1} parent=5 // pred_check_branch
        %174 = sbr.rel (%p171) target = $region28
      $region27: #{tpu_custom_call.1} parent=5 // pred_region
        %s175 = ssub.s32 %s15, 1
        %s176 = sand.u32 %s42, 1
        %s177 = scalar_lea.sflag [#allocation3], %s176
        %s178 = sand.u32 %s42, 1
        %s179 = smul.addr %s178, 8192
        %s180 = scalar_lea.vmem [#allocation2], %s179
        // Predicated region
        $region29: #{tpu_custom_call.1} parent=27 // pred_check
          %p181 = pneg %p55
        $region30: #{tpu_custom_call.1} parent=27 // pred_check_branch
          %183 = sbr.rel (%p181) target = $region32
        $region31: #{tpu_custom_call.1} parent=27 // pred_region
          %184 = dma.done %s177, 131072
        $region32: #{tpu_custom_call.1} parent=27 // pred_fallthru
          _
        // Predicated region
        $region33: #{tpu_custom_call.1} parent=27 // pred_check
          %p185 = pneg %p81
        $region34: #{tpu_custom_call.1} parent=27 // pred_check_branch
          %187 = sbr.rel (%p185) target = $region36
        $region35: #{tpu_custom_call.1} parent=27 // pred_region
          %188 = dma.done [#allocation6], 16
        $region36: #{tpu_custom_call.1} parent=27 // pred_fallthru
          _
        %s189 = sand.u32 %s42, 1
        %s190 = scalar_lea.sflag [#allocation3], %s189
        %s191 = sand.u32 %s42, 1
        %s192 = smul.addr %s191, 8192
        %s193 = scalar_lea.vmem [#allocation2], %s192
        %p194 = pneg %p55
        %p195 = pneg %p52
        %p196 = pneg %p81
        %p197 = pneg %p78
        %p198 = pneg %p109
        %p199 = pneg %p106
        %s200 = sand.u32 %s96, 1
        %s201 = scalar_lea.sflag [#allocation4], %s200
        %s202 = sand.u32 %s96, 1
        %s203 = smul.addr %s202, 8192
        %s204 = scalar_lea.vmem [#allocation7], %s203
        %s205 = smul.u32 1024, %s25
        %s206 = ssub.s32 1250, %s205
        %p207 = scmp.lt.s32.totalorder %s206, 1024
        %s208 = scalar_select %p207, %s206, 1024
        %s209 = smul.u32 128, %s208
        %s210 = smul.u32 1024, %s25
        %s211 = ssub.s32 1250, %s210
        %p212 = scmp.lt.s32.totalorder %s211, 1024
        %s213 = scalar_select %p212, %s211, 1024
        %s214 = smul.u32 128, %s213
        %v215 = vld [vmem:[%s180] sm:$0xff]
        %v216 = vld [vmem:[%s180 + $0x8] sm:$0xff]
        %v217 = vld [vmem:[%s180 + $0x10] sm:$0xff]
        %v218 = vld [vmem:[%s180 + $0x18] sm:$0xff]
        %v219 = vld [vmem:[%s180 + $0x20] sm:$0xff]
        %v220 = vld [vmem:[%s180 + $0x28] sm:$0xff]
        %v221 = vld [vmem:[%s180 + $0x30] sm:$0xff]
        %v222 = vld [vmem:[%s180 + $0x38] sm:$0xff]
        %v223 = vld [vmem:[%s180 + $0x40] sm:$0xff]
        %v224 = vld [vmem:[%s180 + $0x48] sm:$0xff]
        %v225 = vld [vmem:[%s180 + $0x50] sm:$0xff]
        %v226 = vld [vmem:[%s180 + $0x58] sm:$0xff]
        %v227 = vld [vmem:[%s180 + $0x60] sm:$0xff]
        %v228 = vld [vmem:[%s180 + $0x68] sm:$0xff]
        %v229 = vld [vmem:[%s180 + $0x70] sm:$0xff]
        %v230 = vld [vmem:[%s180 + $0x78] sm:$0xff]
        %v231 = vld [vmem:[%s180 + $0x80] sm:$0xff]
        %v232 = vld [vmem:[%s180 + $0x88] sm:$0xff]
        %v233 = vld [vmem:[%s180 + $0x90] sm:$0xff]
        %v234 = vld [vmem:[%s180 + $0x98] sm:$0xff]
        %v235 = vld [vmem:[%s180 + $0xa0] sm:$0xff]
        %v236 = vld [vmem:[%s180 + $0xa8] sm:$0xff]
        %v237 = vld [vmem:[%s180 + $0xb0] sm:$0xff]
        %v238 = vld [vmem:[%s180 + $0xb8] sm:$0xff]
        %v239 = vld [vmem:[%s180 + $0xc0] sm:$0xff]
        %v240 = vld [vmem:[%s180 + $0xc8] sm:$0xff]
        %v241 = vld [vmem:[%s180 + $0xd0] sm:$0xff]
        %v242 = vld [vmem:[%s180 + $0xd8] sm:$0xff]
        %v243 = vld [vmem:[%s180 + $0xe0] sm:$0xff]
        %v244 = vld [vmem:[%s180 + $0xe8] sm:$0xff]
        %v245 = vld [vmem:[%s180 + $0xf0] sm:$0xff]
        %v246 = vld [vmem:[%s180 + $0xf8] sm:$0xff]
        %v247 = vld [vmem:[%s180 + $0x100] sm:$0xff]
        %v248 = vld [vmem:[%s180 + $0x108] sm:$0xff]
        %v249 = vld [vmem:[%s180 + $0x110] sm:$0xff]
        %v250 = vld [vmem:[%s180 + $0x118] sm:$0xff]
        %v251 = vld [vmem:[%s180 + $0x120] sm:$0xff]
        %v252 = vld [vmem:[%s180 + $0x128] sm:$0xff]
        %v253 = vld [vmem:[%s180 + $0x130] sm:$0xff]
        %v254 = vld [vmem:[%s180 + $0x138] sm:$0xff]
        %v255 = vld [vmem:[%s180 + $0x140] sm:$0xff]
        %v256 = vld [vmem:[%s180 + $0x148] sm:$0xff]
        %v257 = vld [vmem:[%s180 + $0x150] sm:$0xff]
        %v258 = vld [vmem:[%s180 + $0x158] sm:$0xff]
        %v259 = vld [vmem:[%s180 + $0x160] sm:$0xff]
        %v260 = vld [vmem:[%s180 + $0x168] sm:$0xff]
        %v261 = vld [vmem:[%s180 + $0x170] sm:$0xff]
        %v262 = vld [vmem:[%s180 + $0x178] sm:$0xff]
        %v263 = vld [vmem:[%s180 + $0x180] sm:$0xff]
        %v264 = vld [vmem:[%s180 + $0x188] sm:$0xff]
        %v265 = vld [vmem:[%s180 + $0x190] sm:$0xff]
        %v266 = vld [vmem:[%s180 + $0x198] sm:$0xff]
        %v267 = vld [vmem:[%s180 + $0x1a0] sm:$0xff]
        %v268 = vld [vmem:[%s180 + $0x1a8] sm:$0xff]
        %v269 = vld [vmem:[%s180 + $0x1b0] sm:$0xff]
        %v270 = vld [vmem:[%s180 + $0x1b8] sm:$0xff]
        %v271 = vld [vmem:[%s180 + $0x1c0] sm:$0xff]
        %v272 = vld [vmem:[%s180 + $0x1c8] sm:$0xff]
        %v273 = vld [vmem:[%s180 + $0x1d0] sm:$0xff]
        %v274 = vld [vmem:[%s180 + $0x1d8] sm:$0xff]
        %v275 = vld [vmem:[%s180 + $0x1e0] sm:$0xff]
        %v276 = vld [vmem:[%s180 + $0x1e8] sm:$0xff]
        %v277 = vld [vmem:[%s180 + $0x1f0] sm:$0xff]
        %v278 = vld [vmem:[%s180 + $0x1f8] sm:$0xff]
        %v279 = vld [vmem:[%s180 + $0x200] sm:$0xff]
        %v280 = vld [vmem:[%s180 + $0x208] sm:$0xff]
        %v281 = vld [vmem:[%s180 + $0x210] sm:$0xff]
        %v282 = vld [vmem:[%s180 + $0x218] sm:$0xff]
        %v283 = vld [vmem:[%s180 + $0x220] sm:$0xff]
        %v284 = vld [vmem:[%s180 + $0x228] sm:$0xff]
        %v285 = vld [vmem:[%s180 + $0x230] sm:$0xff]
        %v286 = vld [vmem:[%s180 + $0x238] sm:$0xff]
        %v287 = vld [vmem:[%s180 + $0x240] sm:$0xff]
        %v288 = vld [vmem:[%s180 + $0x248] sm:$0xff]
        %v289 = vld [vmem:[%s180 + $0x250] sm:$0xff]
        %v290 = vld [vmem:[%s180 + $0x258] sm:$0xff]
        %v291 = vld [vmem:[%s180 + $0x260] sm:$0xff]
        %v292 = vld [vmem:[%s180 + $0x268] sm:$0xff]
        %v293 = vld [vmem:[%s180 + $0x270] sm:$0xff]
        %v294 = vld [vmem:[%s180 + $0x278] sm:$0xff]
        %v295 = vld [vmem:[%s180 + $0x280] sm:$0xff]
        %v296 = vld [vmem:[%s180 + $0x288] sm:$0xff]
        %v297 = vld [vmem:[%s180 + $0x290] sm:$0xff]
        %v298 = vld [vmem:[%s180 + $0x298] sm:$0xff]
        %v299 = vld [vmem:[%s180 + $0x2a0] sm:$0xff]
        %v300 = vld [vmem:[%s180 + $0x2a8] sm:$0xff]
        %v301 = vld [vmem:[%s180 + $0x2b0] sm:$0xff]
        %v302 = vld [vmem:[%s180 + $0x2b8] sm:$0xff]
        %v303 = vld [vmem:[%s180 + $0x2c0] sm:$0xff]
        %v304 = vld [vmem:[%s180 + $0x2c8] sm:$0xff]
        %v305 = vld [vmem:[%s180 + $0x2d0] sm:$0xff]
        %v306 = vld [vmem:[%s180 + $0x2d8] sm:$0xff]
        %v307 = vld [vmem:[%s180 + $0x2e0] sm:$0xff]
        %v308 = vld [vmem:[%s180 + $0x2e8] sm:$0xff]
        %v309 = vld [vmem:[%s180 + $0x2f0] sm:$0xff]
        %v310 = vld [vmem:[%s180 + $0x2f8] sm:$0xff]
        %v311 = vld [vmem:[%s180 + $0x300] sm:$0xff]
        %v312 = vld [vmem:[%s180 + $0x308] sm:$0xff]
        %v313 = vld [vmem:[%s180 + $0x310] sm:$0xff]
        %v314 = vld [vmem:[%s180 + $0x318] sm:$0xff]
        %v315 = vld [vmem:[%s180 + $0x320] sm:$0xff]
        %v316 = vld [vmem:[%s180 + $0x328] sm:$0xff]
        %v317 = vld [vmem:[%s180 + $0x330] sm:$0xff]
        %v318 = vld [vmem:[%s180 + $0x338] sm:$0xff]
        %v319 = vld [vmem:[%s180 + $0x340] sm:$0xff]
        %v320 = vld [vmem:[%s180 + $0x348] sm:$0xff]
        %v321 = vld [vmem:[%s180 + $0x350] sm:$0xff]
        %v322 = vld [vmem:[%s180 + $0x358] sm:$0xff]
        %v323 = vld [vmem:[%s180 + $0x360] sm:$0xff]
        %v324 = vld [vmem:[%s180 + $0x368] sm:$0xff]
        %v325 = vld [vmem:[%s180 + $0x370] sm:$0xff]
        %v326 = vld [vmem:[%s180 + $0x378] sm:$0xff]
        %v327 = vld [vmem:[%s180 + $0x380] sm:$0xff]
        %v328 = vld [vmem:[%s180 + $0x388] sm:$0xff]
        %v329 = vld [vmem:[%s180 + $0x390] sm:$0xff]
        %v330 = vld [vmem:[%s180 + $0x398] sm:$0xff]
        %v331 = vld [vmem:[%s180 + $0x3a0] sm:$0xff]
        %v332 = vld [vmem:[%s180 + $0x3a8] sm:$0xff]
        %v333 = vld [vmem:[%s180 + $0x3b0] sm:$0xff]
        %v334 = vld [vmem:[%s180 + $0x3b8] sm:$0xff]
        %v335 = vld [vmem:[%s180 + $0x3c0] sm:$0xff]
        %v336 = vld [vmem:[%s180 + $0x3c8] sm:$0xff]
        %v337 = vld [vmem:[%s180 + $0x3d0] sm:$0xff]
        %v338 = vld [vmem:[%s180 + $0x3d8] sm:$0xff]
        %v339 = vld [vmem:[%s180 + $0x3e0] sm:$0xff]
        %v340 = vld [vmem:[%s180 + $0x3e8] sm:$0xff]
        %v341 = vld [vmem:[%s180 + $0x3f0] sm:$0xff]
        %v342 = vld [vmem:[%s180 + $0x3f8] sm:$0xff]
        %v343 = vld [vmem:[%s180 + $0x400] sm:$0xff]
        %v344 = vld [vmem:[%s180 + $0x408] sm:$0xff]
        %v345 = vld [vmem:[%s180 + $0x410] sm:$0xff]
        %v346 = vld [vmem:[%s180 + $0x418] sm:$0xff]
        %v347 = vld [vmem:[%s180 + $0x420] sm:$0xff]
        %v348 = vld [vmem:[%s180 + $0x428] sm:$0xff]
        %v349 = vld [vmem:[%s180 + $0x430] sm:$0xff]
        %v350 = vld [vmem:[%s180 + $0x438] sm:$0xff]
        %v351 = vld [vmem:[%s180 + $0x440] sm:$0xff]
        %v352 = vld [vmem:[%s180 + $0x448] sm:$0xff]
        %v353 = vld [vmem:[%s180 + $0x450] sm:$0xff]
        %v354 = vld [vmem:[%s180 + $0x458] sm:$0xff]
        %v355 = vld [vmem:[%s180 + $0x460] sm:$0xff]
        %v356 = vld [vmem:[%s180 + $0x468] sm:$0xff]
        %v357 = vld [vmem:[%s180 + $0x470] sm:$0xff]
        %v358 = vld [vmem:[%s180 + $0x478] sm:$0xff]
        %v359 = vld [vmem:[%s180 + $0x480] sm:$0xff]
        %v360 = vld [vmem:[%s180 + $0x488] sm:$0xff]
        %v361 = vld [vmem:[%s180 + $0x490] sm:$0xff]
        %v362 = vld [vmem:[%s180 + $0x498] sm:$0xff]
        %v363 = vld [vmem:[%s180 + $0x4a0] sm:$0xff]
        %v364 = vld [vmem:[%s180 + $0x4a8] sm:$0xff]
        %v365 = vld [vmem:[%s180 + $0x4b0] sm:$0xff]
        %v366 = vld [vmem:[%s180 + $0x4b8] sm:$0xff]
        %v367 = vld [vmem:[%s180 + $0x4c0] sm:$0xff]
        %v368 = vld [vmem:[%s180 + $0x4c8] sm:$0xff]
        %v369 = vld [vmem:[%s180 + $0x4d0] sm:$0xff]
        %v370 = vld [vmem:[%s180 + $0x4d8] sm:$0xff]
        %v371 = vld [vmem:[%s180 + $0x4e0] sm:$0xff]
        %v372 = vld [vmem:[%s180 + $0x4e8] sm:$0xff]
        %v373 = vld [vmem:[%s180 + $0x4f0] sm:$0xff]
        %v374 = vld [vmem:[%s180 + $0x4f8] sm:$0xff]
        %v375 = vld [vmem:[%s180 + $0x500] sm:$0xff]
        %v376 = vld [vmem:[%s180 + $0x508] sm:$0xff]
        %v377 = vld [vmem:[%s180 + $0x510] sm:$0xff]
        %v378 = vld [vmem:[%s180 + $0x518] sm:$0xff]
        %v379 = vld [vmem:[%s180 + $0x520] sm:$0xff]
        %v380 = vld [vmem:[%s180 + $0x528] sm:$0xff]
        %v381 = vld [vmem:[%s180 + $0x530] sm:$0xff]
        %v382 = vld [vmem:[%s180 + $0x538] sm:$0xff]
        %v383 = vld [vmem:[%s180 + $0x540] sm:$0xff]
        %v384 = vld [vmem:[%s180 + $0x548] sm:$0xff]
        %v385 = vld [vmem:[%s180 + $0x550] sm:$0xff]
        %v386 = vld [vmem:[%s180 + $0x558] sm:$0xff]
        %v387 = vld [vmem:[%s180 + $0x560] sm:$0xff]
        %v388 = vld [vmem:[%s180 + $0x568] sm:$0xff]
        %v389 = vld [vmem:[%s180 + $0x570] sm:$0xff]
        %v390 = vld [vmem:[%s180 + $0x578] sm:$0xff]
        %v391 = vld [vmem:[%s180 + $0x580] sm:$0xff]
        %v392 = vld [vmem:[%s180 + $0x588] sm:$0xff]
        %v393 = vld [vmem:[%s180 + $0x590] sm:$0xff]
        %v394 = vld [vmem:[%s180 + $0x598] sm:$0xff]
        %v395 = vld [vmem:[%s180 + $0x5a0] sm:$0xff]
        %v396 = vld [vmem:[%s180 + $0x5a8] sm:$0xff]
        %v397 = vld [vmem:[%s180 + $0x5b0] sm:$0xff]
        %v398 = vld [vmem:[%s180 + $0x5b8] sm:$0xff]
        %v399 = vld [vmem:[%s180 + $0x5c0] sm:$0xff]
        %v400 = vld [vmem:[%s180 + $0x5c8] sm:$0xff]
        %v401 = vld [vmem:[%s180 + $0x5d0] sm:$0xff]
        %v402 = vld [vmem:[%s180 + $0x5d8] sm:$0xff]
        %v403 = vld [vmem:[%s180 + $0x5e0] sm:$0xff]
        %v404 = vld [vmem:[%s180 + $0x5e8] sm:$0xff]
        %v405 = vld [vmem:[%s180 + $0x5f0] sm:$0xff]
        %v406 = vld [vmem:[%s180 + $0x5f8] sm:$0xff]
        %v407 = vld [vmem:[%s180 + $0x600] sm:$0xff]
        %v408 = vld [vmem:[%s180 + $0x608] sm:$0xff]
        %v409 = vld [vmem:[%s180 + $0x610] sm:$0xff]
        %v410 = vld [vmem:[%s180 + $0x618] sm:$0xff]
        %v411 = vld [vmem:[%s180 + $0x620] sm:$0xff]
        %v412 = vld [vmem:[%s180 + $0x628] sm:$0xff]
        %v413 = vld [vmem:[%s180 + $0x630] sm:$0xff]
        %v414 = vld [vmem:[%s180 + $0x638] sm:$0xff]
        %v415 = vld [vmem:[%s180 + $0x640] sm:$0xff]
        %v416 = vld [vmem:[%s180 + $0x648] sm:$0xff]
        %v417 = vld [vmem:[%s180 + $0x650] sm:$0xff]
        %v418 = vld [vmem:[%s180 + $0x658] sm:$0xff]
        %v419 = vld [vmem:[%s180 + $0x660] sm:$0xff]
        %v420 = vld [vmem:[%s180 + $0x668] sm:$0xff]
        %v421 = vld [vmem:[%s180 + $0x670] sm:$0xff]
        %v422 = vld [vmem:[%s180 + $0x678] sm:$0xff]
        %v423 = vld [vmem:[%s180 + $0x680] sm:$0xff]
        %v424 = vld [vmem:[%s180 + $0x688] sm:$0xff]
        %v425 = vld [vmem:[%s180 + $0x690] sm:$0xff]
        %v426 = vld [vmem:[%s180 + $0x698] sm:$0xff]
        %v427 = vld [vmem:[%s180 + $0x6a0] sm:$0xff]
        %v428 = vld [vmem:[%s180 + $0x6a8] sm:$0xff]
        %v429 = vld [vmem:[%s180 + $0x6b0] sm:$0xff]
        %v430 = vld [vmem:[%s180 + $0x6b8] sm:$0xff]
        %v431 = vld [vmem:[%s180 + $0x6c0] sm:$0xff]
        %v432 = vld [vmem:[%s180 + $0x6c8] sm:$0xff]
        %v433 = vld [vmem:[%s180 + $0x6d0] sm:$0xff]
        %v434 = vld [vmem:[%s180 + $0x6d8] sm:$0xff]
        %v435 = vld [vmem:[%s180 + $0x6e0] sm:$0xff]
        %v436 = vld [vmem:[%s180 + $0x6e8] sm:$0xff]
        %v437 = vld [vmem:[%s180 + $0x6f0] sm:$0xff]
        %v438 = vld [vmem:[%s180 + $0x6f8] sm:$0xff]
        %v439 = vld [vmem:[%s180 + $0x700] sm:$0xff]
        %v440 = vld [vmem:[%s180 + $0x708] sm:$0xff]
        %v441 = vld [vmem:[%s180 + $0x710] sm:$0xff]
        %v442 = vld [vmem:[%s180 + $0x718] sm:$0xff]
        %v443 = vld [vmem:[%s180 + $0x720] sm:$0xff]
        %v444 = vld [vmem:[%s180 + $0x728] sm:$0xff]
        %v445 = vld [vmem:[%s180 + $0x730] sm:$0xff]
        %v446 = vld [vmem:[%s180 + $0x738] sm:$0xff]
        %v447 = vld [vmem:[%s180 + $0x740] sm:$0xff]
        %v448 = vld [vmem:[%s180 + $0x748] sm:$0xff]
        %v449 = vld [vmem:[%s180 + $0x750] sm:$0xff]
        %v450 = vld [vmem:[%s180 + $0x758] sm:$0xff]
        %v451 = vld [vmem:[%s180 + $0x760] sm:$0xff]
        %v452 = vld [vmem:[%s180 + $0x768] sm:$0xff]
        %v453 = vld [vmem:[%s180 + $0x770] sm:$0xff]
        %v454 = vld [vmem:[%s180 + $0x778] sm:$0xff]
        %v455 = vld [vmem:[%s180 + $0x780] sm:$0xff]
        %v456 = vld [vmem:[%s180 + $0x788] sm:$0xff]
        %v457 = vld [vmem:[%s180 + $0x790] sm:$0xff]
        %v458 = vld [vmem:[%s180 + $0x798] sm:$0xff]
        %v459 = vld [vmem:[%s180 + $0x7a0] sm:$0xff]
        %v460 = vld [vmem:[%s180 + $0x7a8] sm:$0xff]
        %v461 = vld [vmem:[%s180 + $0x7b0] sm:$0xff]
        %v462 = vld [vmem:[%s180 + $0x7b8] sm:$0xff]
        %v463 = vld [vmem:[%s180 + $0x7c0] sm:$0xff]
        %v464 = vld [vmem:[%s180 + $0x7c8] sm:$0xff]
        %v465 = vld [vmem:[%s180 + $0x7d0] sm:$0xff]
        %v466 = vld [vmem:[%s180 + $0x7d8] sm:$0xff]
        %v467 = vld [vmem:[%s180 + $0x7e0] sm:$0xff]
        %v468 = vld [vmem:[%s180 + $0x7e8] sm:$0xff]
        %v469 = vld [vmem:[%s180 + $0x7f0] sm:$0xff]
        %v470 = vld [vmem:[%s180 + $0x7f8] sm:$0xff]
        %v471 = vld [vmem:[%s180 + $0x800] sm:$0xff]
        %v472 = vld [vmem:[%s180 + $0x808] sm:$0xff]
        %v473 = vld [vmem:[%s180 + $0x810] sm:$0xff]
        %v474 = vld [vmem:[%s180 + $0x818] sm:$0xff]
        %v475 = vld [vmem:[%s180 + $0x820] sm:$0xff]
        %v476 = vld [vmem:[%s180 + $0x828] sm:$0xff]
        %v477 = vld [vmem:[%s180 + $0x830] sm:$0xff]
        %v478 = vld [vmem:[%s180 + $0x838] sm:$0xff]
        %v479 = vld [vmem:[%s180 + $0x840] sm:$0xff]
        %v480 = vld [vmem:[%s180 + $0x848] sm:$0xff]
        %v481 = vld [vmem:[%s180 + $0x850] sm:$0xff]
        %v482 = vld [vmem:[%s180 + $0x858] sm:$0xff]
        %v483 = vld [vmem:[%s180 + $0x860] sm:$0xff]
        %v484 = vld [vmem:[%s180 + $0x868] sm:$0xff]
        %v485 = vld [vmem:[%s180 + $0x870] sm:$0xff]
        %v486 = vld [vmem:[%s180 + $0x878] sm:$0xff]
        %v487 = vld [vmem:[%s180 + $0x880] sm:$0xff]
        %v488 = vld [vmem:[%s180 + $0x888] sm:$0xff]
        %v489 = vld [vmem:[%s180 + $0x890] sm:$0xff]
        %v490 = vld [vmem:[%s180 + $0x898] sm:$0xff]
        %v491 = vld [vmem:[%s180 + $0x8a0] sm:$0xff]
        %v492 = vld [vmem:[%s180 + $0x8a8] sm:$0xff]
        %v493 = vld [vmem:[%s180 + $0x8b0] sm:$0xff]
        %v494 = vld [vmem:[%s180 + $0x8b8] sm:$0xff]
        %v495 = vld [vmem:[%s180 + $0x8c0] sm:$0xff]
        %v496 = vld [vmem:[%s180 + $0x8c8] sm:$0xff]
        %v497 = vld [vmem:[%s180 + $0x8d0] sm:$0xff]
        %v498 = vld [vmem:[%s180 + $0x8d8] sm:$0xff]
        %v499 = vld [vmem:[%s180 + $0x8e0] sm:$0xff]
        %v500 = vld [vmem:[%s180 + $0x8e8] sm:$0xff]
        %v501 = vld [vmem:[%s180 + $0x8f0] sm:$0xff]
        %v502 = vld [vmem:[%s180 + $0x8f8] sm:$0xff]
        %v503 = vld [vmem:[%s180 + $0x900] sm:$0xff]
        %v504 = vld [vmem:[%s180 + $0x908] sm:$0xff]
        %v505 = vld [vmem:[%s180 + $0x910] sm:$0xff]
        %v506 = vld [vmem:[%s180 + $0x918] sm:$0xff]
        %v507 = vld [vmem:[%s180 + $0x920] sm:$0xff]
        %v508 = vld [vmem:[%s180 + $0x928] sm:$0xff]
        %v509 = vld [vmem:[%s180 + $0x930] sm:$0xff]
        %v510 = vld [vmem:[%s180 + $0x938] sm:$0xff]
        %v511 = vld [vmem:[%s180 + $0x940] sm:$0xff]
        %v512 = vld [vmem:[%s180 + $0x948] sm:$0xff]
        %v513 = vld [vmem:[%s180 + $0x950] sm:$0xff]
        %v514 = vld [vmem:[%s180 + $0x958] sm:$0xff]
        %v515 = vld [vmem:[%s180 + $0x960] sm:$0xff]
        %v516 = vld [vmem:[%s180 + $0x968] sm:$0xff]
        %v517 = vld [vmem:[%s180 + $0x970] sm:$0xff]
        %v518 = vld [vmem:[%s180 + $0x978] sm:$0xff]
        %v519 = vld [vmem:[%s180 + $0x980] sm:$0xff]
        %v520 = vld [vmem:[%s180 + $0x988] sm:$0xff]
        %v521 = vld [vmem:[%s180 + $0x990] sm:$0xff]
        %v522 = vld [vmem:[%s180 + $0x998] sm:$0xff]
        %v523 = vld [vmem:[%s180 + $0x9a0] sm:$0xff]
        %v524 = vld [vmem:[%s180 + $0x9a8] sm:$0xff]
        %v525 = vld [vmem:[%s180 + $0x9b0] sm:$0xff]
        %v526 = vld [vmem:[%s180 + $0x9b8] sm:$0xff]
        %v527 = vld [vmem:[%s180 + $0x9c0] sm:$0xff]
        %v528 = vld [vmem:[%s180 + $0x9c8] sm:$0xff]
        %v529 = vld [vmem:[%s180 + $0x9d0] sm:$0xff]
        %v530 = vld [vmem:[%s180 + $0x9d8] sm:$0xff]
        %v531 = vld [vmem:[%s180 + $0x9e0] sm:$0xff]
        %v532 = vld [vmem:[%s180 + $0x9e8] sm:$0xff]
        %v533 = vld [vmem:[%s180 + $0x9f0] sm:$0xff]
        %v534 = vld [vmem:[%s180 + $0x9f8] sm:$0xff]
        %v535 = vld [vmem:[%s180 + $0xa00] sm:$0xff]
        %v536 = vld [vmem:[%s180 + $0xa08] sm:$0xff]
        %v537 = vld [vmem:[%s180 + $0xa10] sm:$0xff]
        %v538 = vld [vmem:[%s180 + $0xa18] sm:$0xff]
        %v539 = vld [vmem:[%s180 + $0xa20] sm:$0xff]
        %v540 = vld [vmem:[%s180 + $0xa28] sm:$0xff]
        %v541 = vld [vmem:[%s180 + $0xa30] sm:$0xff]
        %v542 = vld [vmem:[%s180 + $0xa38] sm:$0xff]
        %v543 = vld [vmem:[%s180 + $0xa40] sm:$0xff]
        %v544 = vld [vmem:[%s180 + $0xa48] sm:$0xff]
        %v545 = vld [vmem:[%s180 + $0xa50] sm:$0xff]
        %v546 = vld [vmem:[%s180 + $0xa58] sm:$0xff]
        %v547 = vld [vmem:[%s180 + $0xa60] sm:$0xff]
        %v548 = vld [vmem:[%s180 + $0xa68] sm:$0xff]
        %v549 = vld [vmem:[%s180 + $0xa70] sm:$0xff]
        %v550 = vld [vmem:[%s180 + $0xa78] sm:$0xff]
        %v551 = vld [vmem:[%s180 + $0xa80] sm:$0xff]
        %v552 = vld [vmem:[%s180 + $0xa88] sm:$0xff]
        %v553 = vld [vmem:[%s180 + $0xa90] sm:$0xff]
        %v554 = vld [vmem:[%s180 + $0xa98] sm:$0xff]
        %v555 = vld [vmem:[%s180 + $0xaa0] sm:$0xff]
        %v556 = vld [vmem:[%s180 + $0xaa8] sm:$0xff]
        %v557 = vld [vmem:[%s180 + $0xab0] sm:$0xff]
        %v558 = vld [vmem:[%s180 + $0xab8] sm:$0xff]
        %v559 = vld [vmem:[%s180 + $0xac0] sm:$0xff]
        %v560 = vld [vmem:[%s180 + $0xac8] sm:$0xff]
        %v561 = vld [vmem:[%s180 + $0xad0] sm:$0xff]
        %v562 = vld [vmem:[%s180 + $0xad8] sm:$0xff]
        %v563 = vld [vmem:[%s180 + $0xae0] sm:$0xff]
        %v564 = vld [vmem:[%s180 + $0xae8] sm:$0xff]
        %v565 = vld [vmem:[%s180 + $0xaf0] sm:$0xff]
        %v566 = vld [vmem:[%s180 + $0xaf8] sm:$0xff]
        %v567 = vld [vmem:[%s180 + $0xb00] sm:$0xff]
        %v568 = vld [vmem:[%s180 + $0xb08] sm:$0xff]
        %v569 = vld [vmem:[%s180 + $0xb10] sm:$0xff]
        %v570 = vld [vmem:[%s180 + $0xb18] sm:$0xff]
        %v571 = vld [vmem:[%s180 + $0xb20] sm:$0xff]
        %v572 = vld [vmem:[%s180 + $0xb28] sm:$0xff]
        %v573 = vld [vmem:[%s180 + $0xb30] sm:$0xff]
        %v574 = vld [vmem:[%s180 + $0xb38] sm:$0xff]
        %v575 = vld [vmem:[%s180 + $0xb40] sm:$0xff]
        %v576 = vld [vmem:[%s180 + $0xb48] sm:$0xff]
        %v577 = vld [vmem:[%s180 + $0xb50] sm:$0xff]
        %v578 = vld [vmem:[%s180 + $0xb58] sm:$0xff]
        %v579 = vld [vmem:[%s180 + $0xb60] sm:$0xff]
        %v580 = vld [vmem:[%s180 + $0xb68] sm:$0xff]
        %v581 = vld [vmem:[%s180 + $0xb70] sm:$0xff]
        %v582 = vld [vmem:[%s180 + $0xb78] sm:$0xff]
        %v583 = vld [vmem:[%s180 + $0xb80] sm:$0xff]
        %v584 = vld [vmem:[%s180 + $0xb88] sm:$0xff]
        %v585 = vld [vmem:[%s180 + $0xb90] sm:$0xff]
        %v586 = vld [vmem:[%s180 + $0xb98] sm:$0xff]
        %v587 = vld [vmem:[%s180 + $0xba0] sm:$0xff]
        %v588 = vld [vmem:[%s180 + $0xba8] sm:$0xff]
        %v589 = vld [vmem:[%s180 + $0xbb0] sm:$0xff]
        %v590 = vld [vmem:[%s180 + $0xbb8] sm:$0xff]
        %v591 = vld [vmem:[%s180 + $0xbc0] sm:$0xff]
        %v592 = vld [vmem:[%s180 + $0xbc8] sm:$0xff]
        %v593 = vld [vmem:[%s180 + $0xbd0] sm:$0xff]
        %v594 = vld [vmem:[%s180 + $0xbd8] sm:$0xff]
        %v595 = vld [vmem:[%s180 + $0xbe0] sm:$0xff]
        %v596 = vld [vmem:[%s180 + $0xbe8] sm:$0xff]
        %v597 = vld [vmem:[%s180 + $0xbf0] sm:$0xff]
        %v598 = vld [vmem:[%s180 + $0xbf8] sm:$0xff]
        %v599 = vld [vmem:[%s180 + $0xc00] sm:$0xff]
        %v600 = vld [vmem:[%s180 + $0xc08] sm:$0xff]
        %v601 = vld [vmem:[%s180 + $0xc10] sm:$0xff]
        %v602 = vld [vmem:[%s180 + $0xc18] sm:$0xff]
        %v603 = vld [vmem:[%s180 + $0xc20] sm:$0xff]
        %v604 = vld [vmem:[%s180 + $0xc28] sm:$0xff]
        %v605 = vld [vmem:[%s180 + $0xc30] sm:$0xff]
        %v606 = vld [vmem:[%s180 + $0xc38] sm:$0xff]
        %v607 = vld [vmem:[%s180 + $0xc40] sm:$0xff]
        %v608 = vld [vmem:[%s180 + $0xc48] sm:$0xff]
        %v609 = vld [vmem:[%s180 + $0xc50] sm:$0xff]
        %v610 = vld [vmem:[%s180 + $0xc58] sm:$0xff]
        %v611 = vld [vmem:[%s180 + $0xc60] sm:$0xff]
        %v612 = vld [vmem:[%s180 + $0xc68] sm:$0xff]
        %v613 = vld [vmem:[%s180 + $0xc70] sm:$0xff]
        %v614 = vld [vmem:[%s180 + $0xc78] sm:$0xff]
        %v615 = vld [vmem:[%s180 + $0xc80] sm:$0xff]
        %v616 = vld [vmem:[%s180 + $0xc88] sm:$0xff]
        %v617 = vld [vmem:[%s180 + $0xc90] sm:$0xff]
        %v618 = vld [vmem:[%s180 + $0xc98] sm:$0xff]
        %v619 = vld [vmem:[%s180 + $0xca0] sm:$0xff]
        %v620 = vld [vmem:[%s180 + $0xca8] sm:$0xff]
        %v621 = vld [vmem:[%s180 + $0xcb0] sm:$0xff]
        %v622 = vld [vmem:[%s180 + $0xcb8] sm:$0xff]
        %v623 = vld [vmem:[%s180 + $0xcc0] sm:$0xff]
        %v624 = vld [vmem:[%s180 + $0xcc8] sm:$0xff]
        %v625 = vld [vmem:[%s180 + $0xcd0] sm:$0xff]
        %v626 = vld [vmem:[%s180 + $0xcd8] sm:$0xff]
        %v627 = vld [vmem:[%s180 + $0xce0] sm:$0xff]
        %v628 = vld [vmem:[%s180 + $0xce8] sm:$0xff]
        %v629 = vld [vmem:[%s180 + $0xcf0] sm:$0xff]
        %v630 = vld [vmem:[%s180 + $0xcf8] sm:$0xff]
        %v631 = vld [vmem:[%s180 + $0xd00] sm:$0xff]
        %v632 = vld [vmem:[%s180 + $0xd08] sm:$0xff]
        %v633 = vld [vmem:[%s180 + $0xd10] sm:$0xff]
        %v634 = vld [vmem:[%s180 + $0xd18] sm:$0xff]
        %v635 = vld [vmem:[%s180 + $0xd20] sm:$0xff]
        %v636 = vld [vmem:[%s180 + $0xd28] sm:$0xff]
        %v637 = vld [vmem:[%s180 + $0xd30] sm:$0xff]
        %v638 = vld [vmem:[%s180 + $0xd38] sm:$0xff]
        %v639 = vld [vmem:[%s180 + $0xd40] sm:$0xff]
        %v640 = vld [vmem:[%s180 + $0xd48] sm:$0xff]
        %v641 = vld [vmem:[%s180 + $0xd50] sm:$0xff]
        %v642 = vld [vmem:[%s180 + $0xd58] sm:$0xff]
        %v643 = vld [vmem:[%s180 + $0xd60] sm:$0xff]
        %v644 = vld [vmem:[%s180 + $0xd68] sm:$0xff]
        %v645 = vld [vmem:[%s180 + $0xd70] sm:$0xff]
        %v646 = vld [vmem:[%s180 + $0xd78] sm:$0xff]
        %v647 = vld [vmem:[%s180 + $0xd80] sm:$0xff]
        %v648 = vld [vmem:[%s180 + $0xd88] sm:$0xff]
        %v649 = vld [vmem:[%s180 + $0xd90] sm:$0xff]
        %v650 = vld [vmem:[%s180 + $0xd98] sm:$0xff]
        %v651 = vld [vmem:[%s180 + $0xda0] sm:$0xff]
        %v652 = vld [vmem:[%s180 + $0xda8] sm:$0xff]
        %v653 = vld [vmem:[%s180 + $0xdb0] sm:$0xff]
        %v654 = vld [vmem:[%s180 + $0xdb8] sm:$0xff]
        %v655 = vld [vmem:[%s180 + $0xdc0] sm:$0xff]
        %v656 = vld [vmem:[%s180 + $0xdc8] sm:$0xff]
        %v657 = vld [vmem:[%s180 + $0xdd0] sm:$0xff]
        %v658 = vld [vmem:[%s180 + $0xdd8] sm:$0xff]
        %v659 = vld [vmem:[%s180 + $0xde0] sm:$0xff]
        %v660 = vld [vmem:[%s180 + $0xde8] sm:$0xff]
        %v661 = vld [vmem:[%s180 + $0xdf0] sm:$0xff]
        %v662 = vld [vmem:[%s180 + $0xdf8] sm:$0xff]
        %v663 = vld [vmem:[%s180 + $0xe00] sm:$0xff]
        %v664 = vld [vmem:[%s180 + $0xe08] sm:$0xff]
        %v665 = vld [vmem:[%s180 + $0xe10] sm:$0xff]
        %v666 = vld [vmem:[%s180 + $0xe18] sm:$0xff]
        %v667 = vld [vmem:[%s180 + $0xe20] sm:$0xff]
        %v668 = vld [vmem:[%s180 + $0xe28] sm:$0xff]
        %v669 = vld [vmem:[%s180 + $0xe30] sm:$0xff]
        %v670 = vld [vmem:[%s180 + $0xe38] sm:$0xff]
        %v671 = vld [vmem:[%s180 + $0xe40] sm:$0xff]
        %v672 = vld [vmem:[%s180 + $0xe48] sm:$0xff]
        %v673 = vld [vmem:[%s180 + $0xe50] sm:$0xff]
        %v674 = vld [vmem:[%s180 + $0xe58] sm:$0xff]
        %v675 = vld [vmem:[%s180 + $0xe60] sm:$0xff]
        %v676 = vld [vmem:[%s180 + $0xe68] sm:$0xff]
        %v677 = vld [vmem:[%s180 + $0xe70] sm:$0xff]
        %v678 = vld [vmem:[%s180 + $0xe78] sm:$0xff]
        %v679 = vld [vmem:[%s180 + $0xe80] sm:$0xff]
        %v680 = vld [vmem:[%s180 + $0xe88] sm:$0xff]
        %v681 = vld [vmem:[%s180 + $0xe90] sm:$0xff]
        %v682 = vld [vmem:[%s180 + $0xe98] sm:$0xff]
        %v683 = vld [vmem:[%s180 + $0xea0] sm:$0xff]
        %v684 = vld [vmem:[%s180 + $0xea8] sm:$0xff]
        %v685 = vld [vmem:[%s180 + $0xeb0] sm:$0xff]
        %v686 = vld [vmem:[%s180 + $0xeb8] sm:$0xff]
        %v687 = vld [vmem:[%s180 + $0xec0] sm:$0xff]
        %v688 = vld [vmem:[%s180 + $0xec8] sm:$0xff]
        %v689 = vld [vmem:[%s180 + $0xed0] sm:$0xff]
        %v690 = vld [vmem:[%s180 + $0xed8] sm:$0xff]
        %v691 = vld [vmem:[%s180 + $0xee0] sm:$0xff]
        %v692 = vld [vmem:[%s180 + $0xee8] sm:$0xff]
        %v693 = vld [vmem:[%s180 + $0xef0] sm:$0xff]
        %v694 = vld [vmem:[%s180 + $0xef8] sm:$0xff]
        %v695 = vld [vmem:[%s180 + $0xf00] sm:$0xff]
        %v696 = vld [vmem:[%s180 + $0xf08] sm:$0xff]
        %v697 = vld [vmem:[%s180 + $0xf10] sm:$0xff]
        %v698 = vld [vmem:[%s180 + $0xf18] sm:$0xff]
        %v699 = vld [vmem:[%s180 + $0xf20] sm:$0xff]
        %v700 = vld [vmem:[%s180 + $0xf28] sm:$0xff]
        %v701 = vld [vmem:[%s180 + $0xf30] sm:$0xff]
        %v702 = vld [vmem:[%s180 + $0xf38] sm:$0xff]
        %v703 = vld [vmem:[%s180 + $0xf40] sm:$0xff]
        %v704 = vld [vmem:[%s180 + $0xf48] sm:$0xff]
        %v705 = vld [vmem:[%s180 + $0xf50] sm:$0xff]
        %v706 = vld [vmem:[%s180 + $0xf58] sm:$0xff]
        %v707 = vld [vmem:[%s180 + $0xf60] sm:$0xff]
        %v708 = vld [vmem:[%s180 + $0xf68] sm:$0xff]
        %v709 = vld [vmem:[%s180 + $0xf70] sm:$0xff]
        %v710 = vld [vmem:[%s180 + $0xf78] sm:$0xff]
        %v711 = vld [vmem:[%s180 + $0xf80] sm:$0xff]
        %v712 = vld [vmem:[%s180 + $0xf88] sm:$0xff]
        %v713 = vld [vmem:[%s180 + $0xf90] sm:$0xff]
        %v714 = vld [vmem:[%s180 + $0xf98] sm:$0xff]
        %v715 = vld [vmem:[%s180 + $0xfa0] sm:$0xff]
        %v716 = vld [vmem:[%s180 + $0xfa8] sm:$0xff]
        %v717 = vld [vmem:[%s180 + $0xfb0] sm:$0xff]
        %v718 = vld [vmem:[%s180 + $0xfb8] sm:$0xff]
        %v719 = vld [vmem:[%s180 + $0xfc0] sm:$0xff]
        %v720 = vld [vmem:[%s180 + $0xfc8] sm:$0xff]
        %v721 = vld [vmem:[%s180 + $0xfd0] sm:$0xff]
        %v722 = vld [vmem:[%s180 + $0xfd8] sm:$0xff]
        %v723 = vld [vmem:[%s180 + $0xfe0] sm:$0xff]
        %v724 = vld [vmem:[%s180 + $0xfe8] sm:$0xff]
        %v725 = vld [vmem:[%s180 + $0xff0] sm:$0xff]
        %v726 = vld [vmem:[%s180 + $0xff8] sm:$0xff]
        %v727 = vld [vmem:[%s180 + $0x1000] sm:$0xff]
        %v728 = vld [vmem:[%s180 + $0x1008] sm:$0xff]
        %v729 = vld [vmem:[%s180 + $0x1010] sm:$0xff]
        %v730 = vld [vmem:[%s180 + $0x1018] sm:$0xff]
        %v731 = vld [vmem:[%s180 + $0x1020] sm:$0xff]
        %v732 = vld [vmem:[%s180 + $0x1028] sm:$0xff]
        %v733 = vld [vmem:[%s180 + $0x1030] sm:$0xff]
        %v734 = vld [vmem:[%s180 + $0x1038] sm:$0xff]
        %v735 = vld [vmem:[%s180 + $0x1040] sm:$0xff]
        %v736 = vld [vmem:[%s180 + $0x1048] sm:$0xff]
        %v737 = vld [vmem:[%s180 + $0x1050] sm:$0xff]
        %v738 = vld [vmem:[%s180 + $0x1058] sm:$0xff]
        %v739 = vld [vmem:[%s180 + $0x1060] sm:$0xff]
        %v740 = vld [vmem:[%s180 + $0x1068] sm:$0xff]
        %v741 = vld [vmem:[%s180 + $0x1070] sm:$0xff]
        %v742 = vld [vmem:[%s180 + $0x1078] sm:$0xff]
        %v743 = vld [vmem:[%s180 + $0x1080] sm:$0xff]
        %v744 = vld [vmem:[%s180 + $0x1088] sm:$0xff]
        %v745 = vld [vmem:[%s180 + $0x1090] sm:$0xff]
        %v746 = vld [vmem:[%s180 + $0x1098] sm:$0xff]
        %v747 = vld [vmem:[%s180 + $0x10a0] sm:$0xff]
        %v748 = vld [vmem:[%s180 + $0x10a8] sm:$0xff]
        %v749 = vld [vmem:[%s180 + $0x10b0] sm:$0xff]
        %v750 = vld [vmem:[%s180 + $0x10b8] sm:$0xff]
        %v751 = vld [vmem:[%s180 + $0x10c0] sm:$0xff]
        %v752 = vld [vmem:[%s180 + $0x10c8] sm:$0xff]
        %v753 = vld [vmem:[%s180 + $0x10d0] sm:$0xff]
        %v754 = vld [vmem:[%s180 + $0x10d8] sm:$0xff]
        %v755 = vld [vmem:[%s180 + $0x10e0] sm:$0xff]
        %v756 = vld [vmem:[%s180 + $0x10e8] sm:$0xff]
        %v757 = vld [vmem:[%s180 + $0x10f0] sm:$0xff]
        %v758 = vld [vmem:[%s180 + $0x10f8] sm:$0xff]
        %v759 = vld [vmem:[%s180 + $0x1100] sm:$0xff]
        %v760 = vld [vmem:[%s180 + $0x1108] sm:$0xff]
        %v761 = vld [vmem:[%s180 + $0x1110] sm:$0xff]
        %v762 = vld [vmem:[%s180 + $0x1118] sm:$0xff]
        %v763 = vld [vmem:[%s180 + $0x1120] sm:$0xff]
        %v764 = vld [vmem:[%s180 + $0x1128] sm:$0xff]
        %v765 = vld [vmem:[%s180 + $0x1130] sm:$0xff]
        %v766 = vld [vmem:[%s180 + $0x1138] sm:$0xff]
        %v767 = vld [vmem:[%s180 + $0x1140] sm:$0xff]
        %v768 = vld [vmem:[%s180 + $0x1148] sm:$0xff]
        %v769 = vld [vmem:[%s180 + $0x1150] sm:$0xff]
        %v770 = vld [vmem:[%s180 + $0x1158] sm:$0xff]
        %v771 = vld [vmem:[%s180 + $0x1160] sm:$0xff]
        %v772 = vld [vmem:[%s180 + $0x1168] sm:$0xff]
        %v773 = vld [vmem:[%s180 + $0x1170] sm:$0xff]
        %v774 = vld [vmem:[%s180 + $0x1178] sm:$0xff]
        %v775 = vld [vmem:[%s180 + $0x1180] sm:$0xff]
        %v776 = vld [vmem:[%s180 + $0x1188] sm:$0xff]
        %v777 = vld [vmem:[%s180 + $0x1190] sm:$0xff]
        %v778 = vld [vmem:[%s180 + $0x1198] sm:$0xff]
        %v779 = vld [vmem:[%s180 + $0x11a0] sm:$0xff]
        %v780 = vld [vmem:[%s180 + $0x11a8] sm:$0xff]
        %v781 = vld [vmem:[%s180 + $0x11b0] sm:$0xff]
        %v782 = vld [vmem:[%s180 + $0x11b8] sm:$0xff]
        %v783 = vld [vmem:[%s180 + $0x11c0] sm:$0xff]
        %v784 = vld [vmem:[%s180 + $0x11c8] sm:$0xff]
        %v785 = vld [vmem:[%s180 + $0x11d0] sm:$0xff]
        %v786 = vld [vmem:[%s180 + $0x11d8] sm:$0xff]
        %v787 = vld [vmem:[%s180 + $0x11e0] sm:$0xff]
        %v788 = vld [vmem:[%s180 + $0x11e8] sm:$0xff]
        %v789 = vld [vmem:[%s180 + $0x11f0] sm:$0xff]
        %v790 = vld [vmem:[%s180 + $0x11f8] sm:$0xff]
        %v791 = vld [vmem:[%s180 + $0x1200] sm:$0xff]
        %v792 = vld [vmem:[%s180 + $0x1208] sm:$0xff]
        %v793 = vld [vmem:[%s180 + $0x1210] sm:$0xff]
        %v794 = vld [vmem:[%s180 + $0x1218] sm:$0xff]
        %v795 = vld [vmem:[%s180 + $0x1220] sm:$0xff]
        %v796 = vld [vmem:[%s180 + $0x1228] sm:$0xff]
        %v797 = vld [vmem:[%s180 + $0x1230] sm:$0xff]
        %v798 = vld [vmem:[%s180 + $0x1238] sm:$0xff]
        %v799 = vld [vmem:[%s180 + $0x1240] sm:$0xff]
        %v800 = vld [vmem:[%s180 + $0x1248] sm:$0xff]
        %v801 = vld [vmem:[%s180 + $0x1250] sm:$0xff]
        %v802 = vld [vmem:[%s180 + $0x1258] sm:$0xff]
        %v803 = vld [vmem:[%s180 + $0x1260] sm:$0xff]
        %v804 = vld [vmem:[%s180 + $0x1268] sm:$0xff]
        %v805 = vld [vmem:[%s180 + $0x1270] sm:$0xff]
        %v806 = vld [vmem:[%s180 + $0x1278] sm:$0xff]
        %v807 = vld [vmem:[%s180 + $0x1280] sm:$0xff]
        %v808 = vld [vmem:[%s180 + $0x1288] sm:$0xff]
        %v809 = vld [vmem:[%s180 + $0x1290] sm:$0xff]
        %v810 = vld [vmem:[%s180 + $0x1298] sm:$0xff]
        %v811 = vld [vmem:[%s180 + $0x12a0] sm:$0xff]
        %v812 = vld [vmem:[%s180 + $0x12a8] sm:$0xff]
        %v813 = vld [vmem:[%s180 + $0x12b0] sm:$0xff]
        %v814 = vld [vmem:[%s180 + $0x12b8] sm:$0xff]
        %v815 = vld [vmem:[%s180 + $0x12c0] sm:$0xff]
        %v816 = vld [vmem:[%s180 + $0x12c8] sm:$0xff]
        %v817 = vld [vmem:[%s180 + $0x12d0] sm:$0xff]
        %v818 = vld [vmem:[%s180 + $0x12d8] sm:$0xff]
        %v819 = vld [vmem:[%s180 + $0x12e0] sm:$0xff]
        %v820 = vld [vmem:[%s180 + $0x12e8] sm:$0xff]
        %v821 = vld [vmem:[%s180 + $0x12f0] sm:$0xff]
        %v822 = vld [vmem:[%s180 + $0x12f8] sm:$0xff]
        %v823 = vld [vmem:[%s180 + $0x1300] sm:$0xff]
        %v824 = vld [vmem:[%s180 + $0x1308] sm:$0xff]
        %v825 = vld [vmem:[%s180 + $0x1310] sm:$0xff]
        %v826 = vld [vmem:[%s180 + $0x1318] sm:$0xff]
        %v827 = vld [vmem:[%s180 + $0x1320] sm:$0xff]
        %v828 = vld [vmem:[%s180 + $0x1328] sm:$0xff]
        %v829 = vld [vmem:[%s180 + $0x1330] sm:$0xff]
        %v830 = vld [vmem:[%s180 + $0x1338] sm:$0xff]
        %v831 = vld [vmem:[%s180 + $0x1340] sm:$0xff]
        %v832 = vld [vmem:[%s180 + $0x1348] sm:$0xff]
        %v833 = vld [vmem:[%s180 + $0x1350] sm:$0xff]
        %v834 = vld [vmem:[%s180 + $0x1358] sm:$0xff]
        %v835 = vld [vmem:[%s180 + $0x1360] sm:$0xff]
        %v836 = vld [vmem:[%s180 + $0x1368] sm:$0xff]
        %v837 = vld [vmem:[%s180 + $0x1370] sm:$0xff]
        %v838 = vld [vmem:[%s180 + $0x1378] sm:$0xff]
        %v839 = vld [vmem:[%s180 + $0x1380] sm:$0xff]
        %v840 = vld [vmem:[%s180 + $0x1388] sm:$0xff]
        %v841 = vld [vmem:[%s180 + $0x1390] sm:$0xff]
        %v842 = vld [vmem:[%s180 + $0x1398] sm:$0xff]
        %v843 = vld [vmem:[%s180 + $0x13a0] sm:$0xff]
        %v844 = vld [vmem:[%s180 + $0x13a8] sm:$0xff]
        %v845 = vld [vmem:[%s180 + $0x13b0] sm:$0xff]
        %v846 = vld [vmem:[%s180 + $0x13b8] sm:$0xff]
        %v847 = vld [vmem:[%s180 + $0x13c0] sm:$0xff]
        %v848 = vld [vmem:[%s180 + $0x13c8] sm:$0xff]
        %v849 = vld [vmem:[%s180 + $0x13d0] sm:$0xff]
        %v850 = vld [vmem:[%s180 + $0x13d8] sm:$0xff]
        %v851 = vld [vmem:[%s180 + $0x13e0] sm:$0xff]
        %v852 = vld [vmem:[%s180 + $0x13e8] sm:$0xff]
        %v853 = vld [vmem:[%s180 + $0x13f0] sm:$0xff]
        %v854 = vld [vmem:[%s180 + $0x13f8] sm:$0xff]
        %v855 = vld [vmem:[%s180 + $0x1400] sm:$0xff]
        %v856 = vld [vmem:[%s180 + $0x1408] sm:$0xff]
        %v857 = vld [vmem:[%s180 + $0x1410] sm:$0xff]
        %v858 = vld [vmem:[%s180 + $0x1418] sm:$0xff]
        %v859 = vld [vmem:[%s180 + $0x1420] sm:$0xff]
        %v860 = vld [vmem:[%s180 + $0x1428] sm:$0xff]
        %v861 = vld [vmem:[%s180 + $0x1430] sm:$0xff]
        %v862 = vld [vmem:[%s180 + $0x1438] sm:$0xff]
        %v863 = vld [vmem:[%s180 + $0x1440] sm:$0xff]
        %v864 = vld [vmem:[%s180 + $0x1448] sm:$0xff]
        %v865 = vld [vmem:[%s180 + $0x1450] sm:$0xff]
        %v866 = vld [vmem:[%s180 + $0x1458] sm:$0xff]
        %v867 = vld [vmem:[%s180 + $0x1460] sm:$0xff]
        %v868 = vld [vmem:[%s180 + $0x1468] sm:$0xff]
        %v869 = vld [vmem:[%s180 + $0x1470] sm:$0xff]
        %v870 = vld [vmem:[%s180 + $0x1478] sm:$0xff]
        %v871 = vld [vmem:[%s180 + $0x1480] sm:$0xff]
        %v872 = vld [vmem:[%s180 + $0x1488] sm:$0xff]
        %v873 = vld [vmem:[%s180 + $0x1490] sm:$0xff]
        %v874 = vld [vmem:[%s180 + $0x1498] sm:$0xff]
        %v875 = vld [vmem:[%s180 + $0x14a0] sm:$0xff]
        %v876 = vld [vmem:[%s180 + $0x14a8] sm:$0xff]
        %v877 = vld [vmem:[%s180 + $0x14b0] sm:$0xff]
        %v878 = vld [vmem:[%s180 + $0x14b8] sm:$0xff]
        %v879 = vld [vmem:[%s180 + $0x14c0] sm:$0xff]
        %v880 = vld [vmem:[%s180 + $0x14c8] sm:$0xff]
        %v881 = vld [vmem:[%s180 + $0x14d0] sm:$0xff]
        %v882 = vld [vmem:[%s180 + $0x14d8] sm:$0xff]
        %v883 = vld [vmem:[%s180 + $0x14e0] sm:$0xff]
        %v884 = vld [vmem:[%s180 + $0x14e8] sm:$0xff]
        %v885 = vld [vmem:[%s180 + $0x14f0] sm:$0xff]
        %v886 = vld [vmem:[%s180 + $0x14f8] sm:$0xff]
        %v887 = vld [vmem:[%s180 + $0x1500] sm:$0xff]
        %v888 = vld [vmem:[%s180 + $0x1508] sm:$0xff]
        %v889 = vld [vmem:[%s180 + $0x1510] sm:$0xff]
        %v890 = vld [vmem:[%s180 + $0x1518] sm:$0xff]
        %v891 = vld [vmem:[%s180 + $0x1520] sm:$0xff]
        %v892 = vld [vmem:[%s180 + $0x1528] sm:$0xff]
        %v893 = vld [vmem:[%s180 + $0x1530] sm:$0xff]
        %v894 = vld [vmem:[%s180 + $0x1538] sm:$0xff]
        %v895 = vld [vmem:[%s180 + $0x1540] sm:$0xff]
        %v896 = vld [vmem:[%s180 + $0x1548] sm:$0xff]
        %v897 = vld [vmem:[%s180 + $0x1550] sm:$0xff]
        %v898 = vld [vmem:[%s180 + $0x1558] sm:$0xff]
        %v899 = vld [vmem:[%s180 + $0x1560] sm:$0xff]
        %v900 = vld [vmem:[%s180 + $0x1568] sm:$0xff]
        %v901 = vld [vmem:[%s180 + $0x1570] sm:$0xff]
        %v902 = vld [vmem:[%s180 + $0x1578] sm:$0xff]
        %v903 = vld [vmem:[%s180 + $0x1580] sm:$0xff]
        %v904 = vld [vmem:[%s180 + $0x1588] sm:$0xff]
        %v905 = vld [vmem:[%s180 + $0x1590] sm:$0xff]
        %v906 = vld [vmem:[%s180 + $0x1598] sm:$0xff]
        %v907 = vld [vmem:[%s180 + $0x15a0] sm:$0xff]
        %v908 = vld [vmem:[%s180 + $0x15a8] sm:$0xff]
        %v909 = vld [vmem:[%s180 + $0x15b0] sm:$0xff]
        %v910 = vld [vmem:[%s180 + $0x15b8] sm:$0xff]
        %v911 = vld [vmem:[%s180 + $0x15c0] sm:$0xff]
        %v912 = vld [vmem:[%s180 + $0x15c8] sm:$0xff]
        %v913 = vld [vmem:[%s180 + $0x15d0] sm:$0xff]
        %v914 = vld [vmem:[%s180 + $0x15d8] sm:$0xff]
        %v915 = vld [vmem:[%s180 + $0x15e0] sm:$0xff]
        %v916 = vld [vmem:[%s180 + $0x15e8] sm:$0xff]
        %v917 = vld [vmem:[%s180 + $0x15f0] sm:$0xff]
        %v918 = vld [vmem:[%s180 + $0x15f8] sm:$0xff]
        %v919 = vld [vmem:[%s180 + $0x1600] sm:$0xff]
        %v920 = vld [vmem:[%s180 + $0x1608] sm:$0xff]
        %v921 = vld [vmem:[%s180 + $0x1610] sm:$0xff]
        %v922 = vld [vmem:[%s180 + $0x1618] sm:$0xff]
        %v923 = vld [vmem:[%s180 + $0x1620] sm:$0xff]
        %v924 = vld [vmem:[%s180 + $0x1628] sm:$0xff]
        %v925 = vld [vmem:[%s180 + $0x1630] sm:$0xff]
        %v926 = vld [vmem:[%s180 + $0x1638] sm:$0xff]
        %v927 = vld [vmem:[%s180 + $0x1640] sm:$0xff]
        %v928 = vld [vmem:[%s180 + $0x1648] sm:$0xff]
        %v929 = vld [vmem:[%s180 + $0x1650] sm:$0xff]
        %v930 = vld [vmem:[%s180 + $0x1658] sm:$0xff]
        %v931 = vld [vmem:[%s180 + $0x1660] sm:$0xff]
        %v932 = vld [vmem:[%s180 + $0x1668] sm:$0xff]
        %v933 = vld [vmem:[%s180 + $0x1670] sm:$0xff]
        %v934 = vld [vmem:[%s180 + $0x1678] sm:$0xff]
        %v935 = vld [vmem:[%s180 + $0x1680] sm:$0xff]
        %v936 = vld [vmem:[%s180 + $0x1688] sm:$0xff]
        %v937 = vld [vmem:[%s180 + $0x1690] sm:$0xff]
        %v938 = vld [vmem:[%s180 + $0x1698] sm:$0xff]
        %v939 = vld [vmem:[%s180 + $0x16a0] sm:$0xff]
        %v940 = vld [vmem:[%s180 + $0x16a8] sm:$0xff]
        %v941 = vld [vmem:[%s180 + $0x16b0] sm:$0xff]
        %v942 = vld [vmem:[%s180 + $0x16b8] sm:$0xff]
        %v943 = vld [vmem:[%s180 + $0x16c0] sm:$0xff]
        %v944 = vld [vmem:[%s180 + $0x16c8] sm:$0xff]
        %v945 = vld [vmem:[%s180 + $0x16d0] sm:$0xff]
        %v946 = vld [vmem:[%s180 + $0x16d8] sm:$0xff]
        %v947 = vld [vmem:[%s180 + $0x16e0] sm:$0xff]
        %v948 = vld [vmem:[%s180 + $0x16e8] sm:$0xff]
        %v949 = vld [vmem:[%s180 + $0x16f0] sm:$0xff]
        %v950 = vld [vmem:[%s180 + $0x16f8] sm:$0xff]
        %v951 = vld [vmem:[%s180 + $0x1700] sm:$0xff]
        %v952 = vld [vmem:[%s180 + $0x1708] sm:$0xff]
        %v953 = vld [vmem:[%s180 + $0x1710] sm:$0xff]
        %v954 = vld [vmem:[%s180 + $0x1718] sm:$0xff]
        %v955 = vld [vmem:[%s180 + $0x1720] sm:$0xff]
        %v956 = vld [vmem:[%s180 + $0x1728] sm:$0xff]
        %v957 = vld [vmem:[%s180 + $0x1730] sm:$0xff]
        %v958 = vld [vmem:[%s180 + $0x1738] sm:$0xff]
        %v959 = vld [vmem:[%s180 + $0x1740] sm:$0xff]
        %v960 = vld [vmem:[%s180 + $0x1748] sm:$0xff]
        %v961 = vld [vmem:[%s180 + $0x1750] sm:$0xff]
        %v962 = vld [vmem:[%s180 + $0x1758] sm:$0xff]
        %v963 = vld [vmem:[%s180 + $0x1760] sm:$0xff]
        %v964 = vld [vmem:[%s180 + $0x1768] sm:$0xff]
        %v965 = vld [vmem:[%s180 + $0x1770] sm:$0xff]
        %v966 = vld [vmem:[%s180 + $0x1778] sm:$0xff]
        %v967 = vld [vmem:[%s180 + $0x1780] sm:$0xff]
        %v968 = vld [vmem:[%s180 + $0x1788] sm:$0xff]
        %v969 = vld [vmem:[%s180 + $0x1790] sm:$0xff]
        %v970 = vld [vmem:[%s180 + $0x1798] sm:$0xff]
        %v971 = vld [vmem:[%s180 + $0x17a0] sm:$0xff]
        %v972 = vld [vmem:[%s180 + $0x17a8] sm:$0xff]
        %v973 = vld [vmem:[%s180 + $0x17b0] sm:$0xff]
        %v974 = vld [vmem:[%s180 + $0x17b8] sm:$0xff]
        %v975 = vld [vmem:[%s180 + $0x17c0] sm:$0xff]
        %v976 = vld [vmem:[%s180 + $0x17c8] sm:$0xff]
        %v977 = vld [vmem:[%s180 + $0x17d0] sm:$0xff]
        %v978 = vld [vmem:[%s180 + $0x17d8] sm:$0xff]
        %v979 = vld [vmem:[%s180 + $0x17e0] sm:$0xff]
        %v980 = vld [vmem:[%s180 + $0x17e8] sm:$0xff]
        %v981 = vld [vmem:[%s180 + $0x17f0] sm:$0xff]
        %v982 = vld [vmem:[%s180 + $0x17f8] sm:$0xff]
        %v983 = vld [vmem:[%s180 + $0x1800] sm:$0xff]
        %v984 = vld [vmem:[%s180 + $0x1808] sm:$0xff]
        %v985 = vld [vmem:[%s180 + $0x1810] sm:$0xff]
        %v986 = vld [vmem:[%s180 + $0x1818] sm:$0xff]
        %v987 = vld [vmem:[%s180 + $0x1820] sm:$0xff]
        %v988 = vld [vmem:[%s180 + $0x1828] sm:$0xff]
        %v989 = vld [vmem:[%s180 + $0x1830] sm:$0xff]
        %v990 = vld [vmem:[%s180 + $0x1838] sm:$0xff]
        %v991 = vld [vmem:[%s180 + $0x1840] sm:$0xff]
        %v992 = vld [vmem:[%s180 + $0x1848] sm:$0xff]
        %v993 = vld [vmem:[%s180 + $0x1850] sm:$0xff]
        %v994 = vld [vmem:[%s180 + $0x1858] sm:$0xff]
        %v995 = vld [vmem:[%s180 + $0x1860] sm:$0xff]
        %v996 = vld [vmem:[%s180 + $0x1868] sm:$0xff]
        %v997 = vld [vmem:[%s180 + $0x1870] sm:$0xff]
        %v998 = vld [vmem:[%s180 + $0x1878] sm:$0xff]
        %v999 = vld [vmem:[%s180 + $0x1880] sm:$0xff]
        %v1000 = vld [vmem:[%s180 + $0x1888] sm:$0xff]
        %v1001 = vld [vmem:[%s180 + $0x1890] sm:$0xff]
        %v1002 = vld [vmem:[%s180 + $0x1898] sm:$0xff]
        %v1003 = vld [vmem:[%s180 + $0x18a0] sm:$0xff]
        %v1004 = vld [vmem:[%s180 + $0x18a8] sm:$0xff]
        %v1005 = vld [vmem:[%s180 + $0x18b0] sm:$0xff]
        %v1006 = vld [vmem:[%s180 + $0x18b8] sm:$0xff]
        %v1007 = vld [vmem:[%s180 + $0x18c0] sm:$0xff]
        %v1008 = vld [vmem:[%s180 + $0x18c8] sm:$0xff]
        %v1009 = vld [vmem:[%s180 + $0x18d0] sm:$0xff]
        %v1010 = vld [vmem:[%s180 + $0x18d8] sm:$0xff]
        %v1011 = vld [vmem:[%s180 + $0x18e0] sm:$0xff]
        %v1012 = vld [vmem:[%s180 + $0x18e8] sm:$0xff]
        %v1013 = vld [vmem:[%s180 + $0x18f0] sm:$0xff]
        %v1014 = vld [vmem:[%s180 + $0x18f8] sm:$0xff]
        %v1015 = vld [vmem:[%s180 + $0x1900] sm:$0xff]
        %v1016 = vld [vmem:[%s180 + $0x1908] sm:$0xff]
        %v1017 = vld [vmem:[%s180 + $0x1910] sm:$0xff]
        %v1018 = vld [vmem:[%s180 + $0x1918] sm:$0xff]
        %v1019 = vld [vmem:[%s180 + $0x1920] sm:$0xff]
        %v1020 = vld [vmem:[%s180 + $0x1928] sm:$0xff]
        %v1021 = vld [vmem:[%s180 + $0x1930] sm:$0xff]
        %v1022 = vld [vmem:[%s180 + $0x1938] sm:$0xff]
        %v1023 = vld [vmem:[%s180 + $0x1940] sm:$0xff]
        %v1024 = vld [vmem:[%s180 + $0x1948] sm:$0xff]
        %v1025 = vld [vmem:[%s180 + $0x1950] sm:$0xff]
        %v1026 = vld [vmem:[%s180 + $0x1958] sm:$0xff]
        %v1027 = vld [vmem:[%s180 + $0x1960] sm:$0xff]
        %v1028 = vld [vmem:[%s180 + $0x1968] sm:$0xff]
        %v1029 = vld [vmem:[%s180 + $0x1970] sm:$0xff]
        %v1030 = vld [vmem:[%s180 + $0x1978] sm:$0xff]
        %v1031 = vld [vmem:[%s180 + $0x1980] sm:$0xff]
        %v1032 = vld [vmem:[%s180 + $0x1988] sm:$0xff]
        %v1033 = vld [vmem:[%s180 + $0x1990] sm:$0xff]
        %v1034 = vld [vmem:[%s180 + $0x1998] sm:$0xff]
        %v1035 = vld [vmem:[%s180 + $0x19a0] sm:$0xff]
        %v1036 = vld [vmem:[%s180 + $0x19a8] sm:$0xff]
        %v1037 = vld [vmem:[%s180 + $0x19b0] sm:$0xff]
        %v1038 = vld [vmem:[%s180 + $0x19b8] sm:$0xff]
        %v1039 = vld [vmem:[%s180 + $0x19c0] sm:$0xff]
        %v1040 = vld [vmem:[%s180 + $0x19c8] sm:$0xff]
        %v1041 = vld [vmem:[%s180 + $0x19d0] sm:$0xff]
        %v1042 = vld [vmem:[%s180 + $0x19d8] sm:$0xff]
        %v1043 = vld [vmem:[%s180 + $0x19e0] sm:$0xff]
        %v1044 = vld [vmem:[%s180 + $0x19e8] sm:$0xff]
        %v1045 = vld [vmem:[%s180 + $0x19f0] sm:$0xff]
        %v1046 = vld [vmem:[%s180 + $0x19f8] sm:$0xff]
        %v1047 = vld [vmem:[%s180 + $0x1a00] sm:$0xff]
        %v1048 = vld [vmem:[%s180 + $0x1a08] sm:$0xff]
        %v1049 = vld [vmem:[%s180 + $0x1a10] sm:$0xff]
        %v1050 = vld [vmem:[%s180 + $0x1a18] sm:$0xff]
        %v1051 = vld [vmem:[%s180 + $0x1a20] sm:$0xff]
        %v1052 = vld [vmem:[%s180 + $0x1a28] sm:$0xff]
        %v1053 = vld [vmem:[%s180 + $0x1a30] sm:$0xff]
        %v1054 = vld [vmem:[%s180 + $0x1a38] sm:$0xff]
        %v1055 = vld [vmem:[%s180 + $0x1a40] sm:$0xff]
        %v1056 = vld [vmem:[%s180 + $0x1a48] sm:$0xff]
        %v1057 = vld [vmem:[%s180 + $0x1a50] sm:$0xff]
        %v1058 = vld [vmem:[%s180 + $0x1a58] sm:$0xff]
        %v1059 = vld [vmem:[%s180 + $0x1a60] sm:$0xff]
        %v1060 = vld [vmem:[%s180 + $0x1a68] sm:$0xff]
        %v1061 = vld [vmem:[%s180 + $0x1a70] sm:$0xff]
        %v1062 = vld [vmem:[%s180 + $0x1a78] sm:$0xff]
        %v1063 = vld [vmem:[%s180 + $0x1a80] sm:$0xff]
        %v1064 = vld [vmem:[%s180 + $0x1a88] sm:$0xff]
        %v1065 = vld [vmem:[%s180 + $0x1a90] sm:$0xff]
        %v1066 = vld [vmem:[%s180 + $0x1a98] sm:$0xff]
        %v1067 = vld [vmem:[%s180 + $0x1aa0] sm:$0xff]
        %v1068 = vld [vmem:[%s180 + $0x1aa8] sm:$0xff]
        %v1069 = vld [vmem:[%s180 + $0x1ab0] sm:$0xff]
        %v1070 = vld [vmem:[%s180 + $0x1ab8] sm:$0xff]
        %v1071 = vld [vmem:[%s180 + $0x1ac0] sm:$0xff]
        %v1072 = vld [vmem:[%s180 + $0x1ac8] sm:$0xff]
        %v1073 = vld [vmem:[%s180 + $0x1ad0] sm:$0xff]
        %v1074 = vld [vmem:[%s180 + $0x1ad8] sm:$0xff]
        %v1075 = vld [vmem:[%s180 + $0x1ae0] sm:$0xff]
        %v1076 = vld [vmem:[%s180 + $0x1ae8] sm:$0xff]
        %v1077 = vld [vmem:[%s180 + $0x1af0] sm:$0xff]
        %v1078 = vld [vmem:[%s180 + $0x1af8] sm:$0xff]
        %v1079 = vld [vmem:[%s180 + $0x1b00] sm:$0xff]
        %v1080 = vld [vmem:[%s180 + $0x1b08] sm:$0xff]
        %v1081 = vld [vmem:[%s180 + $0x1b10] sm:$0xff]
        %v1082 = vld [vmem:[%s180 + $0x1b18] sm:$0xff]
        %v1083 = vld [vmem:[%s180 + $0x1b20] sm:$0xff]
        %v1084 = vld [vmem:[%s180 + $0x1b28] sm:$0xff]
        %v1085 = vld [vmem:[%s180 + $0x1b30] sm:$0xff]
        %v1086 = vld [vmem:[%s180 + $0x1b38] sm:$0xff]
        %v1087 = vld [vmem:[%s180 + $0x1b40] sm:$0xff]
        %v1088 = vld [vmem:[%s180 + $0x1b48] sm:$0xff]
        %v1089 = vld [vmem:[%s180 + $0x1b50] sm:$0xff]
        %v1090 = vld [vmem:[%s180 + $0x1b58] sm:$0xff]
        %v1091 = vld [vmem:[%s180 + $0x1b60] sm:$0xff]
        %v1092 = vld [vmem:[%s180 + $0x1b68] sm:$0xff]
        %v1093 = vld [vmem:[%s180 + $0x1b70] sm:$0xff]
        %v1094 = vld [vmem:[%s180 + $0x1b78] sm:$0xff]
        %v1095 = vld [vmem:[%s180 + $0x1b80] sm:$0xff]
        %v1096 = vld [vmem:[%s180 + $0x1b88] sm:$0xff]
        %v1097 = vld [vmem:[%s180 + $0x1b90] sm:$0xff]
        %v1098 = vld [vmem:[%s180 + $0x1b98] sm:$0xff]
        %v1099 = vld [vmem:[%s180 + $0x1ba0] sm:$0xff]
        %v1100 = vld [vmem:[%s180 + $0x1ba8] sm:$0xff]
        %v1101 = vld [vmem:[%s180 + $0x1bb0] sm:$0xff]
        %v1102 = vld [vmem:[%s180 + $0x1bb8] sm:$0xff]
        %v1103 = vld [vmem:[%s180 + $0x1bc0] sm:$0xff]
        %v1104 = vld [vmem:[%s180 + $0x1bc8] sm:$0xff]
        %v1105 = vld [vmem:[%s180 + $0x1bd0] sm:$0xff]
        %v1106 = vld [vmem:[%s180 + $0x1bd8] sm:$0xff]
        %v1107 = vld [vmem:[%s180 + $0x1be0] sm:$0xff]
        %v1108 = vld [vmem:[%s180 + $0x1be8] sm:$0xff]
        %v1109 = vld [vmem:[%s180 + $0x1bf0] sm:$0xff]
        %v1110 = vld [vmem:[%s180 + $0x1bf8] sm:$0xff]
        %v1111 = vld [vmem:[%s180 + $0x1c00] sm:$0xff]
        %v1112 = vld [vmem:[%s180 + $0x1c08] sm:$0xff]
        %v1113 = vld [vmem:[%s180 + $0x1c10] sm:$0xff]
        %v1114 = vld [vmem:[%s180 + $0x1c18] sm:$0xff]
        %v1115 = vld [vmem:[%s180 + $0x1c20] sm:$0xff]
        %v1116 = vld [vmem:[%s180 + $0x1c28] sm:$0xff]
        %v1117 = vld [vmem:[%s180 + $0x1c30] sm:$0xff]
        %v1118 = vld [vmem:[%s180 + $0x1c38] sm:$0xff]
        %v1119 = vld [vmem:[%s180 + $0x1c40] sm:$0xff]
        %v1120 = vld [vmem:[%s180 + $0x1c48] sm:$0xff]
        %v1121 = vld [vmem:[%s180 + $0x1c50] sm:$0xff]
        %v1122 = vld [vmem:[%s180 + $0x1c58] sm:$0xff]
        %v1123 = vld [vmem:[%s180 + $0x1c60] sm:$0xff]
        %v1124 = vld [vmem:[%s180 + $0x1c68] sm:$0xff]
        %v1125 = vld [vmem:[%s180 + $0x1c70] sm:$0xff]
        %v1126 = vld [vmem:[%s180 + $0x1c78] sm:$0xff]
        %v1127 = vld [vmem:[%s180 + $0x1c80] sm:$0xff]
        %v1128 = vld [vmem:[%s180 + $0x1c88] sm:$0xff]
        %v1129 = vld [vmem:[%s180 + $0x1c90] sm:$0xff]
        %v1130 = vld [vmem:[%s180 + $0x1c98] sm:$0xff]
        %v1131 = vld [vmem:[%s180 + $0x1ca0] sm:$0xff]
        %v1132 = vld [vmem:[%s180 + $0x1ca8] sm:$0xff]
        %v1133 = vld [vmem:[%s180 + $0x1cb0] sm:$0xff]
        %v1134 = vld [vmem:[%s180 + $0x1cb8] sm:$0xff]
        %v1135 = vld [vmem:[%s180 + $0x1cc0] sm:$0xff]
        %v1136 = vld [vmem:[%s180 + $0x1cc8] sm:$0xff]
        %v1137 = vld [vmem:[%s180 + $0x1cd0] sm:$0xff]
        %v1138 = vld [vmem:[%s180 + $0x1cd8] sm:$0xff]
        %v1139 = vld [vmem:[%s180 + $0x1ce0] sm:$0xff]
        %v1140 = vld [vmem:[%s180 + $0x1ce8] sm:$0xff]
        %v1141 = vld [vmem:[%s180 + $0x1cf0] sm:$0xff]
        %v1142 = vld [vmem:[%s180 + $0x1cf8] sm:$0xff]
        %v1143 = vld [vmem:[%s180 + $0x1d00] sm:$0xff]
        %v1144 = vld [vmem:[%s180 + $0x1d08] sm:$0xff]
        %v1145 = vld [vmem:[%s180 + $0x1d10] sm:$0xff]
        %v1146 = vld [vmem:[%s180 + $0x1d18] sm:$0xff]
        %v1147 = vld [vmem:[%s180 + $0x1d20] sm:$0xff]
        %v1148 = vld [vmem:[%s180 + $0x1d28] sm:$0xff]
        %v1149 = vld [vmem:[%s180 + $0x1d30] sm:$0xff]
        %v1150 = vld [vmem:[%s180 + $0x1d38] sm:$0xff]
        %v1151 = vld [vmem:[%s180 + $0x1d40] sm:$0xff]
        %v1152 = vld [vmem:[%s180 + $0x1d48] sm:$0xff]
        %v1153 = vld [vmem:[%s180 + $0x1d50] sm:$0xff]
        %v1154 = vld [vmem:[%s180 + $0x1d58] sm:$0xff]
        %v1155 = vld [vmem:[%s180 + $0x1d60] sm:$0xff]
        %v1156 = vld [vmem:[%s180 + $0x1d68] sm:$0xff]
        %v1157 = vld [vmem:[%s180 + $0x1d70] sm:$0xff]
        %v1158 = vld [vmem:[%s180 + $0x1d78] sm:$0xff]
        %v1159 = vld [vmem:[%s180 + $0x1d80] sm:$0xff]
        %v1160 = vld [vmem:[%s180 + $0x1d88] sm:$0xff]
        %v1161 = vld [vmem:[%s180 + $0x1d90] sm:$0xff]
        %v1162 = vld [vmem:[%s180 + $0x1d98] sm:$0xff]
        %v1163 = vld [vmem:[%s180 + $0x1da0] sm:$0xff]
        %v1164 = vld [vmem:[%s180 + $0x1da8] sm:$0xff]
        %v1165 = vld [vmem:[%s180 + $0x1db0] sm:$0xff]
        %v1166 = vld [vmem:[%s180 + $0x1db8] sm:$0xff]
        %v1167 = vld [vmem:[%s180 + $0x1dc0] sm:$0xff]
        %v1168 = vld [vmem:[%s180 + $0x1dc8] sm:$0xff]
        %v1169 = vld [vmem:[%s180 + $0x1dd0] sm:$0xff]
        %v1170 = vld [vmem:[%s180 + $0x1dd8] sm:$0xff]
        %v1171 = vld [vmem:[%s180 + $0x1de0] sm:$0xff]
        %v1172 = vld [vmem:[%s180 + $0x1de8] sm:$0xff]
        %v1173 = vld [vmem:[%s180 + $0x1df0] sm:$0xff]
        %v1174 = vld [vmem:[%s180 + $0x1df8] sm:$0xff]
        %v1175 = vld [vmem:[%s180 + $0x1e00] sm:$0xff]
        %v1176 = vld [vmem:[%s180 + $0x1e08] sm:$0xff]
        %v1177 = vld [vmem:[%s180 + $0x1e10] sm:$0xff]
        %v1178 = vld [vmem:[%s180 + $0x1e18] sm:$0xff]
        %v1179 = vld [vmem:[%s180 + $0x1e20] sm:$0xff]
        %v1180 = vld [vmem:[%s180 + $0x1e28] sm:$0xff]
        %v1181 = vld [vmem:[%s180 + $0x1e30] sm:$0xff]
        %v1182 = vld [vmem:[%s180 + $0x1e38] sm:$0xff]
        %v1183 = vld [vmem:[%s180 + $0x1e40] sm:$0xff]
        %v1184 = vld [vmem:[%s180 + $0x1e48] sm:$0xff]
        %v1185 = vld [vmem:[%s180 + $0x1e50] sm:$0xff]
        %v1186 = vld [vmem:[%s180 + $0x1e58] sm:$0xff]
        %v1187 = vld [vmem:[%s180 + $0x1e60] sm:$0xff]
        %v1188 = vld [vmem:[%s180 + $0x1e68] sm:$0xff]
        %v1189 = vld [vmem:[%s180 + $0x1e70] sm:$0xff]
        %v1190 = vld [vmem:[%s180 + $0x1e78] sm:$0xff]
        %v1191 = vld [vmem:[%s180 + $0x1e80] sm:$0xff]
        %v1192 = vld [vmem:[%s180 + $0x1e88] sm:$0xff]
        %v1193 = vld [vmem:[%s180 + $0x1e90] sm:$0xff]
        %v1194 = vld [vmem:[%s180 + $0x1e98] sm:$0xff]
        %v1195 = vld [vmem:[%s180 + $0x1ea0] sm:$0xff]
        %v1196 = vld [vmem:[%s180 + $0x1ea8] sm:$0xff]
        %v1197 = vld [vmem:[%s180 + $0x1eb0] sm:$0xff]
        %v1198 = vld [vmem:[%s180 + $0x1eb8] sm:$0xff]
        %v1199 = vld [vmem:[%s180 + $0x1ec0] sm:$0xff]
        %v1200 = vld [vmem:[%s180 + $0x1ec8] sm:$0xff]
        %v1201 = vld [vmem:[%s180 + $0x1ed0] sm:$0xff]
        %v1202 = vld [vmem:[%s180 + $0x1ed8] sm:$0xff]
        %v1203 = vld [vmem:[%s180 + $0x1ee0] sm:$0xff]
        %v1204 = vld [vmem:[%s180 + $0x1ee8] sm:$0xff]
        %v1205 = vld [vmem:[%s180 + $0x1ef0] sm:$0xff]
        %v1206 = vld [vmem:[%s180 + $0x1ef8] sm:$0xff]
        %v1207 = vld [vmem:[%s180 + $0x1f00] sm:$0xff]
        %v1208 = vld [vmem:[%s180 + $0x1f08] sm:$0xff]
        %v1209 = vld [vmem:[%s180 + $0x1f10] sm:$0xff]
        %v1210 = vld [vmem:[%s180 + $0x1f18] sm:$0xff]
        %v1211 = vld [vmem:[%s180 + $0x1f20] sm:$0xff]
        %v1212 = vld [vmem:[%s180 + $0x1f28] sm:$0xff]
        %v1213 = vld [vmem:[%s180 + $0x1f30] sm:$0xff]
        %v1214 = vld [vmem:[%s180 + $0x1f38] sm:$0xff]
        %v1215 = vld [vmem:[%s180 + $0x1f40] sm:$0xff]
        %v1216 = vld [vmem:[%s180 + $0x1f48] sm:$0xff]
        %v1217 = vld [vmem:[%s180 + $0x1f50] sm:$0xff]
        %v1218 = vld [vmem:[%s180 + $0x1f58] sm:$0xff]
        %v1219 = vld [vmem:[%s180 + $0x1f60] sm:$0xff]
        %v1220 = vld [vmem:[%s180 + $0x1f68] sm:$0xff]
        %v1221 = vld [vmem:[%s180 + $0x1f70] sm:$0xff]
        %v1222 = vld [vmem:[%s180 + $0x1f78] sm:$0xff]
        %v1223 = vld [vmem:[%s180 + $0x1f80] sm:$0xff]
        %v1224 = vld [vmem:[%s180 + $0x1f88] sm:$0xff]
        %v1225 = vld [vmem:[%s180 + $0x1f90] sm:$0xff]
        %v1226 = vld [vmem:[%s180 + $0x1f98] sm:$0xff]
        %v1227 = vld [vmem:[%s180 + $0x1fa0] sm:$0xff]
        %v1228 = vld [vmem:[%s180 + $0x1fa8] sm:$0xff]
        %v1229 = vld [vmem:[%s180 + $0x1fb0] sm:$0xff]
        %v1230 = vld [vmem:[%s180 + $0x1fb8] sm:$0xff]
        %v1231 = vld [vmem:[%s180 + $0x1fc0] sm:$0xff]
        %v1232 = vld [vmem:[%s180 + $0x1fc8] sm:$0xff]
        %v1233 = vld [vmem:[%s180 + $0x1fd0] sm:$0xff]
        %v1234 = vld [vmem:[%s180 + $0x1fd8] sm:$0xff]
        %v1235 = vld [vmem:[%s180 + $0x1fe0] sm:$0xff]
        %v1236 = vld [vmem:[%s180 + $0x1fe8] sm:$0xff]
        %v1237 = vld [vmem:[%s180 + $0x1ff0] sm:$0xff]
        %v1238 = vld [vmem:[%s180 + $0x1ff8] sm:$0xff]
        %v1239 = vld [vmem:[#allocation5] sm:$0x1]
        %v1241 = vlaneseq
        %v1242 = vshrl.u32 %v1241, 7
        %v1243 = vsub.s32 0, %v1242
        %v1244 = vrot.slane %v1239, %v1243
        %v1246 = vadd.f32 %v215, %v1244
        %v1247 = vadd.f32 %v216, %v1244
        %v1248 = vadd.f32 %v217, %v1244
        %v1249 = vadd.f32 %v218, %v1244
        %v1250 = vadd.f32 %v219, %v1244
        %v1251 = vadd.f32 %v220, %v1244
        %v1252 = vadd.f32 %v221, %v1244
        %v1253 = vadd.f32 %v222, %v1244
        %v1254 = vadd.f32 %v223, %v1244
        %v1255 = vadd.f32 %v224, %v1244
        %v1256 = vadd.f32 %v225, %v1244
        %v1257 = vadd.f32 %v226, %v1244
        %v1258 = vadd.f32 %v227, %v1244
        %v1259 = vadd.f32 %v228, %v1244
        %v1260 = vadd.f32 %v229, %v1244
        %v1261 = vadd.f32 %v230, %v1244
        %v1262 = vadd.f32 %v231, %v1244
        %v1263 = vadd.f32 %v232, %v1244
        %v1264 = vadd.f32 %v233, %v1244
        %v1265 = vadd.f32 %v234, %v1244
        %v1266 = vadd.f32 %v235, %v1244
        %v1267 = vadd.f32 %v236, %v1244
        %v1268 = vadd.f32 %v237, %v1244
        %v1269 = vadd.f32 %v238, %v1244
        %v1270 = vadd.f32 %v239, %v1244
        %v1271 = vadd.f32 %v240, %v1244
        %v1272 = vadd.f32 %v241, %v1244
        %v1273 = vadd.f32 %v242, %v1244
        %v1274 = vadd.f32 %v243, %v1244
        %v1275 = vadd.f32 %v244, %v1244
        %v1276 = vadd.f32 %v245, %v1244
        %v1277 = vadd.f32 %v246, %v1244
        %v1278 = vadd.f32 %v247, %v1244
        %v1279 = vadd.f32 %v248, %v1244
        %v1280 = vadd.f32 %v249, %v1244
        %v1281 = vadd.f32 %v250, %v1244
        %v1282 = vadd.f32 %v251, %v1244
        %v1283 = vadd.f32 %v252, %v1244
        %v1284 = vadd.f32 %v253, %v1244
        %v1285 = vadd.f32 %v254, %v1244
        %v1286 = vadd.f32 %v255, %v1244
        %v1287 = vadd.f32 %v256, %v1244
        %v1288 = vadd.f32 %v257, %v1244
        %v1289 = vadd.f32 %v258, %v1244
        %v1290 = vadd.f32 %v259, %v1244
        %v1291 = vadd.f32 %v260, %v1244
        %v1292 = vadd.f32 %v261, %v1244
        %v1293 = vadd.f32 %v262, %v1244
        %v1294 = vadd.f32 %v263, %v1244
        %v1295 = vadd.f32 %v264, %v1244
        %v1296 = vadd.f32 %v265, %v1244
        %v1297 = vadd.f32 %v266, %v1244
        %v1298 = vadd.f32 %v267, %v1244
        %v1299 = vadd.f32 %v268, %v1244
        %v1300 = vadd.f32 %v269, %v1244
        %v1301 = vadd.f32 %v270, %v1244
        %v1302 = vadd.f32 %v271, %v1244
        %v1303 = vadd.f32 %v272, %v1244
        %v1304 = vadd.f32 %v273, %v1244
        %v1305 = vadd.f32 %v274, %v1244
        %v1306 = vadd.f32 %v275, %v1244
        %v1307 = vadd.f32 %v276, %v1244
        %v1308 = vadd.f32 %v277, %v1244
        %v1309 = vadd.f32 %v278, %v1244
        %v1310 = vadd.f32 %v279, %v1244
        %v1311 = vadd.f32 %v280, %v1244
        %v1312 = vadd.f32 %v281, %v1244
        %v1313 = vadd.f32 %v282, %v1244
        %v1314 = vadd.f32 %v283, %v1244
        %v1315 = vadd.f32 %v284, %v1244
        %v1316 = vadd.f32 %v285, %v1244
        %v1317 = vadd.f32 %v286, %v1244
        %v1318 = vadd.f32 %v287, %v1244
        %v1319 = vadd.f32 %v288, %v1244
        %v1320 = vadd.f32 %v289, %v1244
        %v1321 = vadd.f32 %v290, %v1244
        %v1322 = vadd.f32 %v291, %v1244
        %v1323 = vadd.f32 %v292, %v1244
        %v1324 = vadd.f32 %v293, %v1244
        %v1325 = vadd.f32 %v294, %v1244
        %v1326 = vadd.f32 %v295, %v1244
        %v1327 = vadd.f32 %v296, %v1244
        %v1328 = vadd.f32 %v297, %v1244
        %v1329 = vadd.f32 %v298, %v1244
        %v1330 = vadd.f32 %v299, %v1244
        %v1331 = vadd.f32 %v300, %v1244
        %v1332 = vadd.f32 %v301, %v1244
        %v1333 = vadd.f32 %v302, %v1244
        %v1334 = vadd.f32 %v303, %v1244
        %v1335 = vadd.f32 %v304, %v1244
        %v1336 = vadd.f32 %v305, %v1244
        %v1337 = vadd.f32 %v306, %v1244
        %v1338 = vadd.f32 %v307, %v1244
        %v1339 = vadd.f32 %v308, %v1244
        %v1340 = vadd.f32 %v309, %v1244
        %v1341 = vadd.f32 %v310, %v1244
        %v1342 = vadd.f32 %v311, %v1244
        %v1343 = vadd.f32 %v312, %v1244
        %v1344 = vadd.f32 %v313, %v1244
        %v1345 = vadd.f32 %v314, %v1244
        %v1346 = vadd.f32 %v315, %v1244
        %v1347 = vadd.f32 %v316, %v1244
        %v1348 = vadd.f32 %v317, %v1244
        %v1349 = vadd.f32 %v318, %v1244
        %v1350 = vadd.f32 %v319, %v1244
        %v1351 = vadd.f32 %v320, %v1244
        %v1352 = vadd.f32 %v321, %v1244
        %v1353 = vadd.f32 %v322, %v1244
        %v1354 = vadd.f32 %v323, %v1244
        %v1355 = vadd.f32 %v324, %v1244
        %v1356 = vadd.f32 %v325, %v1244
        %v1357 = vadd.f32 %v326, %v1244
        %v1358 = vadd.f32 %v327, %v1244
        %v1359 = vadd.f32 %v328, %v1244
        %v1360 = vadd.f32 %v329, %v1244
        %v1361 = vadd.f32 %v330, %v1244
        %v1362 = vadd.f32 %v331, %v1244
        %v1363 = vadd.f32 %v332, %v1244
        %v1364 = vadd.f32 %v333, %v1244
        %v1365 = vadd.f32 %v334, %v1244
        %v1366 = vadd.f32 %v335, %v1244
        %v1367 = vadd.f32 %v336, %v1244
        %v1368 = vadd.f32 %v337, %v1244
        %v1369 = vadd.f32 %v338, %v1244
        %v1370 = vadd.f32 %v339, %v1244
        %v1371 = vadd.f32 %v340, %v1244
        %v1372 = vadd.f32 %v341, %v1244
        %v1373 = vadd.f32 %v342, %v1244
        %v1374 = vadd.f32 %v343, %v1244
        %v1375 = vadd.f32 %v344, %v1244
        %v1376 = vadd.f32 %v345, %v1244
        %v1377 = vadd.f32 %v346, %v1244
        %v1378 = vadd.f32 %v347, %v1244
        %v1379 = vadd.f32 %v348, %v1244
        %v1380 = vadd.f32 %v349, %v1244
        %v1381 = vadd.f32 %v350, %v1244
        %v1382 = vadd.f32 %v351, %v1244
        %v1383 = vadd.f32 %v352, %v1244
        %v1384 = vadd.f32 %v353, %v1244
        %v1385 = vadd.f32 %v354, %v1244
        %v1386 = vadd.f32 %v355, %v1244
        %v1387 = vadd.f32 %v356, %v1244
        %v1388 = vadd.f32 %v357, %v1244
        %v1389 = vadd.f32 %v358, %v1244
        %v1390 = vadd.f32 %v359, %v1244
        %v1391 = vadd.f32 %v360, %v1244
        %v1392 = vadd.f32 %v361, %v1244
        %v1393 = vadd.f32 %v362, %v1244
        %v1394 = vadd.f32 %v363, %v1244
        %v1395 = vadd.f32 %v364, %v1244
        %v1396 = vadd.f32 %v365, %v1244
        %v1397 = vadd.f32 %v366, %v1244
        %v1398 = vadd.f32 %v367, %v1244
        %v1399 = vadd.f32 %v368, %v1244
        %v1400 = vadd.f32 %v369, %v1244
        %v1401 = vadd.f32 %v370, %v1244
        %v1402 = vadd.f32 %v371, %v1244
        %v1403 = vadd.f32 %v372, %v1244
        %v1404 = vadd.f32 %v373, %v1244
        %v1405 = vadd.f32 %v374, %v1244
        %v1406 = vadd.f32 %v375, %v1244
        %v1407 = vadd.f32 %v376, %v1244
        %v1408 = vadd.f32 %v377, %v1244
        %v1409 = vadd.f32 %v378, %v1244
        %v1410 = vadd.f32 %v379, %v1244
        %v1411 = vadd.f32 %v380, %v1244
        %v1412 = vadd.f32 %v381, %v1244
        %v1413 = vadd.f32 %v382, %v1244
        %v1414 = vadd.f32 %v383, %v1244
        %v1415 = vadd.f32 %v384, %v1244
        %v1416 = vadd.f32 %v385, %v1244
        %v1417 = vadd.f32 %v386, %v1244
        %v1418 = vadd.f32 %v387, %v1244
        %v1419 = vadd.f32 %v388, %v1244
        %v1420 = vadd.f32 %v389, %v1244
        %v1421 = vadd.f32 %v390, %v1244
        %v1422 = vadd.f32 %v391, %v1244
        %v1423 = vadd.f32 %v392, %v1244
        %v1424 = vadd.f32 %v393, %v1244
        %v1425 = vadd.f32 %v394, %v1244
        %v1426 = vadd.f32 %v395, %v1244
        %v1427 = vadd.f32 %v396, %v1244
        %v1428 = vadd.f32 %v397, %v1244
        %v1429 = vadd.f32 %v398, %v1244
        %v1430 = vadd.f32 %v399, %v1244
        %v1431 = vadd.f32 %v400, %v1244
        %v1432 = vadd.f32 %v401, %v1244
        %v1433 = vadd.f32 %v402, %v1244
        %v1434 = vadd.f32 %v403, %v1244
        %v1435 = vadd.f32 %v404, %v1244
        %v1436 = vadd.f32 %v405, %v1244
        %v1437 = vadd.f32 %v406, %v1244
        %v1438 = vadd.f32 %v407, %v1244
        %v1439 = vadd.f32 %v408, %v1244
        %v1440 = vadd.f32 %v409, %v1244
        %v1441 = vadd.f32 %v410, %v1244
        %v1442 = vadd.f32 %v411, %v1244
        %v1443 = vadd.f32 %v412, %v1244
        %v1444 = vadd.f32 %v413, %v1244
        %v1445 = vadd.f32 %v414, %v1244
        %v1446 = vadd.f32 %v415, %v1244
        %v1447 = vadd.f32 %v416, %v1244
        %v1448 = vadd.f32 %v417, %v1244
        %v1449 = vadd.f32 %v418, %v1244
        %v1450 = vadd.f32 %v419, %v1244
        %v1451 = vadd.f32 %v420, %v1244
        %v1452 = vadd.f32 %v421, %v1244
        %v1453 = vadd.f32 %v422, %v1244
        %v1454 = vadd.f32 %v423, %v1244
        %v1455 = vadd.f32 %v424, %v1244
        %v1456 = vadd.f32 %v425, %v1244
        %v1457 = vadd.f32 %v426, %v1244
        %v1458 = vadd.f32 %v427, %v1244
        %v1459 = vadd.f32 %v428, %v1244
        %v1460 = vadd.f32 %v429, %v1244
        %v1461 = vadd.f32 %v430, %v1244
        %v1462 = vadd.f32 %v431, %v1244
        %v1463 = vadd.f32 %v432, %v1244
        %v1464 = vadd.f32 %v433, %v1244
        %v1465 = vadd.f32 %v434, %v1244
        %v1466 = vadd.f32 %v435, %v1244
        %v1467 = vadd.f32 %v436, %v1244
        %v1468 = vadd.f32 %v437, %v1244
        %v1469 = vadd.f32 %v438, %v1244
        %v1470 = vadd.f32 %v439, %v1244
        %v1471 = vadd.f32 %v440, %v1244
        %v1472 = vadd.f32 %v441, %v1244
        %v1473 = vadd.f32 %v442, %v1244
        %v1474 = vadd.f32 %v443, %v1244
        %v1475 = vadd.f32 %v444, %v1244
        %v1476 = vadd.f32 %v445, %v1244
        %v1477 = vadd.f32 %v446, %v1244
        %v1478 = vadd.f32 %v447, %v1244
        %v1479 = vadd.f32 %v448, %v1244
        %v1480 = vadd.f32 %v449, %v1244
        %v1481 = vadd.f32 %v450, %v1244
        %v1482 = vadd.f32 %v451, %v1244
        %v1483 = vadd.f32 %v452, %v1244
        %v1484 = vadd.f32 %v453, %v1244
        %v1485 = vadd.f32 %v454, %v1244
        %v1486 = vadd.f32 %v455, %v1244
        %v1487 = vadd.f32 %v456, %v1244
        %v1488 = vadd.f32 %v457, %v1244
        %v1489 = vadd.f32 %v458, %v1244
        %v1490 = vadd.f32 %v459, %v1244
        %v1491 = vadd.f32 %v460, %v1244
        %v1492 = vadd.f32 %v461, %v1244
        %v1493 = vadd.f32 %v462, %v1244
        %v1494 = vadd.f32 %v463, %v1244
        %v1495 = vadd.f32 %v464, %v1244
        %v1496 = vadd.f32 %v465, %v1244
        %v1497 = vadd.f32 %v466, %v1244
        %v1498 = vadd.f32 %v467, %v1244
        %v1499 = vadd.f32 %v468, %v1244
        %v1500 = vadd.f32 %v469, %v1244
        %v1501 = vadd.f32 %v470, %v1244
        %v1502 = vadd.f32 %v471, %v1244
        %v1503 = vadd.f32 %v472, %v1244
        %v1504 = vadd.f32 %v473, %v1244
        %v1505 = vadd.f32 %v474, %v1244
        %v1506 = vadd.f32 %v475, %v1244
        %v1507 = vadd.f32 %v476, %v1244
        %v1508 = vadd.f32 %v477, %v1244
        %v1509 = vadd.f32 %v478, %v1244
        %v1510 = vadd.f32 %v479, %v1244
        %v1511 = vadd.f32 %v480, %v1244
        %v1512 = vadd.f32 %v481, %v1244
        %v1513 = vadd.f32 %v482, %v1244
        %v1514 = vadd.f32 %v483, %v1244
        %v1515 = vadd.f32 %v484, %v1244
        %v1516 = vadd.f32 %v485, %v1244
        %v1517 = vadd.f32 %v486, %v1244
        %v1518 = vadd.f32 %v487, %v1244
        %v1519 = vadd.f32 %v488, %v1244
        %v1520 = vadd.f32 %v489, %v1244
        %v1521 = vadd.f32 %v490, %v1244
        %v1522 = vadd.f32 %v491, %v1244
        %v1523 = vadd.f32 %v492, %v1244
        %v1524 = vadd.f32 %v493, %v1244
        %v1525 = vadd.f32 %v494, %v1244
        %v1526 = vadd.f32 %v495, %v1244
        %v1527 = vadd.f32 %v496, %v1244
        %v1528 = vadd.f32 %v497, %v1244
        %v1529 = vadd.f32 %v498, %v1244
        %v1530 = vadd.f32 %v499, %v1244
        %v1531 = vadd.f32 %v500, %v1244
        %v1532 = vadd.f32 %v501, %v1244
        %v1533 = vadd.f32 %v502, %v1244
        %v1534 = vadd.f32 %v503, %v1244
        %v1535 = vadd.f32 %v504, %v1244
        %v1536 = vadd.f32 %v505, %v1244
        %v1537 = vadd.f32 %v506, %v1244
        %v1538 = vadd.f32 %v507, %v1244
        %v1539 = vadd.f32 %v508, %v1244
        %v1540 = vadd.f32 %v509, %v1244
        %v1541 = vadd.f32 %v510, %v1244
        %v1542 = vadd.f32 %v511, %v1244
        %v1543 = vadd.f32 %v512, %v1244
        %v1544 = vadd.f32 %v513, %v1244
        %v1545 = vadd.f32 %v514, %v1244
        %v1546 = vadd.f32 %v515, %v1244
        %v1547 = vadd.f32 %v516, %v1244
        %v1548 = vadd.f32 %v517, %v1244
        %v1549 = vadd.f32 %v518, %v1244
        %v1550 = vadd.f32 %v519, %v1244
        %v1551 = vadd.f32 %v520, %v1244
        %v1552 = vadd.f32 %v521, %v1244
        %v1553 = vadd.f32 %v522, %v1244
        %v1554 = vadd.f32 %v523, %v1244
        %v1555 = vadd.f32 %v524, %v1244
        %v1556 = vadd.f32 %v525, %v1244
        %v1557 = vadd.f32 %v526, %v1244
        %v1558 = vadd.f32 %v527, %v1244
        %v1559 = vadd.f32 %v528, %v1244
        %v1560 = vadd.f32 %v529, %v1244
        %v1561 = vadd.f32 %v530, %v1244
        %v1562 = vadd.f32 %v531, %v1244
        %v1563 = vadd.f32 %v532, %v1244
        %v1564 = vadd.f32 %v533, %v1244
        %v1565 = vadd.f32 %v534, %v1244
        %v1566 = vadd.f32 %v535, %v1244
        %v1567 = vadd.f32 %v536, %v1244
        %v1568 = vadd.f32 %v537, %v1244
        %v1569 = vadd.f32 %v538, %v1244
        %v1570 = vadd.f32 %v539, %v1244
        %v1571 = vadd.f32 %v540, %v1244
        %v1572 = vadd.f32 %v541, %v1244
        %v1573 = vadd.f32 %v542, %v1244
        %v1574 = vadd.f32 %v543, %v1244
        %v1575 = vadd.f32 %v544, %v1244
        %v1576 = vadd.f32 %v545, %v1244
        %v1577 = vadd.f32 %v546, %v1244
        %v1578 = vadd.f32 %v547, %v1244
        %v1579 = vadd.f32 %v548, %v1244
        %v1580 = vadd.f32 %v549, %v1244
        %v1581 = vadd.f32 %v550, %v1244
        %v1582 = vadd.f32 %v551, %v1244
        %v1583 = vadd.f32 %v552, %v1244
        %v1584 = vadd.f32 %v553, %v1244
        %v1585 = vadd.f32 %v554, %v1244
        %v1586 = vadd.f32 %v555, %v1244
        %v1587 = vadd.f32 %v556, %v1244
        %v1588 = vadd.f32 %v557, %v1244
        %v1589 = vadd.f32 %v558, %v1244
        %v1590 = vadd.f32 %v559, %v1244
        %v1591 = vadd.f32 %v560, %v1244
        %v1592 = vadd.f32 %v561, %v1244
        %v1593 = vadd.f32 %v562, %v1244
        %v1594 = vadd.f32 %v563, %v1244
        %v1595 = vadd.f32 %v564, %v1244
        %v1596 = vadd.f32 %v565, %v1244
        %v1597 = vadd.f32 %v566, %v1244
        %v1598 = vadd.f32 %v567, %v1244
        %v1599 = vadd.f32 %v568, %v1244
        %v1600 = vadd.f32 %v569, %v1244
        %v1601 = vadd.f32 %v570, %v1244
        %v1602 = vadd.f32 %v571, %v1244
        %v1603 = vadd.f32 %v572, %v1244
        %v1604 = vadd.f32 %v573, %v1244
        %v1605 = vadd.f32 %v574, %v1244
        %v1606 = vadd.f32 %v575, %v1244
        %v1607 = vadd.f32 %v576, %v1244
        %v1608 = vadd.f32 %v577, %v1244
        %v1609 = vadd.f32 %v578, %v1244
        %v1610 = vadd.f32 %v579, %v1244
        %v1611 = vadd.f32 %v580, %v1244
        %v1612 = vadd.f32 %v581, %v1244
        %v1613 = vadd.f32 %v582, %v1244
        %v1614 = vadd.f32 %v583, %v1244
        %v1615 = vadd.f32 %v584, %v1244
        %v1616 = vadd.f32 %v585, %v1244
        %v1617 = vadd.f32 %v586, %v1244
        %v1618 = vadd.f32 %v587, %v1244
        %v1619 = vadd.f32 %v588, %v1244
        %v1620 = vadd.f32 %v589, %v1244
        %v1621 = vadd.f32 %v590, %v1244
        %v1622 = vadd.f32 %v591, %v1244
        %v1623 = vadd.f32 %v592, %v1244
        %v1624 = vadd.f32 %v593, %v1244
        %v1625 = vadd.f32 %v594, %v1244
        %v1626 = vadd.f32 %v595, %v1244
        %v1627 = vadd.f32 %v596, %v1244
        %v1628 = vadd.f32 %v597, %v1244
        %v1629 = vadd.f32 %v598, %v1244
        %v1630 = vadd.f32 %v599, %v1244
        %v1631 = vadd.f32 %v600, %v1244
        %v1632 = vadd.f32 %v601, %v1244
        %v1633 = vadd.f32 %v602, %v1244
        %v1634 = vadd.f32 %v603, %v1244
        %v1635 = vadd.f32 %v604, %v1244
        %v1636 = vadd.f32 %v605, %v1244
        %v1637 = vadd.f32 %v606, %v1244
        %v1638 = vadd.f32 %v607, %v1244
        %v1639 = vadd.f32 %v608, %v1244
        %v1640 = vadd.f32 %v609, %v1244
        %v1641 = vadd.f32 %v610, %v1244
        %v1642 = vadd.f32 %v611, %v1244
        %v1643 = vadd.f32 %v612, %v1244
        %v1644 = vadd.f32 %v613, %v1244
        %v1645 = vadd.f32 %v614, %v1244
        %v1646 = vadd.f32 %v615, %v1244
        %v1647 = vadd.f32 %v616, %v1244
        %v1648 = vadd.f32 %v617, %v1244
        %v1649 = vadd.f32 %v618, %v1244
        %v1650 = vadd.f32 %v619, %v1244
        %v1651 = vadd.f32 %v620, %v1244
        %v1652 = vadd.f32 %v621, %v1244
        %v1653 = vadd.f32 %v622, %v1244
        %v1654 = vadd.f32 %v623, %v1244
        %v1655 = vadd.f32 %v624, %v1244
        %v1656 = vadd.f32 %v625, %v1244
        %v1657 = vadd.f32 %v626, %v1244
        %v1658 = vadd.f32 %v627, %v1244
        %v1659 = vadd.f32 %v628, %v1244
        %v1660 = vadd.f32 %v629, %v1244
        %v1661 = vadd.f32 %v630, %v1244
        %v1662 = vadd.f32 %v631, %v1244
        %v1663 = vadd.f32 %v632, %v1244
        %v1664 = vadd.f32 %v633, %v1244
        %v1665 = vadd.f32 %v634, %v1244
        %v1666 = vadd.f32 %v635, %v1244
        %v1667 = vadd.f32 %v636, %v1244
        %v1668 = vadd.f32 %v637, %v1244
        %v1669 = vadd.f32 %v638, %v1244
        %v1670 = vadd.f32 %v639, %v1244
        %v1671 = vadd.f32 %v640, %v1244
        %v1672 = vadd.f32 %v641, %v1244
        %v1673 = vadd.f32 %v642, %v1244
        %v1674 = vadd.f32 %v643, %v1244
        %v1675 = vadd.f32 %v644, %v1244
        %v1676 = vadd.f32 %v645, %v1244
        %v1677 = vadd.f32 %v646, %v1244
        %v1678 = vadd.f32 %v647, %v1244
        %v1679 = vadd.f32 %v648, %v1244
        %v1680 = vadd.f32 %v649, %v1244
        %v1681 = vadd.f32 %v650, %v1244
        %v1682 = vadd.f32 %v651, %v1244
        %v1683 = vadd.f32 %v652, %v1244
        %v1684 = vadd.f32 %v653, %v1244
        %v1685 = vadd.f32 %v654, %v1244
        %v1686 = vadd.f32 %v655, %v1244
        %v1687 = vadd.f32 %v656, %v1244
        %v1688 = vadd.f32 %v657, %v1244
        %v1689 = vadd.f32 %v658, %v1244
        %v1690 = vadd.f32 %v659, %v1244
        %v1691 = vadd.f32 %v660, %v1244
        %v1692 = vadd.f32 %v661, %v1244
        %v1693 = vadd.f32 %v662, %v1244
        %v1694 = vadd.f32 %v663, %v1244
        %v1695 = vadd.f32 %v664, %v1244
        %v1696 = vadd.f32 %v665, %v1244
        %v1697 = vadd.f32 %v666, %v1244
        %v1698 = vadd.f32 %v667, %v1244
        %v1699 = vadd.f32 %v668, %v1244
        %v1700 = vadd.f32 %v669, %v1244
        %v1701 = vadd.f32 %v670, %v1244
        %v1702 = vadd.f32 %v671, %v1244
        %v1703 = vadd.f32 %v672, %v1244
        %v1704 = vadd.f32 %v673, %v1244
        %v1705 = vadd.f32 %v674, %v1244
        %v1706 = vadd.f32 %v675, %v1244
        %v1707 = vadd.f32 %v676, %v1244
        %v1708 = vadd.f32 %v677, %v1244
        %v1709 = vadd.f32 %v678, %v1244
        %v1710 = vadd.f32 %v679, %v1244
        %v1711 = vadd.f32 %v680, %v1244
        %v1712 = vadd.f32 %v681, %v1244
        %v1713 = vadd.f32 %v682, %v1244
        %v1714 = vadd.f32 %v683, %v1244
        %v1715 = vadd.f32 %v684, %v1244
        %v1716 = vadd.f32 %v685, %v1244
        %v1717 = vadd.f32 %v686, %v1244
        %v1718 = vadd.f32 %v687, %v1244
        %v1719 = vadd.f32 %v688, %v1244
        %v1720 = vadd.f32 %v689, %v1244
        %v1721 = vadd.f32 %v690, %v1244
        %v1722 = vadd.f32 %v691, %v1244
        %v1723 = vadd.f32 %v692, %v1244
        %v1724 = vadd.f32 %v693, %v1244
        %v1725 = vadd.f32 %v694, %v1244
        %v1726 = vadd.f32 %v695, %v1244
        %v1727 = vadd.f32 %v696, %v1244
        %v1728 = vadd.f32 %v697, %v1244
        %v1729 = vadd.f32 %v698, %v1244
        %v1730 = vadd.f32 %v699, %v1244
        %v1731 = vadd.f32 %v700, %v1244
        %v1732 = vadd.f32 %v701, %v1244
        %v1733 = vadd.f32 %v702, %v1244
        %v1734 = vadd.f32 %v703, %v1244
        %v1735 = vadd.f32 %v704, %v1244
        %v1736 = vadd.f32 %v705, %v1244
        %v1737 = vadd.f32 %v706, %v1244
        %v1738 = vadd.f32 %v707, %v1244
        %v1739 = vadd.f32 %v708, %v1244
        %v1740 = vadd.f32 %v709, %v1244
        %v1741 = vadd.f32 %v710, %v1244
        %v1742 = vadd.f32 %v711, %v1244
        %v1743 = vadd.f32 %v712, %v1244
        %v1744 = vadd.f32 %v713, %v1244
        %v1745 = vadd.f32 %v714, %v1244
        %v1746 = vadd.f32 %v715, %v1244
        %v1747 = vadd.f32 %v716, %v1244
        %v1748 = vadd.f32 %v717, %v1244
        %v1749 = vadd.f32 %v718, %v1244
        %v1750 = vadd.f32 %v719, %v1244
        %v1751 = vadd.f32 %v720, %v1244
        %v1752 = vadd.f32 %v721, %v1244
        %v1753 = vadd.f32 %v722, %v1244
        %v1754 = vadd.f32 %v723, %v1244
        %v1755 = vadd.f32 %v724, %v1244
        %v1756 = vadd.f32 %v725, %v1244
        %v1757 = vadd.f32 %v726, %v1244
        %v1758 = vadd.f32 %v727, %v1244
        %v1759 = vadd.f32 %v728, %v1244
        %v1760 = vadd.f32 %v729, %v1244
        %v1761 = vadd.f32 %v730, %v1244
        %v1762 = vadd.f32 %v731, %v1244
        %v1763 = vadd.f32 %v732, %v1244
        %v1764 = vadd.f32 %v733, %v1244
        %v1765 = vadd.f32 %v734, %v1244
        %v1766 = vadd.f32 %v735, %v1244
        %v1767 = vadd.f32 %v736, %v1244
        %v1768 = vadd.f32 %v737, %v1244
        %v1769 = vadd.f32 %v738, %v1244
        %v1770 = vadd.f32 %v739, %v1244
        %v1771 = vadd.f32 %v740, %v1244
        %v1772 = vadd.f32 %v741, %v1244
        %v1773 = vadd.f32 %v742, %v1244
        %v1774 = vadd.f32 %v743, %v1244
        %v1775 = vadd.f32 %v744, %v1244
        %v1776 = vadd.f32 %v745, %v1244
        %v1777 = vadd.f32 %v746, %v1244
        %v1778 = vadd.f32 %v747, %v1244
        %v1779 = vadd.f32 %v748, %v1244
        %v1780 = vadd.f32 %v749, %v1244
        %v1781 = vadd.f32 %v750, %v1244
        %v1782 = vadd.f32 %v751, %v1244
        %v1783 = vadd.f32 %v752, %v1244
        %v1784 = vadd.f32 %v753, %v1244
        %v1785 = vadd.f32 %v754, %v1244
        %v1786 = vadd.f32 %v755, %v1244
        %v1787 = vadd.f32 %v756, %v1244
        %v1788 = vadd.f32 %v757, %v1244
        %v1789 = vadd.f32 %v758, %v1244
        %v1790 = vadd.f32 %v759, %v1244
        %v1791 = vadd.f32 %v760, %v1244
        %v1792 = vadd.f32 %v761, %v1244
        %v1793 = vadd.f32 %v762, %v1244
        %v1794 = vadd.f32 %v763, %v1244
        %v1795 = vadd.f32 %v764, %v1244
        %v1796 = vadd.f32 %v765, %v1244
        %v1797 = vadd.f32 %v766, %v1244
        %v1798 = vadd.f32 %v767, %v1244
        %v1799 = vadd.f32 %v768, %v1244
        %v1800 = vadd.f32 %v769, %v1244
        %v1801 = vadd.f32 %v770, %v1244
        %v1802 = vadd.f32 %v771, %v1244
        %v1803 = vadd.f32 %v772, %v1244
        %v1804 = vadd.f32 %v773, %v1244
        %v1805 = vadd.f32 %v774, %v1244
        %v1806 = vadd.f32 %v775, %v1244
        %v1807 = vadd.f32 %v776, %v1244
        %v1808 = vadd.f32 %v777, %v1244
        %v1809 = vadd.f32 %v778, %v1244
        %v1810 = vadd.f32 %v779, %v1244
        %v1811 = vadd.f32 %v780, %v1244
        %v1812 = vadd.f32 %v781, %v1244
        %v1813 = vadd.f32 %v782, %v1244
        %v1814 = vadd.f32 %v783, %v1244
        %v1815 = vadd.f32 %v784, %v1244
        %v1816 = vadd.f32 %v785, %v1244
        %v1817 = vadd.f32 %v786, %v1244
        %v1818 = vadd.f32 %v787, %v1244
        %v1819 = vadd.f32 %v788, %v1244
        %v1820 = vadd.f32 %v789, %v1244
        %v1821 = vadd.f32 %v790, %v1244
        %v1822 = vadd.f32 %v791, %v1244
        %v1823 = vadd.f32 %v792, %v1244
        %v1824 = vadd.f32 %v793, %v1244
        %v1825 = vadd.f32 %v794, %v1244
        %v1826 = vadd.f32 %v795, %v1244
        %v1827 = vadd.f32 %v796, %v1244
        %v1828 = vadd.f32 %v797, %v1244
        %v1829 = vadd.f32 %v798, %v1244
        %v1830 = vadd.f32 %v799, %v1244
        %v1831 = vadd.f32 %v800, %v1244
        %v1832 = vadd.f32 %v801, %v1244
        %v1833 = vadd.f32 %v802, %v1244
        %v1834 = vadd.f32 %v803, %v1244
        %v1835 = vadd.f32 %v804, %v1244
        %v1836 = vadd.f32 %v805, %v1244
        %v1837 = vadd.f32 %v806, %v1244
        %v1838 = vadd.f32 %v807, %v1244
        %v1839 = vadd.f32 %v808, %v1244
        %v1840 = vadd.f32 %v809, %v1244
        %v1841 = vadd.f32 %v810, %v1244
        %v1842 = vadd.f32 %v811, %v1244
        %v1843 = vadd.f32 %v812, %v1244
        %v1844 = vadd.f32 %v813, %v1244
        %v1845 = vadd.f32 %v814, %v1244
        %v1846 = vadd.f32 %v815, %v1244
        %v1847 = vadd.f32 %v816, %v1244
        %v1848 = vadd.f32 %v817, %v1244
        %v1849 = vadd.f32 %v818, %v1244
        %v1850 = vadd.f32 %v819, %v1244
        %v1851 = vadd.f32 %v820, %v1244
        %v1852 = vadd.f32 %v821, %v1244
        %v1853 = vadd.f32 %v822, %v1244
        %v1854 = vadd.f32 %v823, %v1244
        %v1855 = vadd.f32 %v824, %v1244
        %v1856 = vadd.f32 %v825, %v1244
        %v1857 = vadd.f32 %v826, %v1244
        %v1858 = vadd.f32 %v827, %v1244
        %v1859 = vadd.f32 %v828, %v1244
        %v1860 = vadd.f32 %v829, %v1244
        %v1861 = vadd.f32 %v830, %v1244
        %v1862 = vadd.f32 %v831, %v1244
        %v1863 = vadd.f32 %v832, %v1244
        %v1864 = vadd.f32 %v833, %v1244
        %v1865 = vadd.f32 %v834, %v1244
        %v1866 = vadd.f32 %v835, %v1244
        %v1867 = vadd.f32 %v836, %v1244
        %v1868 = vadd.f32 %v837, %v1244
        %v1869 = vadd.f32 %v838, %v1244
        %v1870 = vadd.f32 %v839, %v1244
        %v1871 = vadd.f32 %v840, %v1244
        %v1872 = vadd.f32 %v841, %v1244
        %v1873 = vadd.f32 %v842, %v1244
        %v1874 = vadd.f32 %v843, %v1244
        %v1875 = vadd.f32 %v844, %v1244
        %v1876 = vadd.f32 %v845, %v1244
        %v1877 = vadd.f32 %v846, %v1244
        %v1878 = vadd.f32 %v847, %v1244
        %v1879 = vadd.f32 %v848, %v1244
        %v1880 = vadd.f32 %v849, %v1244
        %v1881 = vadd.f32 %v850, %v1244
        %v1882 = vadd.f32 %v851, %v1244
        %v1883 = vadd.f32 %v852, %v1244
        %v1884 = vadd.f32 %v853, %v1244
        %v1885 = vadd.f32 %v854, %v1244
        %v1886 = vadd.f32 %v855, %v1244
        %v1887 = vadd.f32 %v856, %v1244
        %v1888 = vadd.f32 %v857, %v1244
        %v1889 = vadd.f32 %v858, %v1244
        %v1890 = vadd.f32 %v859, %v1244
        %v1891 = vadd.f32 %v860, %v1244
        %v1892 = vadd.f32 %v861, %v1244
        %v1893 = vadd.f32 %v862, %v1244
        %v1894 = vadd.f32 %v863, %v1244
        %v1895 = vadd.f32 %v864, %v1244
        %v1896 = vadd.f32 %v865, %v1244
        %v1897 = vadd.f32 %v866, %v1244
        %v1898 = vadd.f32 %v867, %v1244
        %v1899 = vadd.f32 %v868, %v1244
        %v1900 = vadd.f32 %v869, %v1244
        %v1901 = vadd.f32 %v870, %v1244
        %v1902 = vadd.f32 %v871, %v1244
        %v1903 = vadd.f32 %v872, %v1244
        %v1904 = vadd.f32 %v873, %v1244
        %v1905 = vadd.f32 %v874, %v1244
        %v1906 = vadd.f32 %v875, %v1244
        %v1907 = vadd.f32 %v876, %v1244
        %v1908 = vadd.f32 %v877, %v1244
        %v1909 = vadd.f32 %v878, %v1244
        %v1910 = vadd.f32 %v879, %v1244
        %v1911 = vadd.f32 %v880, %v1244
        %v1912 = vadd.f32 %v881, %v1244
        %v1913 = vadd.f32 %v882, %v1244
        %v1914 = vadd.f32 %v883, %v1244
        %v1915 = vadd.f32 %v884, %v1244
        %v1916 = vadd.f32 %v885, %v1244
        %v1917 = vadd.f32 %v886, %v1244
        %v1918 = vadd.f32 %v887, %v1244
        %v1919 = vadd.f32 %v888, %v1244
        %v1920 = vadd.f32 %v889, %v1244
        %v1921 = vadd.f32 %v890, %v1244
        %v1922 = vadd.f32 %v891, %v1244
        %v1923 = vadd.f32 %v892, %v1244
        %v1924 = vadd.f32 %v893, %v1244
        %v1925 = vadd.f32 %v894, %v1244
        %v1926 = vadd.f32 %v895, %v1244
        %v1927 = vadd.f32 %v896, %v1244
        %v1928 = vadd.f32 %v897, %v1244
        %v1929 = vadd.f32 %v898, %v1244
        %v1930 = vadd.f32 %v899, %v1244
        %v1931 = vadd.f32 %v900, %v1244
        %v1932 = vadd.f32 %v901, %v1244
        %v1933 = vadd.f32 %v902, %v1244
        %v1934 = vadd.f32 %v903, %v1244
        %v1935 = vadd.f32 %v904, %v1244
        %v1936 = vadd.f32 %v905, %v1244
        %v1937 = vadd.f32 %v906, %v1244
        %v1938 = vadd.f32 %v907, %v1244
        %v1939 = vadd.f32 %v908, %v1244
        %v1940 = vadd.f32 %v909, %v1244
        %v1941 = vadd.f32 %v910, %v1244
        %v1942 = vadd.f32 %v911, %v1244
        %v1943 = vadd.f32 %v912, %v1244
        %v1944 = vadd.f32 %v913, %v1244
        %v1945 = vadd.f32 %v914, %v1244
        %v1946 = vadd.f32 %v915, %v1244
        %v1947 = vadd.f32 %v916, %v1244
        %v1948 = vadd.f32 %v917, %v1244
        %v1949 = vadd.f32 %v918, %v1244
        %v1950 = vadd.f32 %v919, %v1244
        %v1951 = vadd.f32 %v920, %v1244
        %v1952 = vadd.f32 %v921, %v1244
        %v1953 = vadd.f32 %v922, %v1244
        %v1954 = vadd.f32 %v923, %v1244
        %v1955 = vadd.f32 %v924, %v1244
        %v1956 = vadd.f32 %v925, %v1244
        %v1957 = vadd.f32 %v926, %v1244
        %v1958 = vadd.f32 %v927, %v1244
        %v1959 = vadd.f32 %v928, %v1244
        %v1960 = vadd.f32 %v929, %v1244
        %v1961 = vadd.f32 %v930, %v1244
        %v1962 = vadd.f32 %v931, %v1244
        %v1963 = vadd.f32 %v932, %v1244
        %v1964 = vadd.f32 %v933, %v1244
        %v1965 = vadd.f32 %v934, %v1244
        %v1966 = vadd.f32 %v935, %v1244
        %v1967 = vadd.f32 %v936, %v1244
        %v1968 = vadd.f32 %v937, %v1244
        %v1969 = vadd.f32 %v938, %v1244
        %v1970 = vadd.f32 %v939, %v1244
        %v1971 = vadd.f32 %v940, %v1244
        %v1972 = vadd.f32 %v941, %v1244
        %v1973 = vadd.f32 %v942, %v1244
        %v1974 = vadd.f32 %v943, %v1244
        %v1975 = vadd.f32 %v944, %v1244
        %v1976 = vadd.f32 %v945, %v1244
        %v1977 = vadd.f32 %v946, %v1244
        %v1978 = vadd.f32 %v947, %v1244
        %v1979 = vadd.f32 %v948, %v1244
        %v1980 = vadd.f32 %v949, %v1244
        %v1981 = vadd.f32 %v950, %v1244
        %v1982 = vadd.f32 %v951, %v1244
        %v1983 = vadd.f32 %v952, %v1244
        %v1984 = vadd.f32 %v953, %v1244
        %v1985 = vadd.f32 %v954, %v1244
        %v1986 = vadd.f32 %v955, %v1244
        %v1987 = vadd.f32 %v956, %v1244
        %v1988 = vadd.f32 %v957, %v1244
        %v1989 = vadd.f32 %v958, %v1244
        %v1990 = vadd.f32 %v959, %v1244
        %v1991 = vadd.f32 %v960, %v1244
        %v1992 = vadd.f32 %v961, %v1244
        %v1993 = vadd.f32 %v962, %v1244
        %v1994 = vadd.f32 %v963, %v1244
        %v1995 = vadd.f32 %v964, %v1244
        %v1996 = vadd.f32 %v965, %v1244
        %v1997 = vadd.f32 %v966, %v1244
        %v1998 = vadd.f32 %v967, %v1244
        %v1999 = vadd.f32 %v968, %v1244
        %v2000 = vadd.f32 %v969, %v1244
        %v2001 = vadd.f32 %v970, %v1244
        %v2002 = vadd.f32 %v971, %v1244
        %v2003 = vadd.f32 %v972, %v1244
        %v2004 = vadd.f32 %v973, %v1244
        %v2005 = vadd.f32 %v974, %v1244
        %v2006 = vadd.f32 %v975, %v1244
        %v2007 = vadd.f32 %v976, %v1244
        %v2008 = vadd.f32 %v977, %v1244
        %v2009 = vadd.f32 %v978, %v1244
        %v2010 = vadd.f32 %v979, %v1244
        %v2011 = vadd.f32 %v980, %v1244
        %v2012 = vadd.f32 %v981, %v1244
        %v2013 = vadd.f32 %v982, %v1244
        %v2014 = vadd.f32 %v983, %v1244
        %v2015 = vadd.f32 %v984, %v1244
        %v2016 = vadd.f32 %v985, %v1244
        %v2017 = vadd.f32 %v986, %v1244
        %v2018 = vadd.f32 %v987, %v1244
        %v2019 = vadd.f32 %v988, %v1244
        %v2020 = vadd.f32 %v989, %v1244
        %v2021 = vadd.f32 %v990, %v1244
        %v2022 = vadd.f32 %v991, %v1244
        %v2023 = vadd.f32 %v992, %v1244
        %v2024 = vadd.f32 %v993, %v1244
        %v2025 = vadd.f32 %v994, %v1244
        %v2026 = vadd.f32 %v995, %v1244
        %v2027 = vadd.f32 %v996, %v1244
        %v2028 = vadd.f32 %v997, %v1244
        %v2029 = vadd.f32 %v998, %v1244
        %v2030 = vadd.f32 %v999, %v1244
        %v2031 = vadd.f32 %v1000, %v1244
        %v2032 = vadd.f32 %v1001, %v1244
        %v2033 = vadd.f32 %v1002, %v1244
        %v2034 = vadd.f32 %v1003, %v1244
        %v2035 = vadd.f32 %v1004, %v1244
        %v2036 = vadd.f32 %v1005, %v1244
        %v2037 = vadd.f32 %v1006, %v1244
        %v2038 = vadd.f32 %v1007, %v1244
        %v2039 = vadd.f32 %v1008, %v1244
        %v2040 = vadd.f32 %v1009, %v1244
        %v2041 = vadd.f32 %v1010, %v1244
        %v2042 = vadd.f32 %v1011, %v1244
        %v2043 = vadd.f32 %v1012, %v1244
        %v2044 = vadd.f32 %v1013, %v1244
        %v2045 = vadd.f32 %v1014, %v1244
        %v2046 = vadd.f32 %v1015, %v1244
        %v2047 = vadd.f32 %v1016, %v1244
        %v2048 = vadd.f32 %v1017, %v1244
        %v2049 = vadd.f32 %v1018, %v1244
        %v2050 = vadd.f32 %v1019, %v1244
        %v2051 = vadd.f32 %v1020, %v1244
        %v2052 = vadd.f32 %v1021, %v1244
        %v2053 = vadd.f32 %v1022, %v1244
        %v2054 = vadd.f32 %v1023, %v1244
        %v2055 = vadd.f32 %v1024, %v1244
        %v2056 = vadd.f32 %v1025, %v1244
        %v2057 = vadd.f32 %v1026, %v1244
        %v2058 = vadd.f32 %v1027, %v1244
        %v2059 = vadd.f32 %v1028, %v1244
        %v2060 = vadd.f32 %v1029, %v1244
        %v2061 = vadd.f32 %v1030, %v1244
        %v2062 = vadd.f32 %v1031, %v1244
        %v2063 = vadd.f32 %v1032, %v1244
        %v2064 = vadd.f32 %v1033, %v1244
        %v2065 = vadd.f32 %v1034, %v1244
        %v2066 = vadd.f32 %v1035, %v1244
        %v2067 = vadd.f32 %v1036, %v1244
        %v2068 = vadd.f32 %v1037, %v1244
        %v2069 = vadd.f32 %v1038, %v1244
        %v2070 = vadd.f32 %v1039, %v1244
        %v2071 = vadd.f32 %v1040, %v1244
        %v2072 = vadd.f32 %v1041, %v1244
        %v2073 = vadd.f32 %v1042, %v1244
        %v2074 = vadd.f32 %v1043, %v1244
        %v2075 = vadd.f32 %v1044, %v1244
        %v2076 = vadd.f32 %v1045, %v1244
        %v2077 = vadd.f32 %v1046, %v1244
        %v2078 = vadd.f32 %v1047, %v1244
        %v2079 = vadd.f32 %v1048, %v1244
        %v2080 = vadd.f32 %v1049, %v1244
        %v2081 = vadd.f32 %v1050, %v1244
        %v2082 = vadd.f32 %v1051, %v1244
        %v2083 = vadd.f32 %v1052, %v1244
        %v2084 = vadd.f32 %v1053, %v1244
        %v2085 = vadd.f32 %v1054, %v1244
        %v2086 = vadd.f32 %v1055, %v1244
        %v2087 = vadd.f32 %v1056, %v1244
        %v2088 = vadd.f32 %v1057, %v1244
        %v2089 = vadd.f32 %v1058, %v1244
        %v2090 = vadd.f32 %v1059, %v1244
        %v2091 = vadd.f32 %v1060, %v1244
        %v2092 = vadd.f32 %v1061, %v1244
        %v2093 = vadd.f32 %v1062, %v1244
        %v2094 = vadd.f32 %v1063, %v1244
        %v2095 = vadd.f32 %v1064, %v1244
        %v2096 = vadd.f32 %v1065, %v1244
        %v2097 = vadd.f32 %v1066, %v1244
        %v2098 = vadd.f32 %v1067, %v1244
        %v2099 = vadd.f32 %v1068, %v1244
        %v2100 = vadd.f32 %v1069, %v1244
        %v2101 = vadd.f32 %v1070, %v1244
        %v2102 = vadd.f32 %v1071, %v1244
        %v2103 = vadd.f32 %v1072, %v1244
        %v2104 = vadd.f32 %v1073, %v1244
        %v2105 = vadd.f32 %v1074, %v1244
        %v2106 = vadd.f32 %v1075, %v1244
        %v2107 = vadd.f32 %v1076, %v1244
        %v2108 = vadd.f32 %v1077, %v1244
        %v2109 = vadd.f32 %v1078, %v1244
        %v2110 = vadd.f32 %v1079, %v1244
        %v2111 = vadd.f32 %v1080, %v1244
        %v2112 = vadd.f32 %v1081, %v1244
        %v2113 = vadd.f32 %v1082, %v1244
        %v2114 = vadd.f32 %v1083, %v1244
        %v2115 = vadd.f32 %v1084, %v1244
        %v2116 = vadd.f32 %v1085, %v1244
        %v2117 = vadd.f32 %v1086, %v1244
        %v2118 = vadd.f32 %v1087, %v1244
        %v2119 = vadd.f32 %v1088, %v1244
        %v2120 = vadd.f32 %v1089, %v1244
        %v2121 = vadd.f32 %v1090, %v1244
        %v2122 = vadd.f32 %v1091, %v1244
        %v2123 = vadd.f32 %v1092, %v1244
        %v2124 = vadd.f32 %v1093, %v1244
        %v2125 = vadd.f32 %v1094, %v1244
        %v2126 = vadd.f32 %v1095, %v1244
        %v2127 = vadd.f32 %v1096, %v1244
        %v2128 = vadd.f32 %v1097, %v1244
        %v2129 = vadd.f32 %v1098, %v1244
        %v2130 = vadd.f32 %v1099, %v1244
        %v2131 = vadd.f32 %v1100, %v1244
        %v2132 = vadd.f32 %v1101, %v1244
        %v2133 = vadd.f32 %v1102, %v1244
        %v2134 = vadd.f32 %v1103, %v1244
        %v2135 = vadd.f32 %v1104, %v1244
        %v2136 = vadd.f32 %v1105, %v1244
        %v2137 = vadd.f32 %v1106, %v1244
        %v2138 = vadd.f32 %v1107, %v1244
        %v2139 = vadd.f32 %v1108, %v1244
        %v2140 = vadd.f32 %v1109, %v1244
        %v2141 = vadd.f32 %v1110, %v1244
        %v2142 = vadd.f32 %v1111, %v1244
        %v2143 = vadd.f32 %v1112, %v1244
        %v2144 = vadd.f32 %v1113, %v1244
        %v2145 = vadd.f32 %v1114, %v1244
        %v2146 = vadd.f32 %v1115, %v1244
        %v2147 = vadd.f32 %v1116, %v1244
        %v2148 = vadd.f32 %v1117, %v1244
        %v2149 = vadd.f32 %v1118, %v1244
        %v2150 = vadd.f32 %v1119, %v1244
        %v2151 = vadd.f32 %v1120, %v1244
        %v2152 = vadd.f32 %v1121, %v1244
        %v2153 = vadd.f32 %v1122, %v1244
        %v2154 = vadd.f32 %v1123, %v1244
        %v2155 = vadd.f32 %v1124, %v1244
        %v2156 = vadd.f32 %v1125, %v1244
        %v2157 = vadd.f32 %v1126, %v1244
        %v2158 = vadd.f32 %v1127, %v1244
        %v2159 = vadd.f32 %v1128, %v1244
        %v2160 = vadd.f32 %v1129, %v1244
        %v2161 = vadd.f32 %v1130, %v1244
        %v2162 = vadd.f32 %v1131, %v1244
        %v2163 = vadd.f32 %v1132, %v1244
        %v2164 = vadd.f32 %v1133, %v1244
        %v2165 = vadd.f32 %v1134, %v1244
        %v2166 = vadd.f32 %v1135, %v1244
        %v2167 = vadd.f32 %v1136, %v1244
        %v2168 = vadd.f32 %v1137, %v1244
        %v2169 = vadd.f32 %v1138, %v1244
        %v2170 = vadd.f32 %v1139, %v1244
        %v2171 = vadd.f32 %v1140, %v1244
        %v2172 = vadd.f32 %v1141, %v1244
        %v2173 = vadd.f32 %v1142, %v1244
        %v2174 = vadd.f32 %v1143, %v1244
        %v2175 = vadd.f32 %v1144, %v1244
        %v2176 = vadd.f32 %v1145, %v1244
        %v2177 = vadd.f32 %v1146, %v1244
        %v2178 = vadd.f32 %v1147, %v1244
        %v2179 = vadd.f32 %v1148, %v1244
        %v2180 = vadd.f32 %v1149, %v1244
        %v2181 = vadd.f32 %v1150, %v1244
        %v2182 = vadd.f32 %v1151, %v1244
        %v2183 = vadd.f32 %v1152, %v1244
        %v2184 = vadd.f32 %v1153, %v1244
        %v2185 = vadd.f32 %v1154, %v1244
        %v2186 = vadd.f32 %v1155, %v1244
        %v2187 = vadd.f32 %v1156, %v1244
        %v2188 = vadd.f32 %v1157, %v1244
        %v2189 = vadd.f32 %v1158, %v1244
        %v2190 = vadd.f32 %v1159, %v1244
        %v2191 = vadd.f32 %v1160, %v1244
        %v2192 = vadd.f32 %v1161, %v1244
        %v2193 = vadd.f32 %v1162, %v1244
        %v2194 = vadd.f32 %v1163, %v1244
        %v2195 = vadd.f32 %v1164, %v1244
        %v2196 = vadd.f32 %v1165, %v1244
        %v2197 = vadd.f32 %v1166, %v1244
        %v2198 = vadd.f32 %v1167, %v1244
        %v2199 = vadd.f32 %v1168, %v1244
        %v2200 = vadd.f32 %v1169, %v1244
        %v2201 = vadd.f32 %v1170, %v1244
        %v2202 = vadd.f32 %v1171, %v1244
        %v2203 = vadd.f32 %v1172, %v1244
        %v2204 = vadd.f32 %v1173, %v1244
        %v2205 = vadd.f32 %v1174, %v1244
        %v2206 = vadd.f32 %v1175, %v1244
        %v2207 = vadd.f32 %v1176, %v1244
        %v2208 = vadd.f32 %v1177, %v1244
        %v2209 = vadd.f32 %v1178, %v1244
        %v2210 = vadd.f32 %v1179, %v1244
        %v2211 = vadd.f32 %v1180, %v1244
        %v2212 = vadd.f32 %v1181, %v1244
        %v2213 = vadd.f32 %v1182, %v1244
        %v2214 = vadd.f32 %v1183, %v1244
        %v2215 = vadd.f32 %v1184, %v1244
        %v2216 = vadd.f32 %v1185, %v1244
        %v2217 = vadd.f32 %v1186, %v1244
        %v2218 = vadd.f32 %v1187, %v1244
        %v2219 = vadd.f32 %v1188, %v1244
        %v2220 = vadd.f32 %v1189, %v1244
        %v2221 = vadd.f32 %v1190, %v1244
        %v2222 = vadd.f32 %v1191, %v1244
        %v2223 = vadd.f32 %v1192, %v1244
        %v2224 = vadd.f32 %v1193, %v1244
        %v2225 = vadd.f32 %v1194, %v1244
        %v2226 = vadd.f32 %v1195, %v1244
        %v2227 = vadd.f32 %v1196, %v1244
        %v2228 = vadd.f32 %v1197, %v1244
        %v2229 = vadd.f32 %v1198, %v1244
        %v2230 = vadd.f32 %v1199, %v1244
        %v2231 = vadd.f32 %v1200, %v1244
        %v2232 = vadd.f32 %v1201, %v1244
        %v2233 = vadd.f32 %v1202, %v1244
        %v2234 = vadd.f32 %v1203, %v1244
        %v2235 = vadd.f32 %v1204, %v1244
        %v2236 = vadd.f32 %v1205, %v1244
        %v2237 = vadd.f32 %v1206, %v1244
        %v2238 = vadd.f32 %v1207, %v1244
        %v2239 = vadd.f32 %v1208, %v1244
        %v2240 = vadd.f32 %v1209, %v1244
        %v2241 = vadd.f32 %v1210, %v1244
        %v2242 = vadd.f32 %v1211, %v1244
        %v2243 = vadd.f32 %v1212, %v1244
        %v2244 = vadd.f32 %v1213, %v1244
        %v2245 = vadd.f32 %v1214, %v1244
        %v2246 = vadd.f32 %v1215, %v1244
        %v2247 = vadd.f32 %v1216, %v1244
        %v2248 = vadd.f32 %v1217, %v1244
        %v2249 = vadd.f32 %v1218, %v1244
        %v2250 = vadd.f32 %v1219, %v1244
        %v2251 = vadd.f32 %v1220, %v1244
        %v2252 = vadd.f32 %v1221, %v1244
        %v2253 = vadd.f32 %v1222, %v1244
        %v2254 = vadd.f32 %v1223, %v1244
        %v2255 = vadd.f32 %v1224, %v1244
        %v2256 = vadd.f32 %v1225, %v1244
        %v2257 = vadd.f32 %v1226, %v1244
        %v2258 = vadd.f32 %v1227, %v1244
        %v2259 = vadd.f32 %v1228, %v1244
        %v2260 = vadd.f32 %v1229, %v1244
        %v2261 = vadd.f32 %v1230, %v1244
        %v2262 = vadd.f32 %v1231, %v1244
        %v2263 = vadd.f32 %v1232, %v1244
        %v2264 = vadd.f32 %v1233, %v1244
        %v2265 = vadd.f32 %v1234, %v1244
        %v2266 = vadd.f32 %v1235, %v1244
        %v2267 = vadd.f32 %v1236, %v1244
        %v2268 = vadd.f32 %v1237, %v1244
        %v2269 = vadd.f32 %v1238, %v1244
        %2270 = vst [vmem:[%s204] sm:$0xff] %v1246
        %2271 = vst [vmem:[%s204 + $0x8] sm:$0xff] %v1247
        %2272 = vst [vmem:[%s204 + $0x10] sm:$0xff] %v1248
        %2273 = vst [vmem:[%s204 + $0x18] sm:$0xff] %v1249
        %2274 = vst [vmem:[%s204 + $0x20] sm:$0xff] %v1250
        %2275 = vst [vmem:[%s204 + $0x28] sm:$0xff] %v1251
        %2276 = vst [vmem:[%s204 + $0x30] sm:$0xff] %v1252
        %2277 = vst [vmem:[%s204 + $0x38] sm:$0xff] %v1253
        %2278 = vst [vmem:[%s204 + $0x40] sm:$0xff] %v1254
        %2279 = vst [vmem:[%s204 + $0x48] sm:$0xff] %v1255
        %2280 = vst [vmem:[%s204 + $0x50] sm:$0xff] %v1256
        %2281 = vst [vmem:[%s204 + $0x58] sm:$0xff] %v1257
        %2282 = vst [vmem:[%s204 + $0x60] sm:$0xff] %v1258
        %2283 = vst [vmem:[%s204 + $0x68] sm:$0xff] %v1259
        %2284 = vst [vmem:[%s204 + $0x70] sm:$0xff] %v1260
        %2285 = vst [vmem:[%s204 + $0x78] sm:$0xff] %v1261
        %2286 = vst [vmem:[%s204 + $0x80] sm:$0xff] %v1262
        %2287 = vst [vmem:[%s204 + $0x88] sm:$0xff] %v1263
        %2288 = vst [vmem:[%s204 + $0x90] sm:$0xff] %v1264
        %2289 = vst [vmem:[%s204 + $0x98] sm:$0xff] %v1265
        %2290 = vst [vmem:[%s204 + $0xa0] sm:$0xff] %v1266
        %2291 = vst [vmem:[%s204 + $0xa8] sm:$0xff] %v1267
        %2292 = vst [vmem:[%s204 + $0xb0] sm:$0xff] %v1268
        %2293 = vst [vmem:[%s204 + $0xb8] sm:$0xff] %v1269
        %2294 = vst [vmem:[%s204 + $0xc0] sm:$0xff] %v1270
        %2295 = vst [vmem:[%s204 + $0xc8] sm:$0xff] %v1271
        %2296 = vst [vmem:[%s204 + $0xd0] sm:$0xff] %v1272
        %2297 = vst [vmem:[%s204 + $0xd8] sm:$0xff] %v1273
        %2298 = vst [vmem:[%s204 + $0xe0] sm:$0xff] %v1274
        %2299 = vst [vmem:[%s204 + $0xe8] sm:$0xff] %v1275
        %2300 = vst [vmem:[%s204 + $0xf0] sm:$0xff] %v1276
        %2301 = vst [vmem:[%s204 + $0xf8] sm:$0xff] %v1277
        %2302 = vst [vmem:[%s204 + $0x100] sm:$0xff] %v1278
        %2303 = vst [vmem:[%s204 + $0x108] sm:$0xff] %v1279
        %2304 = vst [vmem:[%s204 + $0x110] sm:$0xff] %v1280
        %2305 = vst [vmem:[%s204 + $0x118] sm:$0xff] %v1281
        %2306 = vst [vmem:[%s204 + $0x120] sm:$0xff] %v1282
        %2307 = vst [vmem:[%s204 + $0x128] sm:$0xff] %v1283
        %2308 = vst [vmem:[%s204 + $0x130] sm:$0xff] %v1284
        %2309 = vst [vmem:[%s204 + $0x138] sm:$0xff] %v1285
        %2310 = vst [vmem:[%s204 + $0x140] sm:$0xff] %v1286
        %2311 = vst [vmem:[%s204 + $0x148] sm:$0xff] %v1287
        %2312 = vst [vmem:[%s204 + $0x150] sm:$0xff] %v1288
        %2313 = vst [vmem:[%s204 + $0x158] sm:$0xff] %v1289
        %2314 = vst [vmem:[%s204 + $0x160] sm:$0xff] %v1290
        %2315 = vst [vmem:[%s204 + $0x168] sm:$0xff] %v1291
        %2316 = vst [vmem:[%s204 + $0x170] sm:$0xff] %v1292
        %2317 = vst [vmem:[%s204 + $0x178] sm:$0xff] %v1293
        %2318 = vst [vmem:[%s204 + $0x180] sm:$0xff] %v1294
        %2319 = vst [vmem:[%s204 + $0x188] sm:$0xff] %v1295
        %2320 = vst [vmem:[%s204 + $0x190] sm:$0xff] %v1296
        %2321 = vst [vmem:[%s204 + $0x198] sm:$0xff] %v1297
        %2322 = vst [vmem:[%s204 + $0x1a0] sm:$0xff] %v1298
        %2323 = vst [vmem:[%s204 + $0x1a8] sm:$0xff] %v1299
        %2324 = vst [vmem:[%s204 + $0x1b0] sm:$0xff] %v1300
        %2325 = vst [vmem:[%s204 + $0x1b8] sm:$0xff] %v1301
        %2326 = vst [vmem:[%s204 + $0x1c0] sm:$0xff] %v1302
        %2327 = vst [vmem:[%s204 + $0x1c8] sm:$0xff] %v1303
        %2328 = vst [vmem:[%s204 + $0x1d0] sm:$0xff] %v1304
        %2329 = vst [vmem:[%s204 + $0x1d8] sm:$0xff] %v1305
        %2330 = vst [vmem:[%s204 + $0x1e0] sm:$0xff] %v1306
        %2331 = vst [vmem:[%s204 + $0x1e8] sm:$0xff] %v1307
        %2332 = vst [vmem:[%s204 + $0x1f0] sm:$0xff] %v1308
        %2333 = vst [vmem:[%s204 + $0x1f8] sm:$0xff] %v1309
        %2334 = vst [vmem:[%s204 + $0x200] sm:$0xff] %v1310
        %2335 = vst [vmem:[%s204 + $0x208] sm:$0xff] %v1311
        %2336 = vst [vmem:[%s204 + $0x210] sm:$0xff] %v1312
        %2337 = vst [vmem:[%s204 + $0x218] sm:$0xff] %v1313
        %2338 = vst [vmem:[%s204 + $0x220] sm:$0xff] %v1314
        %2339 = vst [vmem:[%s204 + $0x228] sm:$0xff] %v1315
        %2340 = vst [vmem:[%s204 + $0x230] sm:$0xff] %v1316
        %2341 = vst [vmem:[%s204 + $0x238] sm:$0xff] %v1317
        %2342 = vst [vmem:[%s204 + $0x240] sm:$0xff] %v1318
        %2343 = vst [vmem:[%s204 + $0x248] sm:$0xff] %v1319
        %2344 = vst [vmem:[%s204 + $0x250] sm:$0xff] %v1320
        %2345 = vst [vmem:[%s204 + $0x258] sm:$0xff] %v1321
        %2346 = vst [vmem:[%s204 + $0x260] sm:$0xff] %v1322
        %2347 = vst [vmem:[%s204 + $0x268] sm:$0xff] %v1323
        %2348 = vst [vmem:[%s204 + $0x270] sm:$0xff] %v1324
        %2349 = vst [vmem:[%s204 + $0x278] sm:$0xff] %v1325
        %2350 = vst [vmem:[%s204 + $0x280] sm:$0xff] %v1326
        %2351 = vst [vmem:[%s204 + $0x288] sm:$0xff] %v1327
        %2352 = vst [vmem:[%s204 + $0x290] sm:$0xff] %v1328
        %2353 = vst [vmem:[%s204 + $0x298] sm:$0xff] %v1329
        %2354 = vst [vmem:[%s204 + $0x2a0] sm:$0xff] %v1330
        %2355 = vst [vmem:[%s204 + $0x2a8] sm:$0xff] %v1331
        %2356 = vst [vmem:[%s204 + $0x2b0] sm:$0xff] %v1332
        %2357 = vst [vmem:[%s204 + $0x2b8] sm:$0xff] %v1333
        %2358 = vst [vmem:[%s204 + $0x2c0] sm:$0xff] %v1334
        %2359 = vst [vmem:[%s204 + $0x2c8] sm:$0xff] %v1335
        %2360 = vst [vmem:[%s204 + $0x2d0] sm:$0xff] %v1336
        %2361 = vst [vmem:[%s204 + $0x2d8] sm:$0xff] %v1337
        %2362 = vst [vmem:[%s204 + $0x2e0] sm:$0xff] %v1338
        %2363 = vst [vmem:[%s204 + $0x2e8] sm:$0xff] %v1339
        %2364 = vst [vmem:[%s204 + $0x2f0] sm:$0xff] %v1340
        %2365 = vst [vmem:[%s204 + $0x2f8] sm:$0xff] %v1341
        %2366 = vst [vmem:[%s204 + $0x300] sm:$0xff] %v1342
        %2367 = vst [vmem:[%s204 + $0x308] sm:$0xff] %v1343
        %2368 = vst [vmem:[%s204 + $0x310] sm:$0xff] %v1344
        %2369 = vst [vmem:[%s204 + $0x318] sm:$0xff] %v1345
        %2370 = vst [vmem:[%s204 + $0x320] sm:$0xff] %v1346
        %2371 = vst [vmem:[%s204 + $0x328] sm:$0xff] %v1347
        %2372 = vst [vmem:[%s204 + $0x330] sm:$0xff] %v1348
        %2373 = vst [vmem:[%s204 + $0x338] sm:$0xff] %v1349
        %2374 = vst [vmem:[%s204 + $0x340] sm:$0xff] %v1350
        %2375 = vst [vmem:[%s204 + $0x348] sm:$0xff] %v1351
        %2376 = vst [vmem:[%s204 + $0x350] sm:$0xff] %v1352
        %2377 = vst [vmem:[%s204 + $0x358] sm:$0xff] %v1353
        %2378 = vst [vmem:[%s204 + $0x360] sm:$0xff] %v1354
        %2379 = vst [vmem:[%s204 + $0x368] sm:$0xff] %v1355
        %2380 = vst [vmem:[%s204 + $0x370] sm:$0xff] %v1356
        %2381 = vst [vmem:[%s204 + $0x378] sm:$0xff] %v1357
        %2382 = vst [vmem:[%s204 + $0x380] sm:$0xff] %v1358
        %2383 = vst [vmem:[%s204 + $0x388] sm:$0xff] %v1359
        %2384 = vst [vmem:[%s204 + $0x390] sm:$0xff] %v1360
        %2385 = vst [vmem:[%s204 + $0x398] sm:$0xff] %v1361
        %2386 = vst [vmem:[%s204 + $0x3a0] sm:$0xff] %v1362
        %2387 = vst [vmem:[%s204 + $0x3a8] sm:$0xff] %v1363
        %2388 = vst [vmem:[%s204 + $0x3b0] sm:$0xff] %v1364
        %2389 = vst [vmem:[%s204 + $0x3b8] sm:$0xff] %v1365
        %2390 = vst [vmem:[%s204 + $0x3c0] sm:$0xff] %v1366
        %2391 = vst [vmem:[%s204 + $0x3c8] sm:$0xff] %v1367
        %2392 = vst [vmem:[%s204 + $0x3d0] sm:$0xff] %v1368
        %2393 = vst [vmem:[%s204 + $0x3d8] sm:$0xff] %v1369
        %2394 = vst [vmem:[%s204 + $0x3e0] sm:$0xff] %v1370
        %2395 = vst [vmem:[%s204 + $0x3e8] sm:$0xff] %v1371
        %2396 = vst [vmem:[%s204 + $0x3f0] sm:$0xff] %v1372
        %2397 = vst [vmem:[%s204 + $0x3f8] sm:$0xff] %v1373
        %2398 = vst [vmem:[%s204 + $0x400] sm:$0xff] %v1374
        %2399 = vst [vmem:[%s204 + $0x408] sm:$0xff] %v1375
        %2400 = vst [vmem:[%s204 + $0x410] sm:$0xff] %v1376
        %2401 = vst [vmem:[%s204 + $0x418] sm:$0xff] %v1377
        %2402 = vst [vmem:[%s204 + $0x420] sm:$0xff] %v1378
        %2403 = vst [vmem:[%s204 + $0x428] sm:$0xff] %v1379
        %2404 = vst [vmem:[%s204 + $0x430] sm:$0xff] %v1380
        %2405 = vst [vmem:[%s204 + $0x438] sm:$0xff] %v1381
        %2406 = vst [vmem:[%s204 + $0x440] sm:$0xff] %v1382
        %2407 = vst [vmem:[%s204 + $0x448] sm:$0xff] %v1383
        %2408 = vst [vmem:[%s204 + $0x450] sm:$0xff] %v1384
        %2409 = vst [vmem:[%s204 + $0x458] sm:$0xff] %v1385
        %2410 = vst [vmem:[%s204 + $0x460] sm:$0xff] %v1386
        %2411 = vst [vmem:[%s204 + $0x468] sm:$0xff] %v1387
        %2412 = vst [vmem:[%s204 + $0x470] sm:$0xff] %v1388
        %2413 = vst [vmem:[%s204 + $0x478] sm:$0xff] %v1389
        %2414 = vst [vmem:[%s204 + $0x480] sm:$0xff] %v1390
        %2415 = vst [vmem:[%s204 + $0x488] sm:$0xff] %v1391
        %2416 = vst [vmem:[%s204 + $0x490] sm:$0xff] %v1392
        %2417 = vst [vmem:[%s204 + $0x498] sm:$0xff] %v1393
        %2418 = vst [vmem:[%s204 + $0x4a0] sm:$0xff] %v1394
        %2419 = vst [vmem:[%s204 + $0x4a8] sm:$0xff] %v1395
        %2420 = vst [vmem:[%s204 + $0x4b0] sm:$0xff] %v1396
        %2421 = vst [vmem:[%s204 + $0x4b8] sm:$0xff] %v1397
        %2422 = vst [vmem:[%s204 + $0x4c0] sm:$0xff] %v1398
        %2423 = vst [vmem:[%s204 + $0x4c8] sm:$0xff] %v1399
        %2424 = vst [vmem:[%s204 + $0x4d0] sm:$0xff] %v1400
        %2425 = vst [vmem:[%s204 + $0x4d8] sm:$0xff] %v1401
        %2426 = vst [vmem:[%s204 + $0x4e0] sm:$0xff] %v1402
        %2427 = vst [vmem:[%s204 + $0x4e8] sm:$0xff] %v1403
        %2428 = vst [vmem:[%s204 + $0x4f0] sm:$0xff] %v1404
        %2429 = vst [vmem:[%s204 + $0x4f8] sm:$0xff] %v1405
        %2430 = vst [vmem:[%s204 + $0x500] sm:$0xff] %v1406
        %2431 = vst [vmem:[%s204 + $0x508] sm:$0xff] %v1407
        %2432 = vst [vmem:[%s204 + $0x510] sm:$0xff] %v1408
        %2433 = vst [vmem:[%s204 + $0x518] sm:$0xff] %v1409
        %2434 = vst [vmem:[%s204 + $0x520] sm:$0xff] %v1410
        %2435 = vst [vmem:[%s204 + $0x528] sm:$0xff] %v1411
        %2436 = vst [vmem:[%s204 + $0x530] sm:$0xff] %v1412
        %2437 = vst [vmem:[%s204 + $0x538] sm:$0xff] %v1413
        %2438 = vst [vmem:[%s204 + $0x540] sm:$0xff] %v1414
        %2439 = vst [vmem:[%s204 + $0x548] sm:$0xff] %v1415
        %2440 = vst [vmem:[%s204 + $0x550] sm:$0xff] %v1416
        %2441 = vst [vmem:[%s204 + $0x558] sm:$0xff] %v1417
        %2442 = vst [vmem:[%s204 + $0x560] sm:$0xff] %v1418
        %2443 = vst [vmem:[%s204 + $0x568] sm:$0xff] %v1419
        %2444 = vst [vmem:[%s204 + $0x570] sm:$0xff] %v1420
        %2445 = vst [vmem:[%s204 + $0x578] sm:$0xff] %v1421
        %2446 = vst [vmem:[%s204 + $0x580] sm:$0xff] %v1422
        %2447 = vst [vmem:[%s204 + $0x588] sm:$0xff] %v1423
        %2448 = vst [vmem:[%s204 + $0x590] sm:$0xff] %v1424
        %2449 = vst [vmem:[%s204 + $0x598] sm:$0xff] %v1425
        %2450 = vst [vmem:[%s204 + $0x5a0] sm:$0xff] %v1426
        %2451 = vst [vmem:[%s204 + $0x5a8] sm:$0xff] %v1427
        %2452 = vst [vmem:[%s204 + $0x5b0] sm:$0xff] %v1428
        %2453 = vst [vmem:[%s204 + $0x5b8] sm:$0xff] %v1429
        %2454 = vst [vmem:[%s204 + $0x5c0] sm:$0xff] %v1430
        %2455 = vst [vmem:[%s204 + $0x5c8] sm:$0xff] %v1431
        %2456 = vst [vmem:[%s204 + $0x5d0] sm:$0xff] %v1432
        %2457 = vst [vmem:[%s204 + $0x5d8] sm:$0xff] %v1433
        %2458 = vst [vmem:[%s204 + $0x5e0] sm:$0xff] %v1434
        %2459 = vst [vmem:[%s204 + $0x5e8] sm:$0xff] %v1435
        %2460 = vst [vmem:[%s204 + $0x5f0] sm:$0xff] %v1436
        %2461 = vst [vmem:[%s204 + $0x5f8] sm:$0xff] %v1437
        %2462 = vst [vmem:[%s204 + $0x600] sm:$0xff] %v1438
        %2463 = vst [vmem:[%s204 + $0x608] sm:$0xff] %v1439
        %2464 = vst [vmem:[%s204 + $0x610] sm:$0xff] %v1440
        %2465 = vst [vmem:[%s204 + $0x618] sm:$0xff] %v1441
        %2466 = vst [vmem:[%s204 + $0x620] sm:$0xff] %v1442
        %2467 = vst [vmem:[%s204 + $0x628] sm:$0xff] %v1443
        %2468 = vst [vmem:[%s204 + $0x630] sm:$0xff] %v1444
        %2469 = vst [vmem:[%s204 + $0x638] sm:$0xff] %v1445
        %2470 = vst [vmem:[%s204 + $0x640] sm:$0xff] %v1446
        %2471 = vst [vmem:[%s204 + $0x648] sm:$0xff] %v1447
        %2472 = vst [vmem:[%s204 + $0x650] sm:$0xff] %v1448
        %2473 = vst [vmem:[%s204 + $0x658] sm:$0xff] %v1449
        %2474 = vst [vmem:[%s204 + $0x660] sm:$0xff] %v1450
        %2475 = vst [vmem:[%s204 + $0x668] sm:$0xff] %v1451
        %2476 = vst [vmem:[%s204 + $0x670] sm:$0xff] %v1452
        %2477 = vst [vmem:[%s204 + $0x678] sm:$0xff] %v1453
        %2478 = vst [vmem:[%s204 + $0x680] sm:$0xff] %v1454
        %2479 = vst [vmem:[%s204 + $0x688] sm:$0xff] %v1455
        %2480 = vst [vmem:[%s204 + $0x690] sm:$0xff] %v1456
        %2481 = vst [vmem:[%s204 + $0x698] sm:$0xff] %v1457
        %2482 = vst [vmem:[%s204 + $0x6a0] sm:$0xff] %v1458
        %2483 = vst [vmem:[%s204 + $0x6a8] sm:$0xff] %v1459
        %2484 = vst [vmem:[%s204 + $0x6b0] sm:$0xff] %v1460
        %2485 = vst [vmem:[%s204 + $0x6b8] sm:$0xff] %v1461
        %2486 = vst [vmem:[%s204 + $0x6c0] sm:$0xff] %v1462
        %2487 = vst [vmem:[%s204 + $0x6c8] sm:$0xff] %v1463
        %2488 = vst [vmem:[%s204 + $0x6d0] sm:$0xff] %v1464
        %2489 = vst [vmem:[%s204 + $0x6d8] sm:$0xff] %v1465
        %2490 = vst [vmem:[%s204 + $0x6e0] sm:$0xff] %v1466
        %2491 = vst [vmem:[%s204 + $0x6e8] sm:$0xff] %v1467
        %2492 = vst [vmem:[%s204 + $0x6f0] sm:$0xff] %v1468
        %2493 = vst [vmem:[%s204 + $0x6f8] sm:$0xff] %v1469
        %2494 = vst [vmem:[%s204 + $0x700] sm:$0xff] %v1470
        %2495 = vst [vmem:[%s204 + $0x708] sm:$0xff] %v1471
        %2496 = vst [vmem:[%s204 + $0x710] sm:$0xff] %v1472
        %2497 = vst [vmem:[%s204 + $0x718] sm:$0xff] %v1473
        %2498 = vst [vmem:[%s204 + $0x720] sm:$0xff] %v1474
        %2499 = vst [vmem:[%s204 + $0x728] sm:$0xff] %v1475
        %2500 = vst [vmem:[%s204 + $0x730] sm:$0xff] %v1476
        %2501 = vst [vmem:[%s204 + $0x738] sm:$0xff] %v1477
        %2502 = vst [vmem:[%s204 + $0x740] sm:$0xff] %v1478
        %2503 = vst [vmem:[%s204 + $0x748] sm:$0xff] %v1479
        %2504 = vst [vmem:[%s204 + $0x750] sm:$0xff] %v1480
        %2505 = vst [vmem:[%s204 + $0x758] sm:$0xff] %v1481
        %2506 = vst [vmem:[%s204 + $0x760] sm:$0xff] %v1482
        %2507 = vst [vmem:[%s204 + $0x768] sm:$0xff] %v1483
        %2508 = vst [vmem:[%s204 + $0x770] sm:$0xff] %v1484
        %2509 = vst [vmem:[%s204 + $0x778] sm:$0xff] %v1485
        %2510 = vst [vmem:[%s204 + $0x780] sm:$0xff] %v1486
        %2511 = vst [vmem:[%s204 + $0x788] sm:$0xff] %v1487
        %2512 = vst [vmem:[%s204 + $0x790] sm:$0xff] %v1488
        %2513 = vst [vmem:[%s204 + $0x798] sm:$0xff] %v1489
        %2514 = vst [vmem:[%s204 + $0x7a0] sm:$0xff] %v1490
        %2515 = vst [vmem:[%s204 + $0x7a8] sm:$0xff] %v1491
        %2516 = vst [vmem:[%s204 + $0x7b0] sm:$0xff] %v1492
        %2517 = vst [vmem:[%s204 + $0x7b8] sm:$0xff] %v1493
        %2518 = vst [vmem:[%s204 + $0x7c0] sm:$0xff] %v1494
        %2519 = vst [vmem:[%s204 + $0x7c8] sm:$0xff] %v1495
        %2520 = vst [vmem:[%s204 + $0x7d0] sm:$0xff] %v1496
        %2521 = vst [vmem:[%s204 + $0x7d8] sm:$0xff] %v1497
        %2522 = vst [vmem:[%s204 + $0x7e0] sm:$0xff] %v1498
        %2523 = vst [vmem:[%s204 + $0x7e8] sm:$0xff] %v1499
        %2524 = vst [vmem:[%s204 + $0x7f0] sm:$0xff] %v1500
        %2525 = vst [vmem:[%s204 + $0x7f8] sm:$0xff] %v1501
        %2526 = vst [vmem:[%s204 + $0x800] sm:$0xff] %v1502
        %2527 = vst [vmem:[%s204 + $0x808] sm:$0xff] %v1503
        %2528 = vst [vmem:[%s204 + $0x810] sm:$0xff] %v1504
        %2529 = vst [vmem:[%s204 + $0x818] sm:$0xff] %v1505
        %2530 = vst [vmem:[%s204 + $0x820] sm:$0xff] %v1506
        %2531 = vst [vmem:[%s204 + $0x828] sm:$0xff] %v1507
        %2532 = vst [vmem:[%s204 + $0x830] sm:$0xff] %v1508
        %2533 = vst [vmem:[%s204 + $0x838] sm:$0xff] %v1509
        %2534 = vst [vmem:[%s204 + $0x840] sm:$0xff] %v1510
        %2535 = vst [vmem:[%s204 + $0x848] sm:$0xff] %v1511
        %2536 = vst [vmem:[%s204 + $0x850] sm:$0xff] %v1512
        %2537 = vst [vmem:[%s204 + $0x858] sm:$0xff] %v1513
        %2538 = vst [vmem:[%s204 + $0x860] sm:$0xff] %v1514
        %2539 = vst [vmem:[%s204 + $0x868] sm:$0xff] %v1515
        %2540 = vst [vmem:[%s204 + $0x870] sm:$0xff] %v1516
        %2541 = vst [vmem:[%s204 + $0x878] sm:$0xff] %v1517
        %2542 = vst [vmem:[%s204 + $0x880] sm:$0xff] %v1518
        %2543 = vst [vmem:[%s204 + $0x888] sm:$0xff] %v1519
        %2544 = vst [vmem:[%s204 + $0x890] sm:$0xff] %v1520
        %2545 = vst [vmem:[%s204 + $0x898] sm:$0xff] %v1521
        %2546 = vst [vmem:[%s204 + $0x8a0] sm:$0xff] %v1522
        %2547 = vst [vmem:[%s204 + $0x8a8] sm:$0xff] %v1523
        %2548 = vst [vmem:[%s204 + $0x8b0] sm:$0xff] %v1524
        %2549 = vst [vmem:[%s204 + $0x8b8] sm:$0xff] %v1525
        %2550 = vst [vmem:[%s204 + $0x8c0] sm:$0xff] %v1526
        %2551 = vst [vmem:[%s204 + $0x8c8] sm:$0xff] %v1527
        %2552 = vst [vmem:[%s204 + $0x8d0] sm:$0xff] %v1528
        %2553 = vst [vmem:[%s204 + $0x8d8] sm:$0xff] %v1529
        %2554 = vst [vmem:[%s204 + $0x8e0] sm:$0xff] %v1530
        %2555 = vst [vmem:[%s204 + $0x8e8] sm:$0xff] %v1531
        %2556 = vst [vmem:[%s204 + $0x8f0] sm:$0xff] %v1532
        %2557 = vst [vmem:[%s204 + $0x8f8] sm:$0xff] %v1533
        %2558 = vst [vmem:[%s204 + $0x900] sm:$0xff] %v1534
        %2559 = vst [vmem:[%s204 + $0x908] sm:$0xff] %v1535
        %2560 = vst [vmem:[%s204 + $0x910] sm:$0xff] %v1536
        %2561 = vst [vmem:[%s204 + $0x918] sm:$0xff] %v1537
        %2562 = vst [vmem:[%s204 + $0x920] sm:$0xff] %v1538
        %2563 = vst [vmem:[%s204 + $0x928] sm:$0xff] %v1539
        %2564 = vst [vmem:[%s204 + $0x930] sm:$0xff] %v1540
        %2565 = vst [vmem:[%s204 + $0x938] sm:$0xff] %v1541
        %2566 = vst [vmem:[%s204 + $0x940] sm:$0xff] %v1542
        %2567 = vst [vmem:[%s204 + $0x948] sm:$0xff] %v1543
        %2568 = vst [vmem:[%s204 + $0x950] sm:$0xff] %v1544
        %2569 = vst [vmem:[%s204 + $0x958] sm:$0xff] %v1545
        %2570 = vst [vmem:[%s204 + $0x960] sm:$0xff] %v1546
        %2571 = vst [vmem:[%s204 + $0x968] sm:$0xff] %v1547
        %2572 = vst [vmem:[%s204 + $0x970] sm:$0xff] %v1548
        %2573 = vst [vmem:[%s204 + $0x978] sm:$0xff] %v1549
        %2574 = vst [vmem:[%s204 + $0x980] sm:$0xff] %v1550
        %2575 = vst [vmem:[%s204 + $0x988] sm:$0xff] %v1551
        %2576 = vst [vmem:[%s204 + $0x990] sm:$0xff] %v1552
        %2577 = vst [vmem:[%s204 + $0x998] sm:$0xff] %v1553
        %2578 = vst [vmem:[%s204 + $0x9a0] sm:$0xff] %v1554
        %2579 = vst [vmem:[%s204 + $0x9a8] sm:$0xff] %v1555
        %2580 = vst [vmem:[%s204 + $0x9b0] sm:$0xff] %v1556
        %2581 = vst [vmem:[%s204 + $0x9b8] sm:$0xff] %v1557
        %2582 = vst [vmem:[%s204 + $0x9c0] sm:$0xff] %v1558
        %2583 = vst [vmem:[%s204 + $0x9c8] sm:$0xff] %v1559
        %2584 = vst [vmem:[%s204 + $0x9d0] sm:$0xff] %v1560
        %2585 = vst [vmem:[%s204 + $0x9d8] sm:$0xff] %v1561
        %2586 = vst [vmem:[%s204 + $0x9e0] sm:$0xff] %v1562
        %2587 = vst [vmem:[%s204 + $0x9e8] sm:$0xff] %v1563
        %2588 = vst [vmem:[%s204 + $0x9f0] sm:$0xff] %v1564
        %2589 = vst [vmem:[%s204 + $0x9f8] sm:$0xff] %v1565
        %2590 = vst [vmem:[%s204 + $0xa00] sm:$0xff] %v1566
        %2591 = vst [vmem:[%s204 + $0xa08] sm:$0xff] %v1567
        %2592 = vst [vmem:[%s204 + $0xa10] sm:$0xff] %v1568
        %2593 = vst [vmem:[%s204 + $0xa18] sm:$0xff] %v1569
        %2594 = vst [vmem:[%s204 + $0xa20] sm:$0xff] %v1570
        %2595 = vst [vmem:[%s204 + $0xa28] sm:$0xff] %v1571
        %2596 = vst [vmem:[%s204 + $0xa30] sm:$0xff] %v1572
        %2597 = vst [vmem:[%s204 + $0xa38] sm:$0xff] %v1573
        %2598 = vst [vmem:[%s204 + $0xa40] sm:$0xff] %v1574
        %2599 = vst [vmem:[%s204 + $0xa48] sm:$0xff] %v1575
        %2600 = vst [vmem:[%s204 + $0xa50] sm:$0xff] %v1576
        %2601 = vst [vmem:[%s204 + $0xa58] sm:$0xff] %v1577
        %2602 = vst [vmem:[%s204 + $0xa60] sm:$0xff] %v1578
        %2603 = vst [vmem:[%s204 + $0xa68] sm:$0xff] %v1579
        %2604 = vst [vmem:[%s204 + $0xa70] sm:$0xff] %v1580
        %2605 = vst [vmem:[%s204 + $0xa78] sm:$0xff] %v1581
        %2606 = vst [vmem:[%s204 + $0xa80] sm:$0xff] %v1582
        %2607 = vst [vmem:[%s204 + $0xa88] sm:$0xff] %v1583
        %2608 = vst [vmem:[%s204 + $0xa90] sm:$0xff] %v1584
        %2609 = vst [vmem:[%s204 + $0xa98] sm:$0xff] %v1585
        %2610 = vst [vmem:[%s204 + $0xaa0] sm:$0xff] %v1586
        %2611 = vst [vmem:[%s204 + $0xaa8] sm:$0xff] %v1587
        %2612 = vst [vmem:[%s204 + $0xab0] sm:$0xff] %v1588
        %2613 = vst [vmem:[%s204 + $0xab8] sm:$0xff] %v1589
        %2614 = vst [vmem:[%s204 + $0xac0] sm:$0xff] %v1590
        %2615 = vst [vmem:[%s204 + $0xac8] sm:$0xff] %v1591
        %2616 = vst [vmem:[%s204 + $0xad0] sm:$0xff] %v1592
        %2617 = vst [vmem:[%s204 + $0xad8] sm:$0xff] %v1593
        %2618 = vst [vmem:[%s204 + $0xae0] sm:$0xff] %v1594
        %2619 = vst [vmem:[%s204 + $0xae8] sm:$0xff] %v1595
        %2620 = vst [vmem:[%s204 + $0xaf0] sm:$0xff] %v1596
        %2621 = vst [vmem:[%s204 + $0xaf8] sm:$0xff] %v1597
        %2622 = vst [vmem:[%s204 + $0xb00] sm:$0xff] %v1598
        %2623 = vst [vmem:[%s204 + $0xb08] sm:$0xff] %v1599
        %2624 = vst [vmem:[%s204 + $0xb10] sm:$0xff] %v1600
        %2625 = vst [vmem:[%s204 + $0xb18] sm:$0xff] %v1601
        %2626 = vst [vmem:[%s204 + $0xb20] sm:$0xff] %v1602
        %2627 = vst [vmem:[%s204 + $0xb28] sm:$0xff] %v1603
        %2628 = vst [vmem:[%s204 + $0xb30] sm:$0xff] %v1604
        %2629 = vst [vmem:[%s204 + $0xb38] sm:$0xff] %v1605
        %2630 = vst [vmem:[%s204 + $0xb40] sm:$0xff] %v1606
        %2631 = vst [vmem:[%s204 + $0xb48] sm:$0xff] %v1607
        %2632 = vst [vmem:[%s204 + $0xb50] sm:$0xff] %v1608
        %2633 = vst [vmem:[%s204 + $0xb58] sm:$0xff] %v1609
        %2634 = vst [vmem:[%s204 + $0xb60] sm:$0xff] %v1610
        %2635 = vst [vmem:[%s204 + $0xb68] sm:$0xff] %v1611
        %2636 = vst [vmem:[%s204 + $0xb70] sm:$0xff] %v1612
        %2637 = vst [vmem:[%s204 + $0xb78] sm:$0xff] %v1613
        %2638 = vst [vmem:[%s204 + $0xb80] sm:$0xff] %v1614
        %2639 = vst [vmem:[%s204 + $0xb88] sm:$0xff] %v1615
        %2640 = vst [vmem:[%s204 + $0xb90] sm:$0xff] %v1616
        %2641 = vst [vmem:[%s204 + $0xb98] sm:$0xff] %v1617
        %2642 = vst [vmem:[%s204 + $0xba0] sm:$0xff] %v1618
        %2643 = vst [vmem:[%s204 + $0xba8] sm:$0xff] %v1619
        %2644 = vst [vmem:[%s204 + $0xbb0] sm:$0xff] %v1620
        %2645 = vst [vmem:[%s204 + $0xbb8] sm:$0xff] %v1621
        %2646 = vst [vmem:[%s204 + $0xbc0] sm:$0xff] %v1622
        %2647 = vst [vmem:[%s204 + $0xbc8] sm:$0xff] %v1623
        %2648 = vst [vmem:[%s204 + $0xbd0] sm:$0xff] %v1624
        %2649 = vst [vmem:[%s204 + $0xbd8] sm:$0xff] %v1625
        %2650 = vst [vmem:[%s204 + $0xbe0] sm:$0xff] %v1626
        %2651 = vst [vmem:[%s204 + $0xbe8] sm:$0xff] %v1627
        %2652 = vst [vmem:[%s204 + $0xbf0] sm:$0xff] %v1628
        %2653 = vst [vmem:[%s204 + $0xbf8] sm:$0xff] %v1629
        %2654 = vst [vmem:[%s204 + $0xc00] sm:$0xff] %v1630
        %2655 = vst [vmem:[%s204 + $0xc08] sm:$0xff] %v1631
        %2656 = vst [vmem:[%s204 + $0xc10] sm:$0xff] %v1632
        %2657 = vst [vmem:[%s204 + $0xc18] sm:$0xff] %v1633
        %2658 = vst [vmem:[%s204 + $0xc20] sm:$0xff] %v1634
        %2659 = vst [vmem:[%s204 + $0xc28] sm:$0xff] %v1635
        %2660 = vst [vmem:[%s204 + $0xc30] sm:$0xff] %v1636
        %2661 = vst [vmem:[%s204 + $0xc38] sm:$0xff] %v1637
        %2662 = vst [vmem:[%s204 + $0xc40] sm:$0xff] %v1638
        %2663 = vst [vmem:[%s204 + $0xc48] sm:$0xff] %v1639
        %2664 = vst [vmem:[%s204 + $0xc50] sm:$0xff] %v1640
        %2665 = vst [vmem:[%s204 + $0xc58] sm:$0xff] %v1641
        %2666 = vst [vmem:[%s204 + $0xc60] sm:$0xff] %v1642
        %2667 = vst [vmem:[%s204 + $0xc68] sm:$0xff] %v1643
        %2668 = vst [vmem:[%s204 + $0xc70] sm:$0xff] %v1644
        %2669 = vst [vmem:[%s204 + $0xc78] sm:$0xff] %v1645
        %2670 = vst [vmem:[%s204 + $0xc80] sm:$0xff] %v1646
        %2671 = vst [vmem:[%s204 + $0xc88] sm:$0xff] %v1647
        %2672 = vst [vmem:[%s204 + $0xc90] sm:$0xff] %v1648
        %2673 = vst [vmem:[%s204 + $0xc98] sm:$0xff] %v1649
        %2674 = vst [vmem:[%s204 + $0xca0] sm:$0xff] %v1650
        %2675 = vst [vmem:[%s204 + $0xca8] sm:$0xff] %v1651
        %2676 = vst [vmem:[%s204 + $0xcb0] sm:$0xff] %v1652
        %2677 = vst [vmem:[%s204 + $0xcb8] sm:$0xff] %v1653
        %2678 = vst [vmem:[%s204 + $0xcc0] sm:$0xff] %v1654
        %2679 = vst [vmem:[%s204 + $0xcc8] sm:$0xff] %v1655
        %2680 = vst [vmem:[%s204 + $0xcd0] sm:$0xff] %v1656
        %2681 = vst [vmem:[%s204 + $0xcd8] sm:$0xff] %v1657
        %2682 = vst [vmem:[%s204 + $0xce0] sm:$0xff] %v1658
        %2683 = vst [vmem:[%s204 + $0xce8] sm:$0xff] %v1659
        %2684 = vst [vmem:[%s204 + $0xcf0] sm:$0xff] %v1660
        %2685 = vst [vmem:[%s204 + $0xcf8] sm:$0xff] %v1661
        %2686 = vst [vmem:[%s204 + $0xd00] sm:$0xff] %v1662
        %2687 = vst [vmem:[%s204 + $0xd08] sm:$0xff] %v1663
        %2688 = vst [vmem:[%s204 + $0xd10] sm:$0xff] %v1664
        %2689 = vst [vmem:[%s204 + $0xd18] sm:$0xff] %v1665
        %2690 = vst [vmem:[%s204 + $0xd20] sm:$0xff] %v1666
        %2691 = vst [vmem:[%s204 + $0xd28] sm:$0xff] %v1667
        %2692 = vst [vmem:[%s204 + $0xd30] sm:$0xff] %v1668
        %2693 = vst [vmem:[%s204 + $0xd38] sm:$0xff] %v1669
        %2694 = vst [vmem:[%s204 + $0xd40] sm:$0xff] %v1670
        %2695 = vst [vmem:[%s204 + $0xd48] sm:$0xff] %v1671
        %2696 = vst [vmem:[%s204 + $0xd50] sm:$0xff] %v1672
        %2697 = vst [vmem:[%s204 + $0xd58] sm:$0xff] %v1673
        %2698 = vst [vmem:[%s204 + $0xd60] sm:$0xff] %v1674
        %2699 = vst [vmem:[%s204 + $0xd68] sm:$0xff] %v1675
        %2700 = vst [vmem:[%s204 + $0xd70] sm:$0xff] %v1676
        %2701 = vst [vmem:[%s204 + $0xd78] sm:$0xff] %v1677
        %2702 = vst [vmem:[%s204 + $0xd80] sm:$0xff] %v1678
        %2703 = vst [vmem:[%s204 + $0xd88] sm:$0xff] %v1679
        %2704 = vst [vmem:[%s204 + $0xd90] sm:$0xff] %v1680
        %2705 = vst [vmem:[%s204 + $0xd98] sm:$0xff] %v1681
        %2706 = vst [vmem:[%s204 + $0xda0] sm:$0xff] %v1682
        %2707 = vst [vmem:[%s204 + $0xda8] sm:$0xff] %v1683
        %2708 = vst [vmem:[%s204 + $0xdb0] sm:$0xff] %v1684
        %2709 = vst [vmem:[%s204 + $0xdb8] sm:$0xff] %v1685
        %2710 = vst [vmem:[%s204 + $0xdc0] sm:$0xff] %v1686
        %2711 = vst [vmem:[%s204 + $0xdc8] sm:$0xff] %v1687
        %2712 = vst [vmem:[%s204 + $0xdd0] sm:$0xff] %v1688
        %2713 = vst [vmem:[%s204 + $0xdd8] sm:$0xff] %v1689
        %2714 = vst [vmem:[%s204 + $0xde0] sm:$0xff] %v1690
        %2715 = vst [vmem:[%s204 + $0xde8] sm:$0xff] %v1691
        %2716 = vst [vmem:[%s204 + $0xdf0] sm:$0xff] %v1692
        %2717 = vst [vmem:[%s204 + $0xdf8] sm:$0xff] %v1693
        %2718 = vst [vmem:[%s204 + $0xe00] sm:$0xff] %v1694
        %2719 = vst [vmem:[%s204 + $0xe08] sm:$0xff] %v1695
        %2720 = vst [vmem:[%s204 + $0xe10] sm:$0xff] %v1696
        %2721 = vst [vmem:[%s204 + $0xe18] sm:$0xff] %v1697
        %2722 = vst [vmem:[%s204 + $0xe20] sm:$0xff] %v1698
        %2723 = vst [vmem:[%s204 + $0xe28] sm:$0xff] %v1699
        %2724 = vst [vmem:[%s204 + $0xe30] sm:$0xff] %v1700
        %2725 = vst [vmem:[%s204 + $0xe38] sm:$0xff] %v1701
        %2726 = vst [vmem:[%s204 + $0xe40] sm:$0xff] %v1702
        %2727 = vst [vmem:[%s204 + $0xe48] sm:$0xff] %v1703
        %2728 = vst [vmem:[%s204 + $0xe50] sm:$0xff] %v1704
        %2729 = vst [vmem:[%s204 + $0xe58] sm:$0xff] %v1705
        %2730 = vst [vmem:[%s204 + $0xe60] sm:$0xff] %v1706
        %2731 = vst [vmem:[%s204 + $0xe68] sm:$0xff] %v1707
        %2732 = vst [vmem:[%s204 + $0xe70] sm:$0xff] %v1708
        %2733 = vst [vmem:[%s204 + $0xe78] sm:$0xff] %v1709
        %2734 = vst [vmem:[%s204 + $0xe80] sm:$0xff] %v1710
        %2735 = vst [vmem:[%s204 + $0xe88] sm:$0xff] %v1711
        %2736 = vst [vmem:[%s204 + $0xe90] sm:$0xff] %v1712
        %2737 = vst [vmem:[%s204 + $0xe98] sm:$0xff] %v1713
        %2738 = vst [vmem:[%s204 + $0xea0] sm:$0xff] %v1714
        %2739 = vst [vmem:[%s204 + $0xea8] sm:$0xff] %v1715
        %2740 = vst [vmem:[%s204 + $0xeb0] sm:$0xff] %v1716
        %2741 = vst [vmem:[%s204 + $0xeb8] sm:$0xff] %v1717
        %2742 = vst [vmem:[%s204 + $0xec0] sm:$0xff] %v1718
        %2743 = vst [vmem:[%s204 + $0xec8] sm:$0xff] %v1719
        %2744 = vst [vmem:[%s204 + $0xed0] sm:$0xff] %v1720
        %2745 = vst [vmem:[%s204 + $0xed8] sm:$0xff] %v1721
        %2746 = vst [vmem:[%s204 + $0xee0] sm:$0xff] %v1722
        %2747 = vst [vmem:[%s204 + $0xee8] sm:$0xff] %v1723
        %2748 = vst [vmem:[%s204 + $0xef0] sm:$0xff] %v1724
        %2749 = vst [vmem:[%s204 + $0xef8] sm:$0xff] %v1725
        %2750 = vst [vmem:[%s204 + $0xf00] sm:$0xff] %v1726
        %2751 = vst [vmem:[%s204 + $0xf08] sm:$0xff] %v1727
        %2752 = vst [vmem:[%s204 + $0xf10] sm:$0xff] %v1728
        %2753 = vst [vmem:[%s204 + $0xf18] sm:$0xff] %v1729
        %2754 = vst [vmem:[%s204 + $0xf20] sm:$0xff] %v1730
        %2755 = vst [vmem:[%s204 + $0xf28] sm:$0xff] %v1731
        %2756 = vst [vmem:[%s204 + $0xf30] sm:$0xff] %v1732
        %2757 = vst [vmem:[%s204 + $0xf38] sm:$0xff] %v1733
        %2758 = vst [vmem:[%s204 + $0xf40] sm:$0xff] %v1734
        %2759 = vst [vmem:[%s204 + $0xf48] sm:$0xff] %v1735
        %2760 = vst [vmem:[%s204 + $0xf50] sm:$0xff] %v1736
        %2761 = vst [vmem:[%s204 + $0xf58] sm:$0xff] %v1737
        %2762 = vst [vmem:[%s204 + $0xf60] sm:$0xff] %v1738
        %2763 = vst [vmem:[%s204 + $0xf68] sm:$0xff] %v1739
        %2764 = vst [vmem:[%s204 + $0xf70] sm:$0xff] %v1740
        %2765 = vst [vmem:[%s204 + $0xf78] sm:$0xff] %v1741
        %2766 = vst [vmem:[%s204 + $0xf80] sm:$0xff] %v1742
        %2767 = vst [vmem:[%s204 + $0xf88] sm:$0xff] %v1743
        %2768 = vst [vmem:[%s204 + $0xf90] sm:$0xff] %v1744
        %2769 = vst [vmem:[%s204 + $0xf98] sm:$0xff] %v1745
        %2770 = vst [vmem:[%s204 + $0xfa0] sm:$0xff] %v1746
        %2771 = vst [vmem:[%s204 + $0xfa8] sm:$0xff] %v1747
        %2772 = vst [vmem:[%s204 + $0xfb0] sm:$0xff] %v1748
        %2773 = vst [vmem:[%s204 + $0xfb8] sm:$0xff] %v1749
        %2774 = vst [vmem:[%s204 + $0xfc0] sm:$0xff] %v1750
        %2775 = vst [vmem:[%s204 + $0xfc8] sm:$0xff] %v1751
        %2776 = vst [vmem:[%s204 + $0xfd0] sm:$0xff] %v1752
        %2777 = vst [vmem:[%s204 + $0xfd8] sm:$0xff] %v1753
        %2778 = vst [vmem:[%s204 + $0xfe0] sm:$0xff] %v1754
        %2779 = vst [vmem:[%s204 + $0xfe8] sm:$0xff] %v1755
        %2780 = vst [vmem:[%s204 + $0xff0] sm:$0xff] %v1756
        %2781 = vst [vmem:[%s204 + $0xff8] sm:$0xff] %v1757
        %2782 = vst [vmem:[%s204 + $0x1000] sm:$0xff] %v1758
        %2783 = vst [vmem:[%s204 + $0x1008] sm:$0xff] %v1759
        %2784 = vst [vmem:[%s204 + $0x1010] sm:$0xff] %v1760
        %2785 = vst [vmem:[%s204 + $0x1018] sm:$0xff] %v1761
        %2786 = vst [vmem:[%s204 + $0x1020] sm:$0xff] %v1762
        %2787 = vst [vmem:[%s204 + $0x1028] sm:$0xff] %v1763
        %2788 = vst [vmem:[%s204 + $0x1030] sm:$0xff] %v1764
        %2789 = vst [vmem:[%s204 + $0x1038] sm:$0xff] %v1765
        %2790 = vst [vmem:[%s204 + $0x1040] sm:$0xff] %v1766
        %2791 = vst [vmem:[%s204 + $0x1048] sm:$0xff] %v1767
        %2792 = vst [vmem:[%s204 + $0x1050] sm:$0xff] %v1768
        %2793 = vst [vmem:[%s204 + $0x1058] sm:$0xff] %v1769
        %2794 = vst [vmem:[%s204 + $0x1060] sm:$0xff] %v1770
        %2795 = vst [vmem:[%s204 + $0x1068] sm:$0xff] %v1771
        %2796 = vst [vmem:[%s204 + $0x1070] sm:$0xff] %v1772
        %2797 = vst [vmem:[%s204 + $0x1078] sm:$0xff] %v1773
        %2798 = vst [vmem:[%s204 + $0x1080] sm:$0xff] %v1774
        %2799 = vst [vmem:[%s204 + $0x1088] sm:$0xff] %v1775
        %2800 = vst [vmem:[%s204 + $0x1090] sm:$0xff] %v1776
        %2801 = vst [vmem:[%s204 + $0x1098] sm:$0xff] %v1777
        %2802 = vst [vmem:[%s204 + $0x10a0] sm:$0xff] %v1778
        %2803 = vst [vmem:[%s204 + $0x10a8] sm:$0xff] %v1779
        %2804 = vst [vmem:[%s204 + $0x10b0] sm:$0xff] %v1780
        %2805 = vst [vmem:[%s204 + $0x10b8] sm:$0xff] %v1781
        %2806 = vst [vmem:[%s204 + $0x10c0] sm:$0xff] %v1782
        %2807 = vst [vmem:[%s204 + $0x10c8] sm:$0xff] %v1783
        %2808 = vst [vmem:[%s204 + $0x10d0] sm:$0xff] %v1784
        %2809 = vst [vmem:[%s204 + $0x10d8] sm:$0xff] %v1785
        %2810 = vst [vmem:[%s204 + $0x10e0] sm:$0xff] %v1786
        %2811 = vst [vmem:[%s204 + $0x10e8] sm:$0xff] %v1787
        %2812 = vst [vmem:[%s204 + $0x10f0] sm:$0xff] %v1788
        %2813 = vst [vmem:[%s204 + $0x10f8] sm:$0xff] %v1789
        %2814 = vst [vmem:[%s204 + $0x1100] sm:$0xff] %v1790
        %2815 = vst [vmem:[%s204 + $0x1108] sm:$0xff] %v1791
        %2816 = vst [vmem:[%s204 + $0x1110] sm:$0xff] %v1792
        %2817 = vst [vmem:[%s204 + $0x1118] sm:$0xff] %v1793
        %2818 = vst [vmem:[%s204 + $0x1120] sm:$0xff] %v1794
        %2819 = vst [vmem:[%s204 + $0x1128] sm:$0xff] %v1795
        %2820 = vst [vmem:[%s204 + $0x1130] sm:$0xff] %v1796
        %2821 = vst [vmem:[%s204 + $0x1138] sm:$0xff] %v1797
        %2822 = vst [vmem:[%s204 + $0x1140] sm:$0xff] %v1798
        %2823 = vst [vmem:[%s204 + $0x1148] sm:$0xff] %v1799
        %2824 = vst [vmem:[%s204 + $0x1150] sm:$0xff] %v1800
        %2825 = vst [vmem:[%s204 + $0x1158] sm:$0xff] %v1801
        %2826 = vst [vmem:[%s204 + $0x1160] sm:$0xff] %v1802
        %2827 = vst [vmem:[%s204 + $0x1168] sm:$0xff] %v1803
        %2828 = vst [vmem:[%s204 + $0x1170] sm:$0xff] %v1804
        %2829 = vst [vmem:[%s204 + $0x1178] sm:$0xff] %v1805
        %2830 = vst [vmem:[%s204 + $0x1180] sm:$0xff] %v1806
        %2831 = vst [vmem:[%s204 + $0x1188] sm:$0xff] %v1807
        %2832 = vst [vmem:[%s204 + $0x1190] sm:$0xff] %v1808
        %2833 = vst [vmem:[%s204 + $0x1198] sm:$0xff] %v1809
        %2834 = vst [vmem:[%s204 + $0x11a0] sm:$0xff] %v1810
        %2835 = vst [vmem:[%s204 + $0x11a8] sm:$0xff] %v1811
        %2836 = vst [vmem:[%s204 + $0x11b0] sm:$0xff] %v1812
        %2837 = vst [vmem:[%s204 + $0x11b8] sm:$0xff] %v1813
        %2838 = vst [vmem:[%s204 + $0x11c0] sm:$0xff] %v1814
        %2839 = vst [vmem:[%s204 + $0x11c8] sm:$0xff] %v1815
        %2840 = vst [vmem:[%s204 + $0x11d0] sm:$0xff] %v1816
        %2841 = vst [vmem:[%s204 + $0x11d8] sm:$0xff] %v1817
        %2842 = vst [vmem:[%s204 + $0x11e0] sm:$0xff] %v1818
        %2843 = vst [vmem:[%s204 + $0x11e8] sm:$0xff] %v1819
        %2844 = vst [vmem:[%s204 + $0x11f0] sm:$0xff] %v1820
        %2845 = vst [vmem:[%s204 + $0x11f8] sm:$0xff] %v1821
        %2846 = vst [vmem:[%s204 + $0x1200] sm:$0xff] %v1822
        %2847 = vst [vmem:[%s204 + $0x1208] sm:$0xff] %v1823
        %2848 = vst [vmem:[%s204 + $0x1210] sm:$0xff] %v1824
        %2849 = vst [vmem:[%s204 + $0x1218] sm:$0xff] %v1825
        %2850 = vst [vmem:[%s204 + $0x1220] sm:$0xff] %v1826
        %2851 = vst [vmem:[%s204 + $0x1228] sm:$0xff] %v1827
        %2852 = vst [vmem:[%s204 + $0x1230] sm:$0xff] %v1828
        %2853 = vst [vmem:[%s204 + $0x1238] sm:$0xff] %v1829
        %2854 = vst [vmem:[%s204 + $0x1240] sm:$0xff] %v1830
        %2855 = vst [vmem:[%s204 + $0x1248] sm:$0xff] %v1831
        %2856 = vst [vmem:[%s204 + $0x1250] sm:$0xff] %v1832
        %2857 = vst [vmem:[%s204 + $0x1258] sm:$0xff] %v1833
        %2858 = vst [vmem:[%s204 + $0x1260] sm:$0xff] %v1834
        %2859 = vst [vmem:[%s204 + $0x1268] sm:$0xff] %v1835
        %2860 = vst [vmem:[%s204 + $0x1270] sm:$0xff] %v1836
        %2861 = vst [vmem:[%s204 + $0x1278] sm:$0xff] %v1837
        %2862 = vst [vmem:[%s204 + $0x1280] sm:$0xff] %v1838
        %2863 = vst [vmem:[%s204 + $0x1288] sm:$0xff] %v1839
        %2864 = vst [vmem:[%s204 + $0x1290] sm:$0xff] %v1840
        %2865 = vst [vmem:[%s204 + $0x1298] sm:$0xff] %v1841
        %2866 = vst [vmem:[%s204 + $0x12a0] sm:$0xff] %v1842
        %2867 = vst [vmem:[%s204 + $0x12a8] sm:$0xff] %v1843
        %2868 = vst [vmem:[%s204 + $0x12b0] sm:$0xff] %v1844
        %2869 = vst [vmem:[%s204 + $0x12b8] sm:$0xff] %v1845
        %2870 = vst [vmem:[%s204 + $0x12c0] sm:$0xff] %v1846
        %2871 = vst [vmem:[%s204 + $0x12c8] sm:$0xff] %v1847
        %2872 = vst [vmem:[%s204 + $0x12d0] sm:$0xff] %v1848
        %2873 = vst [vmem:[%s204 + $0x12d8] sm:$0xff] %v1849
        %2874 = vst [vmem:[%s204 + $0x12e0] sm:$0xff] %v1850
        %2875 = vst [vmem:[%s204 + $0x12e8] sm:$0xff] %v1851
        %2876 = vst [vmem:[%s204 + $0x12f0] sm:$0xff] %v1852
        %2877 = vst [vmem:[%s204 + $0x12f8] sm:$0xff] %v1853
        %2878 = vst [vmem:[%s204 + $0x1300] sm:$0xff] %v1854
        %2879 = vst [vmem:[%s204 + $0x1308] sm:$0xff] %v1855
        %2880 = vst [vmem:[%s204 + $0x1310] sm:$0xff] %v1856
        %2881 = vst [vmem:[%s204 + $0x1318] sm:$0xff] %v1857
        %2882 = vst [vmem:[%s204 + $0x1320] sm:$0xff] %v1858
        %2883 = vst [vmem:[%s204 + $0x1328] sm:$0xff] %v1859
        %2884 = vst [vmem:[%s204 + $0x1330] sm:$0xff] %v1860
        %2885 = vst [vmem:[%s204 + $0x1338] sm:$0xff] %v1861
        %2886 = vst [vmem:[%s204 + $0x1340] sm:$0xff] %v1862
        %2887 = vst [vmem:[%s204 + $0x1348] sm:$0xff] %v1863
        %2888 = vst [vmem:[%s204 + $0x1350] sm:$0xff] %v1864
        %2889 = vst [vmem:[%s204 + $0x1358] sm:$0xff] %v1865
        %2890 = vst [vmem:[%s204 + $0x1360] sm:$0xff] %v1866
        %2891 = vst [vmem:[%s204 + $0x1368] sm:$0xff] %v1867
        %2892 = vst [vmem:[%s204 + $0x1370] sm:$0xff] %v1868
        %2893 = vst [vmem:[%s204 + $0x1378] sm:$0xff] %v1869
        %2894 = vst [vmem:[%s204 + $0x1380] sm:$0xff] %v1870
        %2895 = vst [vmem:[%s204 + $0x1388] sm:$0xff] %v1871
        %2896 = vst [vmem:[%s204 + $0x1390] sm:$0xff] %v1872
        %2897 = vst [vmem:[%s204 + $0x1398] sm:$0xff] %v1873
        %2898 = vst [vmem:[%s204 + $0x13a0] sm:$0xff] %v1874
        %2899 = vst [vmem:[%s204 + $0x13a8] sm:$0xff] %v1875
        %2900 = vst [vmem:[%s204 + $0x13b0] sm:$0xff] %v1876
        %2901 = vst [vmem:[%s204 + $0x13b8] sm:$0xff] %v1877
        %2902 = vst [vmem:[%s204 + $0x13c0] sm:$0xff] %v1878
        %2903 = vst [vmem:[%s204 + $0x13c8] sm:$0xff] %v1879
        %2904 = vst [vmem:[%s204 + $0x13d0] sm:$0xff] %v1880
        %2905 = vst [vmem:[%s204 + $0x13d8] sm:$0xff] %v1881
        %2906 = vst [vmem:[%s204 + $0x13e0] sm:$0xff] %v1882
        %2907 = vst [vmem:[%s204 + $0x13e8] sm:$0xff] %v1883
        %2908 = vst [vmem:[%s204 + $0x13f0] sm:$0xff] %v1884
        %2909 = vst [vmem:[%s204 + $0x13f8] sm:$0xff] %v1885
        %2910 = vst [vmem:[%s204 + $0x1400] sm:$0xff] %v1886
        %2911 = vst [vmem:[%s204 + $0x1408] sm:$0xff] %v1887
        %2912 = vst [vmem:[%s204 + $0x1410] sm:$0xff] %v1888
        %2913 = vst [vmem:[%s204 + $0x1418] sm:$0xff] %v1889
        %2914 = vst [vmem:[%s204 + $0x1420] sm:$0xff] %v1890
        %2915 = vst [vmem:[%s204 + $0x1428] sm:$0xff] %v1891
        %2916 = vst [vmem:[%s204 + $0x1430] sm:$0xff] %v1892
        %2917 = vst [vmem:[%s204 + $0x1438] sm:$0xff] %v1893
        %2918 = vst [vmem:[%s204 + $0x1440] sm:$0xff] %v1894
        %2919 = vst [vmem:[%s204 + $0x1448] sm:$0xff] %v1895
        %2920 = vst [vmem:[%s204 + $0x1450] sm:$0xff] %v1896
        %2921 = vst [vmem:[%s204 + $0x1458] sm:$0xff] %v1897
        %2922 = vst [vmem:[%s204 + $0x1460] sm:$0xff] %v1898
        %2923 = vst [vmem:[%s204 + $0x1468] sm:$0xff] %v1899
        %2924 = vst [vmem:[%s204 + $0x1470] sm:$0xff] %v1900
        %2925 = vst [vmem:[%s204 + $0x1478] sm:$0xff] %v1901
        %2926 = vst [vmem:[%s204 + $0x1480] sm:$0xff] %v1902
        %2927 = vst [vmem:[%s204 + $0x1488] sm:$0xff] %v1903
        %2928 = vst [vmem:[%s204 + $0x1490] sm:$0xff] %v1904
        %2929 = vst [vmem:[%s204 + $0x1498] sm:$0xff] %v1905
        %2930 = vst [vmem:[%s204 + $0x14a0] sm:$0xff] %v1906
        %2931 = vst [vmem:[%s204 + $0x14a8] sm:$0xff] %v1907
        %2932 = vst [vmem:[%s204 + $0x14b0] sm:$0xff] %v1908
        %2933 = vst [vmem:[%s204 + $0x14b8] sm:$0xff] %v1909
        %2934 = vst [vmem:[%s204 + $0x14c0] sm:$0xff] %v1910
        %2935 = vst [vmem:[%s204 + $0x14c8] sm:$0xff] %v1911
        %2936 = vst [vmem:[%s204 + $0x14d0] sm:$0xff] %v1912
        %2937 = vst [vmem:[%s204 + $0x14d8] sm:$0xff] %v1913
        %2938 = vst [vmem:[%s204 + $0x14e0] sm:$0xff] %v1914
        %2939 = vst [vmem:[%s204 + $0x14e8] sm:$0xff] %v1915
        %2940 = vst [vmem:[%s204 + $0x14f0] sm:$0xff] %v1916
        %2941 = vst [vmem:[%s204 + $0x14f8] sm:$0xff] %v1917
        %2942 = vst [vmem:[%s204 + $0x1500] sm:$0xff] %v1918
        %2943 = vst [vmem:[%s204 + $0x1508] sm:$0xff] %v1919
        %2944 = vst [vmem:[%s204 + $0x1510] sm:$0xff] %v1920
        %2945 = vst [vmem:[%s204 + $0x1518] sm:$0xff] %v1921
        %2946 = vst [vmem:[%s204 + $0x1520] sm:$0xff] %v1922
        %2947 = vst [vmem:[%s204 + $0x1528] sm:$0xff] %v1923
        %2948 = vst [vmem:[%s204 + $0x1530] sm:$0xff] %v1924
        %2949 = vst [vmem:[%s204 + $0x1538] sm:$0xff] %v1925
        %2950 = vst [vmem:[%s204 + $0x1540] sm:$0xff] %v1926
        %2951 = vst [vmem:[%s204 + $0x1548] sm:$0xff] %v1927
        %2952 = vst [vmem:[%s204 + $0x1550] sm:$0xff] %v1928
        %2953 = vst [vmem:[%s204 + $0x1558] sm:$0xff] %v1929
        %2954 = vst [vmem:[%s204 + $0x1560] sm:$0xff] %v1930
        %2955 = vst [vmem:[%s204 + $0x1568] sm:$0xff] %v1931
        %2956 = vst [vmem:[%s204 + $0x1570] sm:$0xff] %v1932
        %2957 = vst [vmem:[%s204 + $0x1578] sm:$0xff] %v1933
        %2958 = vst [vmem:[%s204 + $0x1580] sm:$0xff] %v1934
        %2959 = vst [vmem:[%s204 + $0x1588] sm:$0xff] %v1935
        %2960 = vst [vmem:[%s204 + $0x1590] sm:$0xff] %v1936
        %2961 = vst [vmem:[%s204 + $0x1598] sm:$0xff] %v1937
        %2962 = vst [vmem:[%s204 + $0x15a0] sm:$0xff] %v1938
        %2963 = vst [vmem:[%s204 + $0x15a8] sm:$0xff] %v1939
        %2964 = vst [vmem:[%s204 + $0x15b0] sm:$0xff] %v1940
        %2965 = vst [vmem:[%s204 + $0x15b8] sm:$0xff] %v1941
        %2966 = vst [vmem:[%s204 + $0x15c0] sm:$0xff] %v1942
        %2967 = vst [vmem:[%s204 + $0x15c8] sm:$0xff] %v1943
        %2968 = vst [vmem:[%s204 + $0x15d0] sm:$0xff] %v1944
        %2969 = vst [vmem:[%s204 + $0x15d8] sm:$0xff] %v1945
        %2970 = vst [vmem:[%s204 + $0x15e0] sm:$0xff] %v1946
        %2971 = vst [vmem:[%s204 + $0x15e8] sm:$0xff] %v1947
        %2972 = vst [vmem:[%s204 + $0x15f0] sm:$0xff] %v1948
        %2973 = vst [vmem:[%s204 + $0x15f8] sm:$0xff] %v1949
        %2974 = vst [vmem:[%s204 + $0x1600] sm:$0xff] %v1950
        %2975 = vst [vmem:[%s204 + $0x1608] sm:$0xff] %v1951
        %2976 = vst [vmem:[%s204 + $0x1610] sm:$0xff] %v1952
        %2977 = vst [vmem:[%s204 + $0x1618] sm:$0xff] %v1953
        %2978 = vst [vmem:[%s204 + $0x1620] sm:$0xff] %v1954
        %2979 = vst [vmem:[%s204 + $0x1628] sm:$0xff] %v1955
        %2980 = vst [vmem:[%s204 + $0x1630] sm:$0xff] %v1956
        %2981 = vst [vmem:[%s204 + $0x1638] sm:$0xff] %v1957
        %2982 = vst [vmem:[%s204 + $0x1640] sm:$0xff] %v1958
        %2983 = vst [vmem:[%s204 + $0x1648] sm:$0xff] %v1959
        %2984 = vst [vmem:[%s204 + $0x1650] sm:$0xff] %v1960
        %2985 = vst [vmem:[%s204 + $0x1658] sm:$0xff] %v1961
        %2986 = vst [vmem:[%s204 + $0x1660] sm:$0xff] %v1962
        %2987 = vst [vmem:[%s204 + $0x1668] sm:$0xff] %v1963
        %2988 = vst [vmem:[%s204 + $0x1670] sm:$0xff] %v1964
        %2989 = vst [vmem:[%s204 + $0x1678] sm:$0xff] %v1965
        %2990 = vst [vmem:[%s204 + $0x1680] sm:$0xff] %v1966
        %2991 = vst [vmem:[%s204 + $0x1688] sm:$0xff] %v1967
        %2992 = vst [vmem:[%s204 + $0x1690] sm:$0xff] %v1968
        %2993 = vst [vmem:[%s204 + $0x1698] sm:$0xff] %v1969
        %2994 = vst [vmem:[%s204 + $0x16a0] sm:$0xff] %v1970
        %2995 = vst [vmem:[%s204 + $0x16a8] sm:$0xff] %v1971
        %2996 = vst [vmem:[%s204 + $0x16b0] sm:$0xff] %v1972
        %2997 = vst [vmem:[%s204 + $0x16b8] sm:$0xff] %v1973
        %2998 = vst [vmem:[%s204 + $0x16c0] sm:$0xff] %v1974
        %2999 = vst [vmem:[%s204 + $0x16c8] sm:$0xff] %v1975
        %3000 = vst [vmem:[%s204 + $0x16d0] sm:$0xff] %v1976
        %3001 = vst [vmem:[%s204 + $0x16d8] sm:$0xff] %v1977
        %3002 = vst [vmem:[%s204 + $0x16e0] sm:$0xff] %v1978
        %3003 = vst [vmem:[%s204 + $0x16e8] sm:$0xff] %v1979
        %3004 = vst [vmem:[%s204 + $0x16f0] sm:$0xff] %v1980
        %3005 = vst [vmem:[%s204 + $0x16f8] sm:$0xff] %v1981
        %3006 = vst [vmem:[%s204 + $0x1700] sm:$0xff] %v1982
        %3007 = vst [vmem:[%s204 + $0x1708] sm:$0xff] %v1983
        %3008 = vst [vmem:[%s204 + $0x1710] sm:$0xff] %v1984
        %3009 = vst [vmem:[%s204 + $0x1718] sm:$0xff] %v1985
        %3010 = vst [vmem:[%s204 + $0x1720] sm:$0xff] %v1986
        %3011 = vst [vmem:[%s204 + $0x1728] sm:$0xff] %v1987
        %3012 = vst [vmem:[%s204 + $0x1730] sm:$0xff] %v1988
        %3013 = vst [vmem:[%s204 + $0x1738] sm:$0xff] %v1989
        %3014 = vst [vmem:[%s204 + $0x1740] sm:$0xff] %v1990
        %3015 = vst [vmem:[%s204 + $0x1748] sm:$0xff] %v1991
        %3016 = vst [vmem:[%s204 + $0x1750] sm:$0xff] %v1992
        %3017 = vst [vmem:[%s204 + $0x1758] sm:$0xff] %v1993
        %3018 = vst [vmem:[%s204 + $0x1760] sm:$0xff] %v1994
        %3019 = vst [vmem:[%s204 + $0x1768] sm:$0xff] %v1995
        %3020 = vst [vmem:[%s204 + $0x1770] sm:$0xff] %v1996
        %3021 = vst [vmem:[%s204 + $0x1778] sm:$0xff] %v1997
        %3022 = vst [vmem:[%s204 + $0x1780] sm:$0xff] %v1998
        %3023 = vst [vmem:[%s204 + $0x1788] sm:$0xff] %v1999
        %3024 = vst [vmem:[%s204 + $0x1790] sm:$0xff] %v2000
        %3025 = vst [vmem:[%s204 + $0x1798] sm:$0xff] %v2001
        %3026 = vst [vmem:[%s204 + $0x17a0] sm:$0xff] %v2002
        %3027 = vst [vmem:[%s204 + $0x17a8] sm:$0xff] %v2003
        %3028 = vst [vmem:[%s204 + $0x17b0] sm:$0xff] %v2004
        %3029 = vst [vmem:[%s204 + $0x17b8] sm:$0xff] %v2005
        %3030 = vst [vmem:[%s204 + $0x17c0] sm:$0xff] %v2006
        %3031 = vst [vmem:[%s204 + $0x17c8] sm:$0xff] %v2007
        %3032 = vst [vmem:[%s204 + $0x17d0] sm:$0xff] %v2008
        %3033 = vst [vmem:[%s204 + $0x17d8] sm:$0xff] %v2009
        %3034 = vst [vmem:[%s204 + $0x17e0] sm:$0xff] %v2010
        %3035 = vst [vmem:[%s204 + $0x17e8] sm:$0xff] %v2011
        %3036 = vst [vmem:[%s204 + $0x17f0] sm:$0xff] %v2012
        %3037 = vst [vmem:[%s204 + $0x17f8] sm:$0xff] %v2013
        %3038 = vst [vmem:[%s204 + $0x1800] sm:$0xff] %v2014
        %3039 = vst [vmem:[%s204 + $0x1808] sm:$0xff] %v2015
        %3040 = vst [vmem:[%s204 + $0x1810] sm:$0xff] %v2016
        %3041 = vst [vmem:[%s204 + $0x1818] sm:$0xff] %v2017
        %3042 = vst [vmem:[%s204 + $0x1820] sm:$0xff] %v2018
        %3043 = vst [vmem:[%s204 + $0x1828] sm:$0xff] %v2019
        %3044 = vst [vmem:[%s204 + $0x1830] sm:$0xff] %v2020
        %3045 = vst [vmem:[%s204 + $0x1838] sm:$0xff] %v2021
        %3046 = vst [vmem:[%s204 + $0x1840] sm:$0xff] %v2022
        %3047 = vst [vmem:[%s204 + $0x1848] sm:$0xff] %v2023
        %3048 = vst [vmem:[%s204 + $0x1850] sm:$0xff] %v2024
        %3049 = vst [vmem:[%s204 + $0x1858] sm:$0xff] %v2025
        %3050 = vst [vmem:[%s204 + $0x1860] sm:$0xff] %v2026
        %3051 = vst [vmem:[%s204 + $0x1868] sm:$0xff] %v2027
        %3052 = vst [vmem:[%s204 + $0x1870] sm:$0xff] %v2028
        %3053 = vst [vmem:[%s204 + $0x1878] sm:$0xff] %v2029
        %3054 = vst [vmem:[%s204 + $0x1880] sm:$0xff] %v2030
        %3055 = vst [vmem:[%s204 + $0x1888] sm:$0xff] %v2031
        %3056 = vst [vmem:[%s204 + $0x1890] sm:$0xff] %v2032
        %3057 = vst [vmem:[%s204 + $0x1898] sm:$0xff] %v2033
        %3058 = vst [vmem:[%s204 + $0x18a0] sm:$0xff] %v2034
        %3059 = vst [vmem:[%s204 + $0x18a8] sm:$0xff] %v2035
        %3060 = vst [vmem:[%s204 + $0x18b0] sm:$0xff] %v2036
        %3061 = vst [vmem:[%s204 + $0x18b8] sm:$0xff] %v2037
        %3062 = vst [vmem:[%s204 + $0x18c0] sm:$0xff] %v2038
        %3063 = vst [vmem:[%s204 + $0x18c8] sm:$0xff] %v2039
        %3064 = vst [vmem:[%s204 + $0x18d0] sm:$0xff] %v2040
        %3065 = vst [vmem:[%s204 + $0x18d8] sm:$0xff] %v2041
        %3066 = vst [vmem:[%s204 + $0x18e0] sm:$0xff] %v2042
        %3067 = vst [vmem:[%s204 + $0x18e8] sm:$0xff] %v2043
        %3068 = vst [vmem:[%s204 + $0x18f0] sm:$0xff] %v2044
        %3069 = vst [vmem:[%s204 + $0x18f8] sm:$0xff] %v2045
        %3070 = vst [vmem:[%s204 + $0x1900] sm:$0xff] %v2046
        %3071 = vst [vmem:[%s204 + $0x1908] sm:$0xff] %v2047
        %3072 = vst [vmem:[%s204 + $0x1910] sm:$0xff] %v2048
        %3073 = vst [vmem:[%s204 + $0x1918] sm:$0xff] %v2049
        %3074 = vst [vmem:[%s204 + $0x1920] sm:$0xff] %v2050
        %3075 = vst [vmem:[%s204 + $0x1928] sm:$0xff] %v2051
        %3076 = vst [vmem:[%s204 + $0x1930] sm:$0xff] %v2052
        %3077 = vst [vmem:[%s204 + $0x1938] sm:$0xff] %v2053
        %3078 = vst [vmem:[%s204 + $0x1940] sm:$0xff] %v2054
        %3079 = vst [vmem:[%s204 + $0x1948] sm:$0xff] %v2055
        %3080 = vst [vmem:[%s204 + $0x1950] sm:$0xff] %v2056
        %3081 = vst [vmem:[%s204 + $0x1958] sm:$0xff] %v2057
        %3082 = vst [vmem:[%s204 + $0x1960] sm:$0xff] %v2058
        %3083 = vst [vmem:[%s204 + $0x1968] sm:$0xff] %v2059
        %3084 = vst [vmem:[%s204 + $0x1970] sm:$0xff] %v2060
        %3085 = vst [vmem:[%s204 + $0x1978] sm:$0xff] %v2061
        %3086 = vst [vmem:[%s204 + $0x1980] sm:$0xff] %v2062
        %3087 = vst [vmem:[%s204 + $0x1988] sm:$0xff] %v2063
        %3088 = vst [vmem:[%s204 + $0x1990] sm:$0xff] %v2064
        %3089 = vst [vmem:[%s204 + $0x1998] sm:$0xff] %v2065
        %3090 = vst [vmem:[%s204 + $0x19a0] sm:$0xff] %v2066
        %3091 = vst [vmem:[%s204 + $0x19a8] sm:$0xff] %v2067
        %3092 = vst [vmem:[%s204 + $0x19b0] sm:$0xff] %v2068
        %3093 = vst [vmem:[%s204 + $0x19b8] sm:$0xff] %v2069
        %3094 = vst [vmem:[%s204 + $0x19c0] sm:$0xff] %v2070
        %3095 = vst [vmem:[%s204 + $0x19c8] sm:$0xff] %v2071
        %3096 = vst [vmem:[%s204 + $0x19d0] sm:$0xff] %v2072
        %3097 = vst [vmem:[%s204 + $0x19d8] sm:$0xff] %v2073
        %3098 = vst [vmem:[%s204 + $0x19e0] sm:$0xff] %v2074
        %3099 = vst [vmem:[%s204 + $0x19e8] sm:$0xff] %v2075
        %3100 = vst [vmem:[%s204 + $0x19f0] sm:$0xff] %v2076
        %3101 = vst [vmem:[%s204 + $0x19f8] sm:$0xff] %v2077
        %3102 = vst [vmem:[%s204 + $0x1a00] sm:$0xff] %v2078
        %3103 = vst [vmem:[%s204 + $0x1a08] sm:$0xff] %v2079
        %3104 = vst [vmem:[%s204 + $0x1a10] sm:$0xff] %v2080
        %3105 = vst [vmem:[%s204 + $0x1a18] sm:$0xff] %v2081
        %3106 = vst [vmem:[%s204 + $0x1a20] sm:$0xff] %v2082
        %3107 = vst [vmem:[%s204 + $0x1a28] sm:$0xff] %v2083
        %3108 = vst [vmem:[%s204 + $0x1a30] sm:$0xff] %v2084
        %3109 = vst [vmem:[%s204 + $0x1a38] sm:$0xff] %v2085
        %3110 = vst [vmem:[%s204 + $0x1a40] sm:$0xff] %v2086
        %3111 = vst [vmem:[%s204 + $0x1a48] sm:$0xff] %v2087
        %3112 = vst [vmem:[%s204 + $0x1a50] sm:$0xff] %v2088
        %3113 = vst [vmem:[%s204 + $0x1a58] sm:$0xff] %v2089
        %3114 = vst [vmem:[%s204 + $0x1a60] sm:$0xff] %v2090
        %3115 = vst [vmem:[%s204 + $0x1a68] sm:$0xff] %v2091
        %3116 = vst [vmem:[%s204 + $0x1a70] sm:$0xff] %v2092
        %3117 = vst [vmem:[%s204 + $0x1a78] sm:$0xff] %v2093
        %3118 = vst [vmem:[%s204 + $0x1a80] sm:$0xff] %v2094
        %3119 = vst [vmem:[%s204 + $0x1a88] sm:$0xff] %v2095
        %3120 = vst [vmem:[%s204 + $0x1a90] sm:$0xff] %v2096
        %3121 = vst [vmem:[%s204 + $0x1a98] sm:$0xff] %v2097
        %3122 = vst [vmem:[%s204 + $0x1aa0] sm:$0xff] %v2098
        %3123 = vst [vmem:[%s204 + $0x1aa8] sm:$0xff] %v2099
        %3124 = vst [vmem:[%s204 + $0x1ab0] sm:$0xff] %v2100
        %3125 = vst [vmem:[%s204 + $0x1ab8] sm:$0xff] %v2101
        %3126 = vst [vmem:[%s204 + $0x1ac0] sm:$0xff] %v2102
        %3127 = vst [vmem:[%s204 + $0x1ac8] sm:$0xff] %v2103
        %3128 = vst [vmem:[%s204 + $0x1ad0] sm:$0xff] %v2104
        %3129 = vst [vmem:[%s204 + $0x1ad8] sm:$0xff] %v2105
        %3130 = vst [vmem:[%s204 + $0x1ae0] sm:$0xff] %v2106
        %3131 = vst [vmem:[%s204 + $0x1ae8] sm:$0xff] %v2107
        %3132 = vst [vmem:[%s204 + $0x1af0] sm:$0xff] %v2108
        %3133 = vst [vmem:[%s204 + $0x1af8] sm:$0xff] %v2109
        %3134 = vst [vmem:[%s204 + $0x1b00] sm:$0xff] %v2110
        %3135 = vst [vmem:[%s204 + $0x1b08] sm:$0xff] %v2111
        %3136 = vst [vmem:[%s204 + $0x1b10] sm:$0xff] %v2112
        %3137 = vst [vmem:[%s204 + $0x1b18] sm:$0xff] %v2113
        %3138 = vst [vmem:[%s204 + $0x1b20] sm:$0xff] %v2114
        %3139 = vst [vmem:[%s204 + $0x1b28] sm:$0xff] %v2115
        %3140 = vst [vmem:[%s204 + $0x1b30] sm:$0xff] %v2116
        %3141 = vst [vmem:[%s204 + $0x1b38] sm:$0xff] %v2117
        %3142 = vst [vmem:[%s204 + $0x1b40] sm:$0xff] %v2118
        %3143 = vst [vmem:[%s204 + $0x1b48] sm:$0xff] %v2119
        %3144 = vst [vmem:[%s204 + $0x1b50] sm:$0xff] %v2120
        %3145 = vst [vmem:[%s204 + $0x1b58] sm:$0xff] %v2121
        %3146 = vst [vmem:[%s204 + $0x1b60] sm:$0xff] %v2122
        %3147 = vst [vmem:[%s204 + $0x1b68] sm:$0xff] %v2123
        %3148 = vst [vmem:[%s204 + $0x1b70] sm:$0xff] %v2124
        %3149 = vst [vmem:[%s204 + $0x1b78] sm:$0xff] %v2125
        %3150 = vst [vmem:[%s204 + $0x1b80] sm:$0xff] %v2126
        %3151 = vst [vmem:[%s204 + $0x1b88] sm:$0xff] %v2127
        %3152 = vst [vmem:[%s204 + $0x1b90] sm:$0xff] %v2128
        %3153 = vst [vmem:[%s204 + $0x1b98] sm:$0xff] %v2129
        %3154 = vst [vmem:[%s204 + $0x1ba0] sm:$0xff] %v2130
        %3155 = vst [vmem:[%s204 + $0x1ba8] sm:$0xff] %v2131
        %3156 = vst [vmem:[%s204 + $0x1bb0] sm:$0xff] %v2132
        %3157 = vst [vmem:[%s204 + $0x1bb8] sm:$0xff] %v2133
        %3158 = vst [vmem:[%s204 + $0x1bc0] sm:$0xff] %v2134
        %3159 = vst [vmem:[%s204 + $0x1bc8] sm:$0xff] %v2135
        %3160 = vst [vmem:[%s204 + $0x1bd0] sm:$0xff] %v2136
        %3161 = vst [vmem:[%s204 + $0x1bd8] sm:$0xff] %v2137
        %3162 = vst [vmem:[%s204 + $0x1be0] sm:$0xff] %v2138
        %3163 = vst [vmem:[%s204 + $0x1be8] sm:$0xff] %v2139
        %3164 = vst [vmem:[%s204 + $0x1bf0] sm:$0xff] %v2140
        %3165 = vst [vmem:[%s204 + $0x1bf8] sm:$0xff] %v2141
        %3166 = vst [vmem:[%s204 + $0x1c00] sm:$0xff] %v2142
        %3167 = vst [vmem:[%s204 + $0x1c08] sm:$0xff] %v2143
        %3168 = vst [vmem:[%s204 + $0x1c10] sm:$0xff] %v2144
        %3169 = vst [vmem:[%s204 + $0x1c18] sm:$0xff] %v2145
        %3170 = vst [vmem:[%s204 + $0x1c20] sm:$0xff] %v2146
        %3171 = vst [vmem:[%s204 + $0x1c28] sm:$0xff] %v2147
        %3172 = vst [vmem:[%s204 + $0x1c30] sm:$0xff] %v2148
        %3173 = vst [vmem:[%s204 + $0x1c38] sm:$0xff] %v2149
        %3174 = vst [vmem:[%s204 + $0x1c40] sm:$0xff] %v2150
        %3175 = vst [vmem:[%s204 + $0x1c48] sm:$0xff] %v2151
        %3176 = vst [vmem:[%s204 + $0x1c50] sm:$0xff] %v2152
        %3177 = vst [vmem:[%s204 + $0x1c58] sm:$0xff] %v2153
        %3178 = vst [vmem:[%s204 + $0x1c60] sm:$0xff] %v2154
        %3179 = vst [vmem:[%s204 + $0x1c68] sm:$0xff] %v2155
        %3180 = vst [vmem:[%s204 + $0x1c70] sm:$0xff] %v2156
        %3181 = vst [vmem:[%s204 + $0x1c78] sm:$0xff] %v2157
        %3182 = vst [vmem:[%s204 + $0x1c80] sm:$0xff] %v2158
        %3183 = vst [vmem:[%s204 + $0x1c88] sm:$0xff] %v2159
        %3184 = vst [vmem:[%s204 + $0x1c90] sm:$0xff] %v2160
        %3185 = vst [vmem:[%s204 + $0x1c98] sm:$0xff] %v2161
        %3186 = vst [vmem:[%s204 + $0x1ca0] sm:$0xff] %v2162
        %3187 = vst [vmem:[%s204 + $0x1ca8] sm:$0xff] %v2163
        %3188 = vst [vmem:[%s204 + $0x1cb0] sm:$0xff] %v2164
        %3189 = vst [vmem:[%s204 + $0x1cb8] sm:$0xff] %v2165
        %3190 = vst [vmem:[%s204 + $0x1cc0] sm:$0xff] %v2166
        %3191 = vst [vmem:[%s204 + $0x1cc8] sm:$0xff] %v2167
        %3192 = vst [vmem:[%s204 + $0x1cd0] sm:$0xff] %v2168
        %3193 = vst [vmem:[%s204 + $0x1cd8] sm:$0xff] %v2169
        %3194 = vst [vmem:[%s204 + $0x1ce0] sm:$0xff] %v2170
        %3195 = vst [vmem:[%s204 + $0x1ce8] sm:$0xff] %v2171
        %3196 = vst [vmem:[%s204 + $0x1cf0] sm:$0xff] %v2172
        %3197 = vst [vmem:[%s204 + $0x1cf8] sm:$0xff] %v2173
        %3198 = vst [vmem:[%s204 + $0x1d00] sm:$0xff] %v2174
        %3199 = vst [vmem:[%s204 + $0x1d08] sm:$0xff] %v2175
        %3200 = vst [vmem:[%s204 + $0x1d10] sm:$0xff] %v2176
        %3201 = vst [vmem:[%s204 + $0x1d18] sm:$0xff] %v2177
        %3202 = vst [vmem:[%s204 + $0x1d20] sm:$0xff] %v2178
        %3203 = vst [vmem:[%s204 + $0x1d28] sm:$0xff] %v2179
        %3204 = vst [vmem:[%s204 + $0x1d30] sm:$0xff] %v2180
        %3205 = vst [vmem:[%s204 + $0x1d38] sm:$0xff] %v2181
        %3206 = vst [vmem:[%s204 + $0x1d40] sm:$0xff] %v2182
        %3207 = vst [vmem:[%s204 + $0x1d48] sm:$0xff] %v2183
        %3208 = vst [vmem:[%s204 + $0x1d50] sm:$0xff] %v2184
        %3209 = vst [vmem:[%s204 + $0x1d58] sm:$0xff] %v2185
        %3210 = vst [vmem:[%s204 + $0x1d60] sm:$0xff] %v2186
        %3211 = vst [vmem:[%s204 + $0x1d68] sm:$0xff] %v2187
        %3212 = vst [vmem:[%s204 + $0x1d70] sm:$0xff] %v2188
        %3213 = vst [vmem:[%s204 + $0x1d78] sm:$0xff] %v2189
        %3214 = vst [vmem:[%s204 + $0x1d80] sm:$0xff] %v2190
        %3215 = vst [vmem:[%s204 + $0x1d88] sm:$0xff] %v2191
        %3216 = vst [vmem:[%s204 + $0x1d90] sm:$0xff] %v2192
        %3217 = vst [vmem:[%s204 + $0x1d98] sm:$0xff] %v2193
        %3218 = vst [vmem:[%s204 + $0x1da0] sm:$0xff] %v2194
        %3219 = vst [vmem:[%s204 + $0x1da8] sm:$0xff] %v2195
        %3220 = vst [vmem:[%s204 + $0x1db0] sm:$0xff] %v2196
        %3221 = vst [vmem:[%s204 + $0x1db8] sm:$0xff] %v2197
        %3222 = vst [vmem:[%s204 + $0x1dc0] sm:$0xff] %v2198
        %3223 = vst [vmem:[%s204 + $0x1dc8] sm:$0xff] %v2199
        %3224 = vst [vmem:[%s204 + $0x1dd0] sm:$0xff] %v2200
        %3225 = vst [vmem:[%s204 + $0x1dd8] sm:$0xff] %v2201
        %3226 = vst [vmem:[%s204 + $0x1de0] sm:$0xff] %v2202
        %3227 = vst [vmem:[%s204 + $0x1de8] sm:$0xff] %v2203
        %3228 = vst [vmem:[%s204 + $0x1df0] sm:$0xff] %v2204
        %3229 = vst [vmem:[%s204 + $0x1df8] sm:$0xff] %v2205
        %3230 = vst [vmem:[%s204 + $0x1e00] sm:$0xff] %v2206
        %3231 = vst [vmem:[%s204 + $0x1e08] sm:$0xff] %v2207
        %3232 = vst [vmem:[%s204 + $0x1e10] sm:$0xff] %v2208
        %3233 = vst [vmem:[%s204 + $0x1e18] sm:$0xff] %v2209
        %3234 = vst [vmem:[%s204 + $0x1e20] sm:$0xff] %v2210
        %3235 = vst [vmem:[%s204 + $0x1e28] sm:$0xff] %v2211
        %3236 = vst [vmem:[%s204 + $0x1e30] sm:$0xff] %v2212
        %3237 = vst [vmem:[%s204 + $0x1e38] sm:$0xff] %v2213
        %3238 = vst [vmem:[%s204 + $0x1e40] sm:$0xff] %v2214
        %3239 = vst [vmem:[%s204 + $0x1e48] sm:$0xff] %v2215
        %3240 = vst [vmem:[%s204 + $0x1e50] sm:$0xff] %v2216
        %3241 = vst [vmem:[%s204 + $0x1e58] sm:$0xff] %v2217
        %3242 = vst [vmem:[%s204 + $0x1e60] sm:$0xff] %v2218
        %3243 = vst [vmem:[%s204 + $0x1e68] sm:$0xff] %v2219
        %3244 = vst [vmem:[%s204 + $0x1e70] sm:$0xff] %v2220
        %3245 = vst [vmem:[%s204 + $0x1e78] sm:$0xff] %v2221
        %3246 = vst [vmem:[%s204 + $0x1e80] sm:$0xff] %v2222
        %3247 = vst [vmem:[%s204 + $0x1e88] sm:$0xff] %v2223
        %3248 = vst [vmem:[%s204 + $0x1e90] sm:$0xff] %v2224
        %3249 = vst [vmem:[%s204 + $0x1e98] sm:$0xff] %v2225
        %3250 = vst [vmem:[%s204 + $0x1ea0] sm:$0xff] %v2226
        %3251 = vst [vmem:[%s204 + $0x1ea8] sm:$0xff] %v2227
        %3252 = vst [vmem:[%s204 + $0x1eb0] sm:$0xff] %v2228
        %3253 = vst [vmem:[%s204 + $0x1eb8] sm:$0xff] %v2229
        %3254 = vst [vmem:[%s204 + $0x1ec0] sm:$0xff] %v2230
        %3255 = vst [vmem:[%s204 + $0x1ec8] sm:$0xff] %v2231
        %3256 = vst [vmem:[%s204 + $0x1ed0] sm:$0xff] %v2232
        %3257 = vst [vmem:[%s204 + $0x1ed8] sm:$0xff] %v2233
        %3258 = vst [vmem:[%s204 + $0x1ee0] sm:$0xff] %v2234
        %3259 = vst [vmem:[%s204 + $0x1ee8] sm:$0xff] %v2235
        %3260 = vst [vmem:[%s204 + $0x1ef0] sm:$0xff] %v2236
        %3261 = vst [vmem:[%s204 + $0x1ef8] sm:$0xff] %v2237
        %3262 = vst [vmem:[%s204 + $0x1f00] sm:$0xff] %v2238
        %3263 = vst [vmem:[%s204 + $0x1f08] sm:$0xff] %v2239
        %3264 = vst [vmem:[%s204 + $0x1f10] sm:$0xff] %v2240
        %3265 = vst [vmem:[%s204 + $0x1f18] sm:$0xff] %v2241
        %3266 = vst [vmem:[%s204 + $0x1f20] sm:$0xff] %v2242
        %3267 = vst [vmem:[%s204 + $0x1f28] sm:$0xff] %v2243
        %3268 = vst [vmem:[%s204 + $0x1f30] sm:$0xff] %v2244
        %3269 = vst [vmem:[%s204 + $0x1f38] sm:$0xff] %v2245
        %3270 = vst [vmem:[%s204 + $0x1f40] sm:$0xff] %v2246
        %3271 = vst [vmem:[%s204 + $0x1f48] sm:$0xff] %v2247
        %3272 = vst [vmem:[%s204 + $0x1f50] sm:$0xff] %v2248
        %3273 = vst [vmem:[%s204 + $0x1f58] sm:$0xff] %v2249
        %3274 = vst [vmem:[%s204 + $0x1f60] sm:$0xff] %v2250
        %3275 = vst [vmem:[%s204 + $0x1f68] sm:$0xff] %v2251
        %3276 = vst [vmem:[%s204 + $0x1f70] sm:$0xff] %v2252
        %3277 = vst [vmem:[%s204 + $0x1f78] sm:$0xff] %v2253
        %3278 = vst [vmem:[%s204 + $0x1f80] sm:$0xff] %v2254
        %3279 = vst [vmem:[%s204 + $0x1f88] sm:$0xff] %v2255
        %3280 = vst [vmem:[%s204 + $0x1f90] sm:$0xff] %v2256
        %3281 = vst [vmem:[%s204 + $0x1f98] sm:$0xff] %v2257
        %3282 = vst [vmem:[%s204 + $0x1fa0] sm:$0xff] %v2258
        %3283 = vst [vmem:[%s204 + $0x1fa8] sm:$0xff] %v2259
        %3284 = vst [vmem:[%s204 + $0x1fb0] sm:$0xff] %v2260
        %3285 = vst [vmem:[%s204 + $0x1fb8] sm:$0xff] %v2261
        %3286 = vst [vmem:[%s204 + $0x1fc0] sm:$0xff] %v2262
        %3287 = vst [vmem:[%s204 + $0x1fc8] sm:$0xff] %v2263
        %3288 = vst [vmem:[%s204 + $0x1fd0] sm:$0xff] %v2264
        %3289 = vst [vmem:[%s204 + $0x1fd8] sm:$0xff] %v2265
        %3290 = vst [vmem:[%s204 + $0x1fe0] sm:$0xff] %v2266
        %3291 = vst [vmem:[%s204 + $0x1fe8] sm:$0xff] %v2267
        %3292 = vst [vmem:[%s204 + $0x1ff0] sm:$0xff] %v2268
        %3293 = vst [vmem:[%s204 + $0x1ff8] sm:$0xff] %v2269
        %s3294 = sand.u32 %s96, 1
        %s3295 = scalar_lea.sflag [#allocation4], %s3294
        %s3296 = sand.u32 %s96, 1
        %s3297 = smul.addr %s3296, 8192
        %s3298 = scalar_lea.vmem [#allocation7], %s3297
        // Predicated region
        $region37: #{tpu_custom_call.1} parent=27 // pred_check
          %p3299 = pneg %p106
        $region38: #{tpu_custom_call.1} parent=27 // pred_check_branch
          %3301 = sbr.rel (%p3299) target = $region40
        $region39: #{tpu_custom_call.1} parent=27 // pred_region
          %s3302 = smul.u32 1024, %s25
          %s3303 = ssub.s32 1250, %s3302
          %p3304 = scmp.lt.s32.totalorder %s3303, 1024
          %s3305 = scalar_select %p3304, %s3303, 1024
          %s3306 = smul.u32 128, %s3305
          %s3308 = ssub.s32 131072, %s3306
          %3309 = vsyncadd %s3295, %s3308
          %p3310 = scmp.ne.s32.totalorder 0, %s3306
          %s3311 = sadd.s32 %s24, %s3302
          %s3312 = smul.addr %s3311, 128
          %s3313 = scalar_lea.hbm %s2, %s3312
          %s3314 = smul.u32 8, %s3305
          %s3315 = sshll.u32 %s3298, 4
          %s3316 = int_to_ptr.vmem [resolvable:$true] %s3315
          %s3317 = sshll.u32 %s3314, 4
          %3321 = dma.vmem_to_hbm [thread:$0]  (%p3310), %s3316, %s3317, %s3313, %s3295, 128, 128, 8
        $region40: #{tpu_custom_call.1} parent=27 // pred_fallthru
          _
      $region28: #{tpu_custom_call.1} parent=5 // pred_fallthru
        _
      %p3322 = scmp.le.s32.totalorder 2, %s15
      // Predicated region
      $region41: #{tpu_custom_call.1} parent=5 // pred_check
        %p3323 = pneg %p3322
      $region42: #{tpu_custom_call.1} parent=5 // pred_check_branch
        %3325 = sbr.rel (%p3323) target = $region44
      $region43: #{tpu_custom_call.1} parent=5 // pred_region
        %s3326 = ssub.s32 %s15, 2
        // Predicated region
        $region45: #{tpu_custom_call.1} parent=43 // pred_check
          %p3327 = pneg %p112
        $region46: #{tpu_custom_call.1} parent=43 // pred_check_branch
          %3329 = sbr.rel (%p3327) target = $region48
        $region47: #{tpu_custom_call.1} parent=43 // pred_region
          %s3330 = sand.u32 %s97, 1
          %s3331 = scalar_lea.sflag [#allocation4], %s3330
          %s3332 = sand.u32 %s97, 1
          %s3333 = smul.addr %s3332, 8192
          %s3334 = scalar_lea.vmem [#allocation7], %s3333
          %3335 = dma.done %s3331, 131072
        $region48: #{tpu_custom_call.1} parent=43 // pred_fallthru
          _
      $region44: #{tpu_custom_call.1} parent=5 // pred_fallthru
        _
    $region6: #{tpu_custom_call.1} parent=1 // loop_footer
      %s19 = sadd.s32 1, %s15
    $region7: #{tpu_custom_call.1} parent=1 // loop_footer_branch
      %14 = sbr.rel target = $region3
    $region8: #{tpu_custom_call.1} parent=1 // loop_exit
      _
    %3336 = vsyncpa [#allocation3], 1
    %s3337 = scalar_lea.sflag [#allocation3], 1
    %3338 = vsyncpa %s3337, 1
    %3339 = vsyncpa [#allocation6], 1
    %3340 = vsyncpa [#allocation4], 1
    %s3341 = scalar_lea.sflag [#allocation4], 1
    %3342 = vsyncpa %s3341, 1

</llo_original>
